<compile_context>
chip_gen: v7x
topology: tpu7x:2x2x1
jax: 0.10.0
libtpu: 0.0.40
codegen_flags: <defaults>
</compile_context>

<pallas_src>
import jax
import jax.numpy as jnp
from jax import lax
from jax.experimental import pallas as pl
from jax.experimental.pallas import tpu as pltpu

EPS = 1e-5
LANES = 128


# ------------------------------ shared helpers ------------------------------ #

def _rup(x, m):
    return ((x + m - 1) // m) * m


def _pad_to(a, shape):
    return jnp.pad(a, [(0, t - s) for s, t in zip(a.shape, shape)])


def _pick_m_tile(m, cap=512):
    """Largest multiple of 8 that divides m and is <= cap (else m itself)."""
    for cand in range(min(cap, m), 7, -1):
        if m % cand == 0 and cand % 8 == 0:
            return cand
    return m


def _vmem_limit_bytes():
    """Generation-aware scoped-VMEM limit: ~85% of physical, capped at 100 MiB."""
    try:
        cap = pltpu.get_tpu_info().vmem_capacity_bytes
    except Exception:
        cap = 64 * 1024 * 1024          # conservative (v7x-sized) fallback
    return min(int(cap * 0.85), 100 * 1024 * 1024)


# ----------------------------- Pallas kernels ------------------------------ #

def _conv1_stats_kernel(x_ref, w1_ref, y_ref, sum_ref, ssq_ref):
    """Stage 1: conv1 (1x1) raw output + per-channel sum / sum-of-squares.

    grid = (channel tiles j [parallel], M tiles i [arbitrary/reduction]).
    y is streamed out pre-BN (bf16); sum/ssq accumulate in a resident block.
    """
    i = pl.program_id(1)

    y = jnp.dot(x_ref[...], w1_ref[...], preferred_element_type=jnp.float32)
    y_ref[...] = y.astype(y_ref.dtype)

    @pl.when(i == 0)
    def _():
        sum_ref[...] = jnp.zeros_like(sum_ref)
        ssq_ref[...] = jnp.zeros_like(ssq_ref)

    sum_ref[...] += jnp.sum(y, axis=0, keepdims=True)
    ssq_ref[...] += jnp.sum(y * y, axis=0, keepdims=True)


def _conv2_conv3_res_kernel(y1_ref, s1_ref, t1_ref, w2_ref, g2_ref, b2_ref,
                            w3_ref, g3_ref, b3_ref, res_ref, o_ref, ypad_ref):
    """Stage 2: BN1-affine+ReLU -> conv2(3x3) -> BN2+ReLU -> conv3(1x1) -> BN3
    -> +residual -> ReLU, fused in one launch.

    y1:   (N, H, W, Cc_p) bf16, raw conv1 output
    s1/t1: (1, Cc_p) f32 folded BN1 scale/shift (from stage-1 batch stats)
    w2:   (9, Cc_p, Cc_p) bf16 tap-major; w3: (Cc_p, Cout_p) bf16
    res:  (M, Cout_p) bf16 identity branch; o: (M, Cout_p) bf16
    ypad: (N, H+2, W+2, Cc_p) bf16 VMEM scratch (halo = conv2's zero padding)
    """
    n, h, w, c = y1_ref.shape
    m = n * h * w
    inv_m = 1.0 / m

    # --- BN1 folded affine + ReLU, written once into the padded VMEM scratch.
    #     The halo stays zero, matching pad-after-BN1-ReLU semantics. ---
    ypad_ref[...] = jnp.zeros_like(ypad_ref)
    sc1 = s1_ref[...].reshape(1, 1, 1, c)
    sh1 = t1_ref[...].reshape(1, 1, 1, c)
    y1n = jnp.maximum(y1_ref[...] * sc1 + sh1, 0.0)
    ypad_ref[:, 1:1 + h, 1:1 + w, :] = y1n.astype(ypad_ref.dtype)

    # --- conv2: 3x3, stride 1, pad 1 as 9 shifted-tap bf16 matmuls (f32 acc).
    #     Taps are static window slices of the bf16 scratch (no f32 temp). ---
    acc = jnp.zeros((m, c), jnp.float32)
    for t in range(9):                                   # static, unrolled
        dy, dx = t // 3, t % 3
        tap = ypad_ref[:, dy:dy + h, dx:dx + w, :].reshape(m, c)
        acc = acc + jnp.dot(tap, w2_ref[t], preferred_element_type=jnp.float32)

    # --- BN2 (batch stats, folded affine) + ReLU ---
    mu2 = jnp.sum(acc, axis=0, keepdims=True) * inv_m
    var2 = jnp.maximum(jnp.sum(acc * acc, axis=0, keepdims=True) * inv_m - mu2 * mu2, 0.0)
    sc2 = g2_ref[...] * lax.rsqrt(var2 + EPS)
    sh2 = b2_ref[...] - mu2 * sc2
    y2 = jnp.maximum(acc * sc2 + sh2, 0.0).astype(jnp.bfloat16)

    # --- conv3 (1x1) + BN3 (folded affine) + residual add + ReLU ---
    y3 = jnp.dot(y2, w3_ref[...], preferred_element_type=jnp.float32)
    mu3 = jnp.sum(y3, axis=0, keepdims=True) * inv_m
    var3 = jnp.maximum(jnp.sum(y3 * y3, axis=0, keepdims=True) * inv_m - mu3 * mu3, 0.0)
    sc3 = g3_ref[...] * lax.rsqrt(var3 + EPS)
    sh3 = b3_ref[...] - mu3 * sc3
    out = jnp.maximum(y3 * sc3 + sh3 + res_ref[...], 0.0)
    o_ref[...] = out.astype(o_ref.dtype)


# ------------------------------ forward wrapper ----------------------------- #

def bottleneck_forward(x_nchw, p):
    """x: (N, Cin, H, W) float32. Returns relu(residual(x) + x), NCHW float32."""
    n, cin, h, w = x_nchw.shape
    m = n * h * w
    cc = p["w2"].shape[0]          # compress = out_channels // 4
    cout = p["w3"].shape[0]
    assert cin == cout, "identity residual requires in_channels == out_channels"

    cin_p, cc_p = _rup(cin, LANES), _rup(cc, LANES)
    cout_p = cin_p

    # Single layout change NCHW -> (M, C) channels-last; the bf16 matrix doubles as
    # the conv1 LHS and the residual branch (no separate f32 residual in HBM).
    x_mat = jnp.transpose(x_nchw, (0, 2, 3, 1)).reshape(m, cin)
    x_bf16 = _pad_to(x_mat, (m, cin_p)).astype(jnp.bfloat16)

    # Weights / BN params: channel-pad to multiples of 128, weights in bf16.
    w1 = _pad_to(p["w1"][:, :, 0, 0].T, (cin_p, cc_p)).astype(jnp.bfloat16)
    w2 = _pad_to(p["w2"].transpose(2, 3, 1, 0).reshape(9, cc, cc),
                 (9, cc_p, cc_p)).astype(jnp.bfloat16)          # tap-major (ky*3+kx, I, O)
    w3 = _pad_to(p["w3"][:, :, 0, 0].T, (cc_p, cout_p)).astype(jnp.bfloat16)
    g1 = _pad_to(p["g1"][None, :], (1, cc_p))
    be1 = _pad_to(p["beta1"][None, :], (1, cc_p))
    g2 = _pad_to(p["g2"][None, :], (1, cc_p))
    be2 = _pad_to(p["beta2"][None, :], (1, cc_p))
    g3 = _pad_to(p["g3"][None, :], (1, cout_p))
    be3 = _pad_to(p["beta3"][None, :], (1, cout_p))

    vmem_limit = _vmem_limit_bytes()

    # Stage-1 output-channel tile: 256 on 256-wide MXUs (v6e/v7x) when channels allow.
    kind = jax.devices()[0].device_kind.lower()
    wide_mxu = ("v6" in kind) or ("v7" in kind)
    ct = 256 if (wide_mxu and cc_p % 256 == 0) else LANES
    tm = _pick_m_tile(m)

    # --- Stage 1: conv1 (1x1), M-tiled and channel-tiled, + per-channel stats. ---
    y1_raw, s1, q1 = pl.pallas_call(
        _conv1_stats_kernel,
        out_shape=(jax.ShapeDtypeStruct((m, cc_p), jnp.bfloat16),
                   jax.ShapeDtypeStruct((1, cc_p), jnp.float32),
                   jax.ShapeDtypeStruct((1, cc_p), jnp.float32)),
        grid=(cc_p // ct, m // tm),
        in_specs=[
            pl.BlockSpec((tm, cin_p), lambda j, i: (i, 0)),   # x row-tiles (pipelined)
            pl.BlockSpec((cin_p, ct), lambda j, i: (0, j)),   # weight channel tile
        ],
        out_specs=[
            pl.BlockSpec((tm, ct), lambda j, i: (i, j)),      # raw y1, streamed
            pl.BlockSpec((1, ct), lambda j, i: (0, j)),       # sum   (resident acc)
            pl.BlockSpec((1, ct), lambda j, i: (0, j)),       # sumsq (resident acc)
        ],
        compiler_params=pltpu.CompilerParams(
            dimension_semantics=("parallel", "arbitrary"),
            vmem_limit_bytes=vmem_limit),
    )(x_bf16, w1)

    # BN1 folded to a per-channel affine (tiny (1, Cc_p) math, plain XLA).
    mean1 = s1 * (1.0 / m)
    var1 = jnp.maximum(q1 * (1.0 / m) - mean1 * mean1, 0.0)
    scale1 = g1 * lax.rsqrt(var1 + EPS)
    shift1 = be1 - mean1 * scale1

    # --- Stage 2 fused: BN1-affine+ReLU + conv2(3x3) + BN2 + ReLU + conv3(1x1)
    #     + BN3 + residual add + ReLU.  Halo built in VMEM (no HBM pad pass). ---
    y1_nhwc = y1_raw.reshape(n, h, w, cc_p)                   # contiguous, free
    vmem = pl.BlockSpec(memory_space=pltpu.MemorySpace.VMEM)
    out_mat = pl.pallas_call(
        _conv2_conv3_res_kernel,
        out_shape=jax.ShapeDtypeStruct((m, cout_p), jnp.bfloat16),
        in_specs=[vmem] * 10,
        out_specs=vmem,
        scratch_shapes=[pltpu.VMEM((n, h + 2, w + 2, cc_p), jnp.bfloat16)],
        compiler_params=pltpu.CompilerParams(vmem_limit_bytes=vmem_limit),
    )(y1_nhwc, scale1, shift1, w2, g2, be2, w3, g3, be3, x_bf16)

    out = out_mat.reshape(n, h, w, cout_p)[:, :, :, :cout]
    return jnp.transpose(out, (0, 3, 1, 2)).astype(jnp.float32)   # back to NCHW f32


# -------------------------- pure-JAX reference ------------------------------ #

def _ref_forward(x, p):
    dn = ("NCHW", "OIHW", "NCHW")

    def bn_train(y, g, b):
        mean = jnp.mean(y, axis=(0, 2, 3), keepdims=True)
        var = jnp.mean((y - mean) ** 2, axis=(0, 2, 3), keepdims=True)
        return (y - mean) * lax.rsqrt(var + EPS) * g.reshape(1, -1, 1, 1) + b.reshape(1, -1, 1, 1)

    y = lax.conv_general_dilated(x, p["w1"], (1, 1), "VALID", dimension_numbers=dn)
    y = jnp.maximum(bn_train(y + p["b1"].reshape(1, -1, 1, 1), p["g1"], p["beta1"]), 0.0)
    y = lax.conv_general_dilated(y, p["w2"], (1, 1), ((1, 1), (1, 1)), dimension_numbers=dn)
    y = jnp.maximum(bn_train(y + p["b2"].reshape(1, -1, 1, 1), p["g2"], p["beta2"]), 0.0)
    y = lax.conv_general_dilated(y, p["w3"], (1, 1), "VALID", dimension_numbers=dn)
    y = bn_train(y + p["b3"].reshape(1, -1, 1, 1), p["g3"], p["beta3"])
    return jnp.maximum(y + x, 0.0)


# --------------------------------- main ------------------------------------ #

def _init_params(key, in_channels, out_channels):
    compress = out_channels // 4
    ks = jax.random.split(key, 12)
    f32 = jnp.float32
    return {
        "w1": 0.2 * jax.random.normal(ks[0], (compress, in_channels, 1, 1), f32),
        "b1": 0.1 * jax.random.normal(ks[1], (compress,), f32),
        "g1": 1.0 + 0.1 * jax.random.normal(ks[2], (compress,), f32),
        "beta1": 0.1 * jax.random.normal(ks[3], (compress,), f32),
        "w2": 0.2 * jax.random.normal(ks[4], (compress, compress, 3, 3), f32),
        "b2": 0.1 * jax.random.normal(ks[5], (compress,), f32),
        "g2": 1.0 + 0.1 * jax.random.normal(ks[6], (compress,), f32),
        "beta2": 0.1 * jax.random.normal(ks[7], (compress,), f32),
        "w3": 0.2 * jax.random.normal(ks[8], (out_channels, compress, 1, 1), f32),
        "b3": 0.1 * jax.random.normal(ks[9], (out_channels,), f32),
        "g3": 1.0 + 0.1 * jax.random.normal(ks[10], (out_channels,), f32),
        "beta3": 0.1 * jax.random.normal(ks[11], (out_channels,), f32),
    }


if __name__ == "__main__":
    key = jax.random.PRNGKey(0)
    kx, kp = jax.random.split(key)

    N, C, H, W = 2, 16, 8, 8          # in_channels == out_channels, stride=1, no down_sample
    x = jax.random.normal(kx, (N, C, H, W), jnp.float32)
    params = _init_params(kp, in_channels=C, out_channels=C)

    out = jax.jit(bottleneck_forward)(x, params)
    out = jax.block_until_ready(out)

    ref = _ref_forward(x, params)
    assert out.shape == (N, C, H, W)
    max_err = float(jnp.max(jnp.abs(out - ref)))
    # bf16 matmul operands / bf16 intermediates (f32 accumulation) -> bf16-sized tolerance.
    assert jnp.allclose(out, ref, atol=5e-2, rtol=5e-2), max_err

    # NOTE: PyTorch's forward() has no return statement; we return the tensor that
    # F.relu(out, inplace=True) leaves behind.
    print("KERNEL_OK")
</pallas_src>

<mosaic_0001>
module attributes {stable_mosaic.version = 11 : i64} {
  func.func @_conv1_stats_kernel(%arg0: i32, %arg1: i32, %arg2: memref<128x128xbf16, #tpu.memory_space<vmem>>, %arg3: memref<128x128xbf16, #tpu.memory_space<vmem>>, %arg4: memref<128x128xbf16, #tpu.memory_space<vmem>>, %arg5: memref<1x128xf32, #tpu.memory_space<vmem>>, %arg6: memref<1x128xf32, #tpu.memory_space<vmem>>) attributes {dimension_semantics = [#tpu.dimension_semantics<parallel>, #tpu.dimension_semantics<arbitrary>], iteration_bounds = array<i64: 1, 1>, scalar_prefetch = 0 : i64, scratch_operands = 0 : i64, tpu.core_type = #tpu.core_type<tc>, window_params = [{transform_indices = @transform_0, window_bounds = array<i64: 128, 128>}, {transform_indices = @transform_1, window_bounds = array<i64: 128, 128>}, {transform_indices = @transform_2, window_bounds = array<i64: 128, 128>}, {transform_indices = @transform_3, window_bounds = array<i64: 1, 128>}, {transform_indices = @transform_4, window_bounds = array<i64: 1, 128>}]} {
    %c0 = arith.constant 0 : index
    %c0_0 = arith.constant 0 : index
    %0 = vector.load %arg2[%c0, %c0_0] : memref<128x128xbf16, #tpu.memory_space<vmem>>, vector<128x128xbf16>
    %c0_1 = arith.constant 0 : index
    %c0_2 = arith.constant 0 : index
    %1 = vector.load %arg3[%c0_1, %c0_2] : memref<128x128xbf16, #tpu.memory_space<vmem>>, vector<128x128xbf16>
    %cst = arith.constant dense<0.000000e+00> : vector<128x128xf32>
    %2 = tpu.matmul %0, %1, %cst {dimension_numbers = #tpu.dot_dimension_numbers<[1], [0], [0], [1], [0, 0, 1, 1], [], []>} : vector<128x128xbf16>, vector<128x128xbf16>, vector<128x128xf32> -> vector<128x128xf32>
    %3 = arith.truncf %2 : vector<128x128xf32> to vector<128x128xbf16>
    %c0_3 = arith.constant 0 : index
    %c0_4 = arith.constant 0 : index
    %4 = vector.load %arg4[%c0_3, %c0_4] : memref<128x128xbf16, #tpu.memory_space<vmem>>, vector<128x128xbf16>
    tpu.vector_store %arg4[%c0_3, %c0_4], %3 {strides = array<i32>} : memref<128x128xbf16, #tpu.memory_space<vmem>>, vector<128x128xbf16>,
    %c0_i32 = arith.constant 0 : i32
    %5 = arith.cmpi eq, %arg1, %c0_i32 : i32
    %6 = arith.extui %5 : i1 to i32
    %c0_i32_5 = arith.constant 0 : i32
    %7 = arith.cmpi ne, %6, %c0_i32_5 : i32
    scf.if %7 {
      %cst_16 = arith.constant 0.000000e+00 : f32
      %19 = vector.broadcast %cst_16 : f32 to vector<1x128xf32>
      %c0_17 = arith.constant 0 : index
      %c0_18 = arith.constant 0 : index
      %20 = vector.load %arg5[%c0_17, %c0_18] : memref<1x128xf32, #tpu.memory_space<vmem>>, vector<1x128xf32>
      tpu.vector_store %arg5[%c0_17, %c0_18], %19 {strides = array<i32>} : memref<1x128xf32, #tpu.memory_space<vmem>>, vector<1x128xf32>,
      %cst_19 = arith.constant 0.000000e+00 : f32
      %21 = vector.broadcast %cst_19 : f32 to vector<1x128xf32>
      %c0_20 = arith.constant 0 : index
      %c0_21 = arith.constant 0 : index
      %22 = vector.load %arg6[%c0_20, %c0_21] : memref<1x128xf32, #tpu.memory_space<vmem>>, vector<1x128xf32>
      tpu.vector_store %arg6[%c0_20, %c0_21], %21 {strides = array<i32>} : memref<1x128xf32, #tpu.memory_space<vmem>>, vector<1x128xf32>,
    } else {
    }
    %c0_6 = arith.constant 0 : index
    %c0_7 = arith.constant 0 : index
    %8 = vector.load %arg5[%c0_6, %c0_7] : memref<1x128xf32, #tpu.memory_space<vmem>>, vector<1x128xf32>
    %cst_8 = arith.constant dense<0.000000e+00> : vector<128xf32>
    %9 = vector.multi_reduction <add>, %2, %cst_8 [0] : vector<128x128xf32> to vector<128xf32>
    %10 = vector.shape_cast %9 : vector<128xf32> to vector<1x128xf32>
    %11 = arith.addf %8, %10 : vector<1x128xf32>
    %c0_9 = arith.constant 0 : index
    %c0_10 = arith.constant 0 : index
    %12 = vector.load %arg5[%c0_9, %c0_10] : memref<1x128xf32, #tpu.memory_space<vmem>>, vector<1x128xf32>
    tpu.vector_store %arg5[%c0_9, %c0_10], %11 {strides = array<i32>} : memref<1x128xf32, #tpu.memory_space<vmem>>, vector<1x128xf32>,
    %c0_11 = arith.constant 0 : index
    %c0_12 = arith.constant 0 : index
    %13 = vector.load %arg6[%c0_11, %c0_12] : memref<1x128xf32, #tpu.memory_space<vmem>>, vector<1x128xf32>
    %14 = arith.mulf %2, %2 : vector<128x128xf32>
    %cst_13 = arith.constant dense<0.000000e+00> : vector<128xf32>
    %15 = vector.multi_reduction <add>, %14, %cst_13 [0] : vector<128x128xf32> to vector<128xf32>
    %16 = vector.shape_cast %15 : vector<128xf32> to vector<1x128xf32>
    %17 = arith.addf %13, %16 : vector<1x128xf32>
    %c0_14 = arith.constant 0 : index
    %c0_15 = arith.constant 0 : index
    %18 = vector.load %arg6[%c0_14, %c0_15] : memref<1x128xf32, #tpu.memory_space<vmem>>, vector<1x128xf32>
    tpu.vector_store %arg6[%c0_14, %c0_15], %17 {strides = array<i32>} : memref<1x128xf32, #tpu.memory_space<vmem>>, vector<1x128xf32>,
    return
  }
  func.func @transform_0(%arg0: i32, %arg1: i32) -> (i32, i32) {
    %c0_i32 = arith.constant 0 : i32
    %c0_i32_0 = arith.constant 0 : i32
    return %arg1, %c0_i32 : i32, i32
  }
  func.func @transform_1(%arg0: i32, %arg1: i32) -> (i32, i32) {
    %c0_i32 = arith.constant 0 : i32
    %c0_i32_0 = arith.constant 0 : i32
    return %c0_i32, %arg0 : i32, i32
  }
  func.func @transform_2(%arg0: i32, %arg1: i32) -> (i32, i32) {
    %c0_i32 = arith.constant 0 : i32
    return %arg1, %arg0 : i32, i32
  }
  func.func @transform_3(%arg0: i32, %arg1: i32) -> (i32, i32) {
    %c0_i32 = arith.constant 0 : i32
    %c0_i32_0 = arith.constant 0 : i32
    return %c0_i32, %arg0 : i32, i32
  }
  func.func @transform_4(%arg0: i32, %arg1: i32) -> (i32, i32) {
    %c0_i32 = arith.constant 0 : i32
    %c0_i32_0 = arith.constant 0 : i32
    return %c0_i32, %arg0 : i32, i32
  }
}

module attributes {stable_mosaic.version = 11 : i64} {
  func.func @_conv2_conv3_res_kernel(%arg0: memref<2x8x8x128xbf16, #tpu.memory_space<vmem>>, %arg1: memref<1x128xf32, #tpu.memory_space<vmem>>, %arg2: memref<1x128xf32, #tpu.memory_space<vmem>>, %arg3: memref<9x128x128xbf16, #tpu.memory_space<vmem>>, %arg4: memref<1x128xf32, #tpu.memory_space<vmem>>, %arg5: memref<1x128xf32, #tpu.memory_space<vmem>>, %arg6: memref<128x128xbf16, #tpu.memory_space<vmem>>, %arg7: memref<1x128xf32, #tpu.memory_space<vmem>>, %arg8: memref<1x128xf32, #tpu.memory_space<vmem>>, %arg9: memref<128x128xbf16, #tpu.memory_space<vmem>>, %arg10: memref<128x128xbf16, #tpu.memory_space<vmem>>, %arg11: memref<2x10x10x128xbf16, #tpu.memory_space<vmem>>) attributes {dimension_semantics = [], scalar_prefetch = 0 : i64, scratch_operands = 1 : i64, tpu.core_type = #tpu.core_type<tc>} {
    %cst = arith.constant 0.000000e+00 : bf16
    %0 = vector.broadcast %cst : bf16 to vector<2x10x10x128xbf16>
    %c0 = arith.constant 0 : index
    %c0_0 = arith.constant 0 : index
    %c0_1 = arith.constant 0 : index
    %c0_2 = arith.constant 0 : index
    %1 = vector.load %arg11[%c0, %c0_0, %c0_1, %c0_2] : memref<2x10x10x128xbf16, #tpu.memory_space<vmem>>, vector<2x10x10x128xbf16>
    tpu.vector_store %arg11[%c0, %c0_0, %c0_1, %c0_2], %0 {strides = array<i32>} : memref<2x10x10x128xbf16, #tpu.memory_space<vmem>>, vector<2x10x10x128xbf16>,
    %c0_3 = arith.constant 0 : index
    %c0_4 = arith.constant 0 : index
    %2 = vector.load %arg1[%c0_3, %c0_4] : memref<1x128xf32, #tpu.memory_space<vmem>>, vector<1x128xf32>
    %3 = vector.shape_cast %2 : vector<1x128xf32> to vector<1x1x1x128xf32>
    %c0_5 = arith.constant 0 : index
    %c0_6 = arith.constant 0 : index
    %4 = vector.load %arg2[%c0_5, %c0_6] : memref<1x128xf32, #tpu.memory_space<vmem>>, vector<1x128xf32>
    %5 = vector.shape_cast %4 : vector<1x128xf32> to vector<1x1x1x128xf32>
    %c0_7 = arith.constant 0 : index
    %c0_8 = arith.constant 0 : index
    %c0_9 = arith.constant 0 : index
    %c0_10 = arith.constant 0 : index
    %6 = vector.load %arg0[%c0_7, %c0_8, %c0_9, %c0_10] : memref<2x8x8x128xbf16, #tpu.memory_space<vmem>>, vector<2x8x8x128xbf16>
    %7 = arith.extf %6 : vector<2x8x8x128xbf16> to vector<2x8x8x128xf32>
    %8 = vector.broadcast %3 : vector<1x1x1x128xf32> to vector<2x8x8x128xf32>
    %9 = arith.mulf %7, %8 : vector<2x8x8x128xf32>
    %10 = vector.broadcast %5 : vector<1x1x1x128xf32> to vector<2x8x8x128xf32>
    %11 = arith.addf %9, %10 : vector<2x8x8x128xf32>
    %cst_11 = arith.constant 0.000000e+00 : f32
    %12 = vector.broadcast %cst_11 : f32 to vector<2x8x8x128xf32>
    %13 = arith.maximumf %11, %12 : vector<2x8x8x128xf32>
    %14 = arith.truncf %13 : vector<2x8x8x128xf32> to vector<2x8x8x128xbf16>
    %c0_12 = arith.constant 0 : index
    %c1 = arith.constant 1 : index
    %c1_13 = arith.constant 1 : index
    %c0_14 = arith.constant 0 : index
    %15 = vector.load %arg11[%c0_12, %c1, %c1_13, %c0_14] : memref<2x10x10x128xbf16, #tpu.memory_space<vmem>>, vector<2x8x8x128xbf16>
    tpu.vector_store %arg11[%c0_12, %c1, %c1_13, %c0_14], %14 {strides = array<i32>} : memref<2x10x10x128xbf16, #tpu.memory_space<vmem>>, vector<2x8x8x128xbf16>,
    %cst_15 = arith.constant 0.000000e+00 : f32
    %16 = vector.broadcast %cst_15 : f32 to vector<128x128xf32>
    %c0_16 = arith.constant 0 : index
    %c0_17 = arith.constant 0 : index
    %c0_18 = arith.constant 0 : index
    %c0_19 = arith.constant 0 : index
    %17 = vector.load %arg11[%c0_16, %c0_17, %c0_18, %c0_19] : memref<2x10x10x128xbf16, #tpu.memory_space<vmem>>, vector<2x8x8x128xbf16>
    %18 = vector.shape_cast %17 : vector<2x8x8x128xbf16> to vector<128x128xbf16>
    %c0_20 = arith.constant 0 : index
    %c0_21 = arith.constant 0 : index
    %c0_22 = arith.constant 0 : index
    %19 = vector.load %arg3[%c0_20, %c0_21, %c0_22] : memref<9x128x128xbf16, #tpu.memory_space<vmem>>, vector<1x128x128xbf16>
    %20 = vector.shape_cast %19 : vector<1x128x128xbf16> to vector<128x128xbf16>
    %cst_23 = arith.constant dense<0.000000e+00> : vector<128x128xf32>
    %21 = tpu.matmul %18, %20, %cst_23 {dimension_numbers = #tpu.dot_dimension_numbers<[1], [0], [0], [1], [0, 0, 1, 1], [], []>} : vector<128x128xbf16>, vector<128x128xbf16>, vector<128x128xf32> -> vector<128x128xf32>
    %22 = arith.addf %16, %21 : vector<128x128xf32>
    %c0_24 = arith.constant 0 : index
    %c0_25 = arith.constant 0 : index
    %c1_26 = arith.constant 1 : index
    %c0_27 = arith.constant 0 : index
    %23 = vector.load %arg11[%c0_24, %c0_25, %c1_26, %c0_27] : memref<2x10x10x128xbf16, #tpu.memory_space<vmem>>, vector<2x8x8x128xbf16>
    %24 = vector.shape_cast %23 : vector<2x8x8x128xbf16> to vector<128x128xbf16>
    %c1_28 = arith.constant 1 : index
    %c0_29 = arith.constant 0 : index
    %c0_30 = arith.constant 0 : index
    %25 = vector.load %arg3[%c1_28, %c0_29, %c0_30] : memref<9x128x128xbf16, #tpu.memory_space<vmem>>, vector<1x128x128xbf16>
    %26 = vector.shape_cast %25 : vector<1x128x128xbf16> to vector<128x128xbf16>
    %cst_31 = arith.constant dense<0.000000e+00> : vector<128x128xf32>
    %27 = tpu.matmul %24, %26, %cst_31 {dimension_numbers = #tpu.dot_dimension_numbers<[1], [0], [0], [1], [0, 0, 1, 1], [], []>} : vector<128x128xbf16>, vector<128x128xbf16>, vector<128x128xf32> -> vector<128x128xf32>
    %28 = arith.addf %22, %27 : vector<128x128xf32>
    %c0_32 = arith.constant 0 : index
    %c0_33 = arith.constant 0 : index
    %c2 = arith.constant 2 : index
    %c0_34 = arith.constant 0 : index
    %29 = vector.load %arg11[%c0_32, %c0_33, %c2, %c0_34] : memref<2x10x10x128xbf16, #tpu.memory_space<vmem>>, vector<2x8x8x128xbf16>
    %30 = vector.shape_cast %29 : vector<2x8x8x128xbf16> to vector<128x128xbf16>
    %c2_35 = arith.constant 2 : index
    %c0_36 = arith.constant 0 : index
    %c0_37 = arith.constant 0 : index
    %31 = vector.load %arg3[%c2_35, %c0_36, %c0_37] : memref<9x128x128xbf16, #tpu.memory_space<vmem>>, vector<1x128x128xbf16>
    %32 = vector.shape_cast %31 : vector<1x128x128xbf16> to vector<128x128xbf16>
    %cst_38 = arith.constant dense<0.000000e+00> : vector<128x128xf32>
    %33 = tpu.matmul %30, %32, %cst_38 {dimension_numbers = #tpu.dot_dimension_numbers<[1], [0], [0], [1], [0, 0, 1, 1], [], []>} : vector<128x128xbf16>, vector<128x128xbf16>, vector<128x128xf32> -> vector<128x128xf32>
    %34 = arith.addf %28, %33 : vector<128x128xf32>
    %c0_39 = arith.constant 0 : index
    %c1_40 = arith.constant 1 : index
    %c0_41 = arith.constant 0 : index
    %c0_42 = arith.constant 0 : index
    %35 = vector.load %arg11[%c0_39, %c1_40, %c0_41, %c0_42] : memref<2x10x10x128xbf16, #tpu.memory_space<vmem>>, vector<2x8x8x128xbf16>
    %36 = vector.shape_cast %35 : vector<2x8x8x128xbf16> to vector<128x128xbf16>
    %c3 = arith.constant 3 : index
    %c0_43 = arith.constant 0 : index
    %c0_44 = arith.constant 0 : index
    %37 = vector.load %arg3[%c3, %c0_43, %c0_44] : memref<9x128x128xbf16, #tpu.memory_space<vmem>>, vector<1x128x128xbf16>
    %38 = vector.shape_cast %37 : vector<1x128x128xbf16> to vector<128x128xbf16>
    %cst_45 = arith.constant dense<0.000000e+00> : vector<128x128xf32>
    %39 = tpu.matmul %36, %38, %cst_45 {dimension_numbers = #tpu.dot_dimension_numbers<[1], [0], [0], [1], [0, 0, 1, 1], [], []>} : vector<128x128xbf16>, vector<128x128xbf16>, vector<128x128xf32> -> vector<128x128xf32>
    %40 = arith.addf %34, %39 : vector<128x128xf32>
    %c0_46 = arith.constant 0 : index
    %c1_47 = arith.constant 1 : index
    %c1_48 = arith.constant 1 : index
    %c0_49 = arith.constant 0 : index
    %41 = vector.load %arg11[%c0_46, %c1_47, %c1_48, %c0_49] : memref<2x10x10x128xbf16, #tpu.memory_space<vmem>>, vector<2x8x8x128xbf16>
    %42 = vector.shape_cast %41 : vector<2x8x8x128xbf16> to vector<128x128xbf16>
    %c4 = arith.constant 4 : index
    %c0_50 = arith.constant 0 : index
    %c0_51 = arith.constant 0 : index
    %43 = vector.load %arg3[%c4, %c0_50, %c0_51] : memref<9x128x128xbf16, #tpu.memory_space<vmem>>, vector<1x128x128xbf16>
    %44 = vector.shape_cast %43 : vector<1x128x128xbf16> to vector<128x128xbf16>
    %cst_52 = arith.constant dense<0.000000e+00> : vector<128x128xf32>
    %45 = tpu.matmul %42, %44, %cst_52 {dimension_numbers = #tpu.dot_dimension_numbers<[1], [0], [0], [1], [0, 0, 1, 1], [], []>} : vector<128x128xbf16>, vector<128x128xbf16>, vector<128x128xf32> -> vector<128x128xf32>
    %46 = arith.addf %40, %45 : vector<128x128xf32>
    %c0_53 = arith.constant 0 : index
    %c1_54 = arith.constant 1 : index
    %c2_55 = arith.constant 2 : index
    %c0_56 = arith.constant 0 : index
    %47 = vector.load %arg11[%c0_53, %c1_54, %c2_55, %c0_56] : memref<2x10x10x128xbf16, #tpu.memory_space<vmem>>, vector<2x8x8x128xbf16>
    %48 = vector.shape_cast %47 : vector<2x8x8x128xbf16> to vector<128x128xbf16>
    %c5 = arith.constant 5 : index
    %c0_57 = arith.constant 0 : index
    %c0_58 = arith.constant 0 : index
    %49 = vector.load %arg3[%c5, %c0_57, %c0_58] : memref<9x128x128xbf16, #tpu.memory_space<vmem>>, vector<1x128x128xbf16>
    %50 = vector.shape_cast %49 : vector<1x128x128xbf16> to vector<128x128xbf16>
    %cst_59 = arith.constant dense<0.000000e+00> : vector<128x128xf32>
    %51 = tpu.matmul %48, %50, %cst_59 {dimension_numbers = #tpu.dot_dimension_numbers<[1], [0], [0], [1], [0, 0, 1, 1], [], []>} : vector<128x128xbf16>, vector<128x128xbf16>, vector<128x128xf32> -> vector<128x128xf32>
    %52 = arith.addf %46, %51 : vector<128x128xf32>
    %c0_60 = arith.constant 0 : index
    %c2_61 = arith.constant 2 : index
    %c0_62 = arith.constant 0 : index
    %c0_63 = arith.constant 0 : index
    %53 = vector.load %arg11[%c0_60, %c2_61, %c0_62, %c0_63] : memref<2x10x10x128xbf16, #tpu.memory_space<vmem>>, vector<2x8x8x128xbf16>
    %54 = vector.shape_cast %53 : vector<2x8x8x128xbf16> to vector<128x128xbf16>
    %c6 = arith.constant 6 : index
    %c0_64 = arith.constant 0 : index
    %c0_65 = arith.constant 0 : index
    %55 = vector.load %arg3[%c6, %c0_64, %c0_65] : memref<9x128x128xbf16, #tpu.memory_space<vmem>>, vector<1x128x128xbf16>
    %56 = vector.shape_cast %55 : vector<1x128x128xbf16> to vector<128x128xbf16>
    %cst_66 = arith.constant dense<0.000000e+00> : vector<128x128xf32>
    %57 = tpu.matmul %54, %56, %cst_66 {dimension_numbers = #tpu.dot_dimension_numbers<[1], [0], [0], [1], [0, 0, 1, 1], [], []>} : vector<128x128xbf16>, vector<128x128xbf16>, vector<128x128xf32> -> vector<128x128xf32>
    %58 = arith.addf %52, %57 : vector<128x128xf32>
    %c0_67 = arith.constant 0 : index
    %c2_68 = arith.constant 2 : index
    %c1_69 = arith.constant 1 : index
    %c0_70 = arith.constant 0 : index
    %59 = vector.load %arg11[%c0_67, %c2_68, %c1_69, %c0_70] : memref<2x10x10x128xbf16, #tpu.memory_space<vmem>>, vector<2x8x8x128xbf16>
    %60 = vector.shape_cast %59 : vector<2x8x8x128xbf16> to vector<128x128xbf16>
    %c7 = arith.constant 7 : index
    %c0_71 = arith.constant 0 : index
    %c0_72 = arith.constant 0 : index
    %61 = vector.load %arg3[%c7, %c0_71, %c0_72] : memref<9x128x128xbf16, #tpu.memory_space<vmem>>, vector<1x128x128xbf16>
    %62 = vector.shape_cast %61 : vector<1x128x128xbf16> to vector<128x128xbf16>
    %cst_73 = arith.constant dense<0.000000e+00> : vector<128x128xf32>
    %63 = tpu.matmul %60, %62, %cst_73 {dimension_numbers = #tpu.dot_dimension_numbers<[1], [0], [0], [1], [0, 0, 1, 1], [], []>} : vector<128x128xbf16>, vector<128x128xbf16>, vector<128x128xf32> -> vector<128x128xf32>
    %64 = arith.addf %58, %63 : vector<128x128xf32>
    %c0_74 = arith.constant 0 : index
    %c2_75 = arith.constant 2 : index
    %c2_76 = arith.constant 2 : index
    %c0_77 = arith.constant 0 : index
    %65 = vector.load %arg11[%c0_74, %c2_75, %c2_76, %c0_77] : memref<2x10x10x128xbf16, #tpu.memory_space<vmem>>, vector<2x8x8x128xbf16>
    %66 = vector.shape_cast %65 : vector<2x8x8x128xbf16> to vector<128x128xbf16>
    %c8 = arith.constant 8 : index
    %c0_78 = arith.constant 0 : index
    %c0_79 = arith.constant 0 : index
    %67 = vector.load %arg3[%c8, %c0_78, %c0_79] : memref<9x128x128xbf16, #tpu.memory_space<vmem>>, vector<1x128x128xbf16>
    %68 = vector.shape_cast %67 : vector<1x128x128xbf16> to vector<128x128xbf16>
    %cst_80 = arith.constant dense<0.000000e+00> : vector<128x128xf32>
    %69 = tpu.matmul %66, %68, %cst_80 {dimension_numbers = #tpu.dot_dimension_numbers<[1], [0], [0], [1], [0, 0, 1, 1], [], []>} : vector<128x128xbf16>, vector<128x128xbf16>, vector<128x128xf32> -> vector<128x128xf32>
    %70 = arith.addf %64, %69 : vector<128x128xf32>
    %cst_81 = arith.constant dense<0.000000e+00> : vector<128xf32>
    %71 = vector.multi_reduction <add>, %70, %cst_81 [0] : vector<128x128xf32> to vector<128xf32>
    %72 = vector.shape_cast %71 : vector<128xf32> to vector<1x128xf32>
    %cst_82 = arith.constant 7.812500e-03 : f32
    %73 = vector.broadcast %cst_82 : f32 to vector<1x128xf32>
    %74 = arith.mulf %72, %73 : vector<1x128xf32>
    %75 = arith.mulf %70, %70 : vector<128x128xf32>
    %cst_83 = arith.constant dense<0.000000e+00> : vector<128xf32>
    %76 = vector.multi_reduction <add>, %75, %cst_83 [0] : vector<128x128xf32> to vector<128xf32>
    %77 = vector.shape_cast %76 : vector<128xf32> to vector<1x128xf32>
    %cst_84 = arith.constant 7.812500e-03 : f32
    %78 = vector.broadcast %cst_84 : f32 to vector<1x128xf32>
    %79 = arith.mulf %77, %78 : vector<1x128xf32>
    %80 = arith.mulf %74, %74 : vector<1x128xf32>
    %81 = arith.subf %79, %80 : vector<1x128xf32>
    %cst_85 = arith.constant 0.000000e+00 : f32
    %82 = vector.broadcast %cst_85 : f32 to vector<1x128xf32>
    %83 = arith.maximumf %81, %82 : vector<1x128xf32>
    %c0_86 = arith.constant 0 : index
    %c0_87 = arith.constant 0 : index
    %84 = vector.load %arg4[%c0_86, %c0_87] : memref<1x128xf32, #tpu.memory_space<vmem>>, vector<1x128xf32>
    %cst_88 = arith.constant 9.99999974E-6 : f32
    %85 = vector.broadcast %cst_88 : f32 to vector<1x128xf32>
    %86 = arith.addf %83, %85 : vector<1x128xf32>
    %87 = math.rsqrt %86 : vector<1x128xf32>
    %88 = arith.mulf %84, %87 : vector<1x128xf32>
    %c0_89 = arith.constant 0 : index
    %c0_90 = arith.constant 0 : index
    %89 = vector.load %arg5[%c0_89, %c0_90] : memref<1x128xf32, #tpu.memory_space<vmem>>, vector<1x128xf32>
    %90 = arith.mulf %74, %88 : vector<1x128xf32>
    %91 = arith.subf %89, %90 : vector<1x128xf32>
    %92 = vector.broadcast %88 : vector<1x128xf32> to vector<128x128xf32>
    %93 = arith.mulf %70, %92 : vector<128x128xf32>
    %94 = vector.broadcast %91 : vector<1x128xf32> to vector<128x128xf32>
    %95 = arith.addf %93, %94 : vector<128x128xf32>
    %cst_91 = arith.constant 0.000000e+00 : f32
    %96 = vector.broadcast %cst_91 : f32 to vector<128x128xf32>
    %97 = arith.maximumf %95, %96 : vector<128x128xf32>
    %98 = arith.truncf %97 : vector<128x128xf32> to vector<128x128xbf16>
    %c0_92 = arith.constant 0 : index
    %c0_93 = arith.constant 0 : index
    %99 = vector.load %arg6[%c0_92, %c0_93] : memref<128x128xbf16, #tpu.memory_space<vmem>>, vector<128x128xbf16>
    %cst_94 = arith.constant dense<0.000000e+00> : vector<128x128xf32>
    %100 = tpu.matmul %98, %99, %cst_94 {dimension_numbers = #tpu.dot_dimension_numbers<[1], [0], [0], [1], [0, 0, 1, 1], [], []>} : vector<128x128xbf16>, vector<128x128xbf16>, vector<128x128xf32> -> vector<128x128xf32>
    %cst_95 = arith.constant dense<0.000000e+00> : vector<128xf32>
    %101 = vector.multi_reduction <add>, %100, %cst_95 [0] : vector<128x128xf32> to vector<128xf32>
    %102 = vector.shape_cast %101 : vector<128xf32> to vector<1x128xf32>
    %cst_96 = arith.constant 7.812500e-03 : f32
    %103 = vector.broadcast %cst_96 : f32 to vector<1x128xf32>
    %104 = arith.mulf %102, %103 : vector<1x128xf32>
    %105 = arith.mulf %100, %100 : vector<128x128xf32>
    %cst_97 = arith.constant dense<0.000000e+00> : vector<128xf32>
    %106 = vector.multi_reduction <add>, %105, %cst_97 [0] : vector<128x128xf32> to vector<128xf32>
    %107 = vector.shape_cast %106 : vector<128xf32> to vector<1x128xf32>
    %cst_98 = arith.constant 7.812500e-03 : f32
    %108 = vector.broadcast %cst_98 : f32 to vector<1x128xf32>
    %109 = arith.mulf %107, %108 : vector<1x128xf32>
    %110 = arith.mulf %104, %104 : vector<1x128xf32>
    %111 = arith.subf %109, %110 : vector<1x128xf32>
    %cst_99 = arith.constant 0.000000e+00 : f32
    %112 = vector.broadcast %cst_99 : f32 to vector<1x128xf32>
    %113 = arith.maximumf %111, %112 : vector<1x128xf32>
    %c0_100 = arith.constant 0 : index
    %c0_101 = arith.constant 0 : index
    %114 = vector.load %arg7[%c0_100, %c0_101] : memref<1x128xf32, #tpu.memory_space<vmem>>, vector<1x128xf32>
    %cst_102 = arith.constant 9.99999974E-6 : f32
    %115 = vector.broadcast %cst_102 : f32 to vector<1x128xf32>
    %116 = arith.addf %113, %115 : vector<1x128xf32>
    %117 = math.rsqrt %116 : vector<1x128xf32>
    %118 = arith.mulf %114, %117 : vector<1x128xf32>
    %c0_103 = arith.constant 0 : index
    %c0_104 = arith.constant 0 : index
    %119 = vector.load %arg8[%c0_103, %c0_104] : memref<1x128xf32, #tpu.memory_space<vmem>>, vector<1x128xf32>
    %120 = arith.mulf %104, %118 : vector<1x128xf32>
    %121 = arith.subf %119, %120 : vector<1x128xf32>
    %122 = vector.broadcast %118 : vector<1x128xf32> to vector<128x128xf32>
    %123 = arith.mulf %100, %122 : vector<128x128xf32>
    %124 = vector.broadcast %121 : vector<1x128xf32> to vector<128x128xf32>
    %125 = arith.addf %123, %124 : vector<128x128xf32>
    %c0_105 = arith.constant 0 : index
    %c0_106 = arith.constant 0 : index
    %126 = vector.load %arg9[%c0_105, %c0_106] : memref<128x128xbf16, #tpu.memory_space<vmem>>, vector<128x128xbf16>
    %127 = arith.extf %126 : vector<128x128xbf16> to vector<128x128xf32>
    %128 = arith.addf %125, %127 : vector<128x128xf32>
    %cst_107 = arith.constant 0.000000e+00 : f32
    %129 = vector.broadcast %cst_107 : f32 to vector<128x128xf32>
    %130 = arith.maximumf %128, %129 : vector<128x128xf32>
    %131 = arith.truncf %130 : vector<128x128xf32> to vector<128x128xbf16>
    %c0_108 = arith.constant 0 : index
    %c0_109 = arith.constant 0 : index
    %132 = vector.load %arg10[%c0_108, %c0_109] : memref<128x128xbf16, #tpu.memory_space<vmem>>, vector<128x128xbf16>
    tpu.vector_store %arg10[%c0_108, %c0_109], %131 {strides = array<i32>} : memref<128x128xbf16, #tpu.memory_space<vmem>>, vector<128x128xbf16>,
    return
  }
}

</mosaic_0001>

<llo_original>
// kernel: bottleneck_forward.2
$region0: #{bottleneck_forward.2}
  #allocation0 [shape = 'u32[]', space=smem, size = 0x4, offset = 0x4, fixed_abs, tag = 'smem constant byte address 0x4 - core index']
  #allocation1 [shape = 'u32[144,128]{1,0:T(1,128)}', space=vmem, size = 0x12000, scoped, tag = 'internal scratch']
  %s0 = inlined_call_operand.vmem [shape: bf16[128,128], index: 0, kind: input, shape index: {}]
  %s1 = inlined_call_operand.vmem [shape: bf16[128,128], index: 1, kind: input, shape index: {}]
  %s2 = inlined_call_operand.vmem [shape: bf16[128,128], index: 2, kind: output, shape index: {0}]
  %s3 = inlined_call_operand.vmem [shape: f32[1,128], index: 3, kind: output, shape index: {1}]
  %s4 = inlined_call_operand.vmem [shape: f32[1,128], index: 4, kind: output, shape index: {2}]
  %5 = xla_tuple %s2, %s3, %s4
  %s6 = sld [smem:[#allocation0]]
  $region38: #{bottleneck_forward.2} parent=0
    _
  %s8 = ssub.s32 1, %s6
  %s9 = scalar_select 0, %s8, %s6
  // Predicated region
  $region2: #{bottleneck_forward.2} parent=0 // pred_check
    _
  $region3: #{bottleneck_forward.2} parent=0 // pred_check_branch
    %11 = sbr.rel (0) target = $region5
  $region4: #{bottleneck_forward.2} parent=0 // pred_region
    _
  $region5: #{bottleneck_forward.2} parent=0 // pred_fallthru
    _
  // Predicated region
  $region6: #{bottleneck_forward.2} parent=0 // pred_check
    _
  $region7: #{bottleneck_forward.2} parent=0 // pred_check_branch
    %13 = sbr.rel (0) target = $region9
  $region8: #{bottleneck_forward.2} parent=0 // pred_region
    _
  $region9: #{bottleneck_forward.2} parent=0 // pred_fallthru
    _
  %v15 = vld [vmem:[%s0] sm:$0xf]
  %v16 = vld [vmem:[%s0 + $0x4] sm:$0xf]
  %v17 = vld [vmem:[%s0 + $0x8] sm:$0xf]
  %v18 = vld [vmem:[%s0 + $0xc] sm:$0xf]
  %v19 = vld [vmem:[%s0 + $0x10] sm:$0xf]
  %v20 = vld [vmem:[%s0 + $0x14] sm:$0xf]
  %v21 = vld [vmem:[%s0 + $0x18] sm:$0xf]
  %v22 = vld [vmem:[%s0 + $0x1c] sm:$0xf]
  %v23 = vld [vmem:[%s0 + $0x20] sm:$0xf]
  %v24 = vld [vmem:[%s0 + $0x24] sm:$0xf]
  %v25 = vld [vmem:[%s0 + $0x28] sm:$0xf]
  %v26 = vld [vmem:[%s0 + $0x2c] sm:$0xf]
  %v27 = vld [vmem:[%s0 + $0x30] sm:$0xf]
  %v28 = vld [vmem:[%s0 + $0x34] sm:$0xf]
  %v29 = vld [vmem:[%s0 + $0x38] sm:$0xf]
  %v30 = vld [vmem:[%s0 + $0x3c] sm:$0xf]
  %v31 = vld [vmem:[%s1] sm:$0xf]
  %v32 = vld [vmem:[%s1 + $0x4] sm:$0xf]
  %v33 = vld [vmem:[%s1 + $0x8] sm:$0xf]
  %v34 = vld [vmem:[%s1 + $0xc] sm:$0xf]
  %v35 = vld [vmem:[%s1 + $0x10] sm:$0xf]
  %v36 = vld [vmem:[%s1 + $0x14] sm:$0xf]
  %v37 = vld [vmem:[%s1 + $0x18] sm:$0xf]
  %v38 = vld [vmem:[%s1 + $0x1c] sm:$0xf]
  %v39 = vld [vmem:[%s1 + $0x20] sm:$0xf]
  %v40 = vld [vmem:[%s1 + $0x24] sm:$0xf]
  %v41 = vld [vmem:[%s1 + $0x28] sm:$0xf]
  %v42 = vld [vmem:[%s1 + $0x2c] sm:$0xf]
  %v43 = vld [vmem:[%s1 + $0x30] sm:$0xf]
  %v44 = vld [vmem:[%s1 + $0x34] sm:$0xf]
  %v45 = vld [vmem:[%s1 + $0x38] sm:$0xf]
  %v46 = vld [vmem:[%s1 + $0x3c] sm:$0xf]
  %v63 = vunpack.c.l.b16 %v15
  %v64 = vunpack.c.l.b16 %v16
  %v65 = vunpack.c.l.b16 %v17
  %v66 = vunpack.c.l.b16 %v18
  %v67 = vunpack.c.l.b16 %v19
  %v68 = vunpack.c.l.b16 %v20
  %v69 = vunpack.c.l.b16 %v21
  %v70 = vunpack.c.l.b16 %v22
  %v71 = vunpack.c.l.b16 %v23
  %v72 = vunpack.c.l.b16 %v24
  %v73 = vunpack.c.l.b16 %v25
  %v74 = vunpack.c.l.b16 %v26
  %v75 = vunpack.c.l.b16 %v27
  %v76 = vunpack.c.l.b16 %v28
  %v77 = vunpack.c.l.b16 %v29
  %v78 = vunpack.c.l.b16 %v30
  %v79 = vpack.c.b16 %v64, %v63
  %v80 = vpack.c.b16 %v66, %v65
  %v81 = vpack.c.b16 %v68, %v67
  %v82 = vpack.c.b16 %v70, %v69
  %v83 = vpack.c.b16 %v72, %v71
  %v84 = vpack.c.b16 %v74, %v73
  %v85 = vpack.c.b16 %v76, %v75
  %v86 = vpack.c.b16 %v78, %v77
  %v111 = vunpack.c.l.b16 %v31
  %v112 = vunpack.c.l.b16 %v32
  %v113 = vunpack.c.l.b16 %v33
  %v114 = vunpack.c.l.b16 %v34
  %v115 = vunpack.c.l.b16 %v35
  %v116 = vunpack.c.l.b16 %v36
  %v117 = vunpack.c.l.b16 %v37
  %v118 = vunpack.c.l.b16 %v38
  %v119 = vunpack.c.l.b16 %v39
  %v120 = vunpack.c.l.b16 %v40
  %v121 = vunpack.c.l.b16 %v41
  %v122 = vunpack.c.l.b16 %v42
  %v123 = vunpack.c.l.b16 %v43
  %v124 = vunpack.c.l.b16 %v44
  %v125 = vunpack.c.l.b16 %v45
  %v126 = vunpack.c.l.b16 %v46
  %v127 = vpack.c.b16 %v112, %v111
  %v128 = vpack.c.b16 %v114, %v113
  %v129 = vpack.c.b16 %v116, %v115
  %v130 = vpack.c.b16 %v118, %v117
  %v131 = vpack.c.b16 %v120, %v119
  %v132 = vpack.c.b16 %v122, %v121
  %v133 = vpack.c.b16 %v124, %v123
  %v134 = vpack.c.b16 %v126, %v125
  %143 = vmatprep.subr.bf16.mxu0 0
  %144 = vmatpush1.bf16.msra.mxu0 %v127
  %145 = vmatprep.subr.bf16.mxu0 0
  %146 = vmatpush1.bf16.msra.mxu0 %v128
  %147 = vmatprep.subr.bf16.mxu0 0
  %148 = vmatpush1.bf16.msra.mxu0 %v129
  %149 = vmatprep.subr.bf16.mxu0 0
  %150 = vmatpush1.bf16.msra.mxu0 %v130
  %151 = vmatprep.subr.bf16.mxu0 0
  %152 = vmatpush1.bf16.msra.mxu0 %v131
  %153 = vmatprep.subr.bf16.mxu0 0
  %154 = vmatpush1.bf16.msra.mxu0 %v132
  %155 = vmatprep.subr.bf16.mxu0 0
  %156 = vmatpush1.bf16.msra.mxu0 %v133
  %157 = vmatprep.subr.bf16.mxu0 0
  %158 = vmatpush1.bf16.msra.mxu0 %v134
  %159 = vmatprep.subr.bf16.mxu0 0
  %160 = vmatpush1.bf16.msra.mxu0 0
  %161 = vmatprep.subr.bf16.mxu0 0
  %162 = vmatpush1.bf16.msra.mxu0 0
  %163 = vmatprep.subr.bf16.mxu0 0
  %164 = vmatpush1.bf16.msra.mxu0 0
  %165 = vmatprep.subr.bf16.mxu0 0
  %166 = vmatpush1.bf16.msra.mxu0 0
  %167 = vmatprep.subr.bf16.mxu0 0
  %168 = vmatpush1.bf16.msra.mxu0 0
  %169 = vmatprep.subr.bf16.mxu0 0
  %170 = vmatpush1.bf16.msra.mxu0 0
  %171 = vmatprep.subr.bf16.mxu0 0
  %172 = vmatpush1.bf16.msra.mxu0 0
  %173 = vmatprep.subr.bf16.mxu0 0
  %174 = vmatpush1.bf16.msra.mxu0 0
  %175 = vmatprep.mubr.bf16.mxu0 0
  %176 = vmatmul.mubr.bf16.gmra.mrb[0].mxu0 %v79
  %v177 = vpop.f32.mrb[0].mxu0
  %v178 = vadd.f32 0.0, %v177
  %v179 = vpop.f32.mrb[0].mxu0
  %v180 = vpop.f32.mrb[0].mxu0
  %v181 = vadd.f32 0.0, %v180
  %v182 = vpop.f32.mrb[0].mxu0
  %183 = vmatprep.mubr.bf16.mxu0 0
  %184 = vmatmul.mubr.bf16.gmra.mrb[0].mxu0 %v80
  %v185 = vpop.f32.mrb[0].mxu0
  %v186 = vadd.f32 0.0, %v185
  %v187 = vpop.f32.mrb[0].mxu0
  %v188 = vpop.f32.mrb[0].mxu0
  %v189 = vadd.f32 0.0, %v188
  %v190 = vpop.f32.mrb[0].mxu0
  %191 = vmatprep.mubr.bf16.mxu0 0
  %192 = vmatmul.mubr.bf16.gmra.mrb[0].mxu0 %v81
  %v193 = vpop.f32.mrb[0].mxu0
  %v194 = vadd.f32 0.0, %v193
  %v195 = vpop.f32.mrb[0].mxu0
  %v196 = vpop.f32.mrb[0].mxu0
  %v197 = vadd.f32 0.0, %v196
  %v198 = vpop.f32.mrb[0].mxu0
  %199 = vmatprep.mubr.bf16.mxu0 0
  %200 = vmatmul.mubr.bf16.gmra.mrb[0].mxu0 %v82
  %v201 = vpop.f32.mrb[0].mxu0
  %v202 = vadd.f32 0.0, %v201
  %v203 = vpop.f32.mrb[0].mxu0
  %v204 = vpop.f32.mrb[0].mxu0
  %v205 = vadd.f32 0.0, %v204
  %v206 = vpop.f32.mrb[0].mxu0
  %207 = vmatprep.mubr.bf16.mxu0 0
  %208 = vmatmul.mubr.bf16.gmra.mrb[0].mxu0 %v83
  %v209 = vpop.f32.mrb[0].mxu0
  %v210 = vadd.f32 0.0, %v209
  %v211 = vpop.f32.mrb[0].mxu0
  %v212 = vpop.f32.mrb[0].mxu0
  %v213 = vadd.f32 0.0, %v212
  %v214 = vpop.f32.mrb[0].mxu0
  %215 = vmatprep.mubr.bf16.mxu0 0
  %216 = vmatmul.mubr.bf16.gmra.mrb[0].mxu0 %v84
  %v217 = vpop.f32.mrb[0].mxu0
  %v218 = vadd.f32 0.0, %v217
  %v219 = vpop.f32.mrb[0].mxu0
  %v220 = vpop.f32.mrb[0].mxu0
  %v221 = vadd.f32 0.0, %v220
  %v222 = vpop.f32.mrb[0].mxu0
  %223 = vmatprep.mubr.bf16.mxu0 0
  %224 = vmatmul.mubr.bf16.gmra.mrb[0].mxu0 %v85
  %v225 = vpop.f32.mrb[0].mxu0
  %v226 = vadd.f32 0.0, %v225
  %v227 = vpop.f32.mrb[0].mxu0
  %v228 = vpop.f32.mrb[0].mxu0
  %v229 = vadd.f32 0.0, %v228
  %v230 = vpop.f32.mrb[0].mxu0
  %231 = vmatprep.mubr.bf16.mxu0 0
  %232 = vmatmul.mubr.bf16.gmra.mrb[0].mxu0 %v86
  %v233 = vpop.f32.mrb[0].mxu0
  %v234 = vadd.f32 0.0, %v233
  %v235 = vpop.f32.mrb[0].mxu0
  %v236 = vpop.f32.mrb[0].mxu0
  %v237 = vadd.f32 0.0, %v236
  %v238 = vpop.f32.mrb[0].mxu0
  %239 = vdwg.mxu0
  %v240 = vpack.c.bf16 %v181, %v178
  %v241 = vpack.c.bf16 %v189, %v186
  %v242 = vpack.c.bf16 %v197, %v194
  %v243 = vpack.c.bf16 %v205, %v202
  %v244 = vpack.c.bf16 %v213, %v210
  %v245 = vpack.c.bf16 %v221, %v218
  %v246 = vpack.c.bf16 %v229, %v226
  %v247 = vpack.c.bf16 %v237, %v234
  %v256 = vunpack.c.l.b16 %v240
  %v257 = vunpack.c.h.b16 %v240
  %v258 = vunpack.c.l.b16 %v241
  %v259 = vunpack.c.h.b16 %v241
  %v260 = vunpack.c.l.b16 %v242
  %v261 = vunpack.c.h.b16 %v242
  %v262 = vunpack.c.l.b16 %v243
  %v263 = vunpack.c.h.b16 %v243
  %v264 = vunpack.c.l.b16 %v244
  %v265 = vunpack.c.h.b16 %v244
  %v266 = vunpack.c.l.b16 %v245
  %v267 = vunpack.c.h.b16 %v245
  %v268 = vunpack.c.l.b16 %v246
  %v269 = vunpack.c.h.b16 %v246
  %v270 = vunpack.c.l.b16 %v247
  %v271 = vunpack.c.h.b16 %v247
  %v272 = vpack.c.b16 %v256, %v256
  %v273 = vpack.c.b16 %v257, %v257
  %v274 = vpack.c.b16 %v258, %v258
  %v275 = vpack.c.b16 %v259, %v259
  %v276 = vpack.c.b16 %v260, %v260
  %v277 = vpack.c.b16 %v261, %v261
  %v278 = vpack.c.b16 %v262, %v262
  %v279 = vpack.c.b16 %v263, %v263
  %v280 = vpack.c.b16 %v264, %v264
  %v281 = vpack.c.b16 %v265, %v265
  %v282 = vpack.c.b16 %v266, %v266
  %v283 = vpack.c.b16 %v267, %v267
  %v284 = vpack.c.b16 %v268, %v268
  %v285 = vpack.c.b16 %v269, %v269
  %v286 = vpack.c.b16 %v270, %v270
  %v287 = vpack.c.b16 %v271, %v271
  %304 = vst [vmem:[%s2] sm:$0xf] %v272
  %305 = vst [vmem:[%s2 + $0x4] sm:$0xf] %v273
  %306 = vst [vmem:[%s2 + $0x8] sm:$0xf] %v274
  %307 = vst [vmem:[%s2 + $0xc] sm:$0xf] %v275
  %308 = vst [vmem:[%s2 + $0x10] sm:$0xf] %v276
  %309 = vst [vmem:[%s2 + $0x14] sm:$0xf] %v277
  %310 = vst [vmem:[%s2 + $0x18] sm:$0xf] %v278
  %311 = vst [vmem:[%s2 + $0x1c] sm:$0xf] %v279
  %312 = vst [vmem:[%s2 + $0x20] sm:$0xf] %v280
  %313 = vst [vmem:[%s2 + $0x24] sm:$0xf] %v281
  %314 = vst [vmem:[%s2 + $0x28] sm:$0xf] %v282
  %315 = vst [vmem:[%s2 + $0x2c] sm:$0xf] %v283
  %316 = vst [vmem:[%s2 + $0x30] sm:$0xf] %v284
  %317 = vst [vmem:[%s2 + $0x34] sm:$0xf] %v285
  %318 = vst [vmem:[%s2 + $0x38] sm:$0xf] %v286
  %319 = vst [vmem:[%s2 + $0x3c] sm:$0xf] %v287
  %p320 = scmp.eq.s32.totalorder 0, 0
  // Predicated region
  $region10: #{bottleneck_forward.2} parent=0 // pred_check
    %p321 = pneg %p320
  $region11: #{bottleneck_forward.2} parent=0 // pred_check_branch
    %323 = sbr.rel (%p321) target = $region13
  $region12: #{bottleneck_forward.2} parent=0 // pred_region
    %324 = vst [vmem:[%s3] sm:$0x1] 0.0
    %325 = vst [vmem:[%s4] sm:$0x1] 0.0
  $region13: #{bottleneck_forward.2} parent=0 // pred_fallthru
    _
  %v326 = vld [vmem:[%s3] sm:$0x1]
  %v327 = vadd.f32 %v178, %v181
  %v328 = vadd.f32 %v327, %v186
  %v329 = vadd.f32 %v328, %v189
  %v330 = vadd.f32 %v329, %v194
  %v331 = vadd.f32 %v330, %v197
  %v332 = vadd.f32 %v331, %v202
  %v333 = vadd.f32 %v332, %v205
  %v334 = vadd.f32 %v333, %v210
  %v335 = vadd.f32 %v334, %v213
  %v336 = vadd.f32 %v335, %v218
  %v337 = vadd.f32 %v336, %v221
  %v338 = vadd.f32 %v337, %v226
  %v339 = vadd.f32 %v338, %v229
  %v340 = vadd.f32 %v339, %v234
  %v341 = vadd.f32 %v340, %v237
  %v342 = vrot.slane %v341, 4
  %v343 = vadd.f32 %v341, %v342
  %v344 = vrot.slane %v343, 2
  %v345 = vadd.f32 %v343, %v344
  %v346 = vrot.slane %v345, 1
  %v347 = vadd.f32 %v345, %v346
  %v348 = vadd.f32 %v326, %v347
  %349 = vst [vmem:[%s3] sm:$0x1] %v348
  %v350 = vld [vmem:[%s4] sm:$0x1]
  %v351 = vmul.f32 %v178, %v178
  %v352 = vmul.f32 %v181, %v181
  %v353 = vmul.f32 %v186, %v186
  %v354 = vmul.f32 %v189, %v189
  %v355 = vmul.f32 %v194, %v194
  %v356 = vmul.f32 %v197, %v197
  %v357 = vmul.f32 %v202, %v202
  %v358 = vmul.f32 %v205, %v205
  %v359 = vmul.f32 %v210, %v210
  %v360 = vmul.f32 %v213, %v213
  %v361 = vmul.f32 %v218, %v218
  %v362 = vmul.f32 %v221, %v221
  %v363 = vmul.f32 %v226, %v226
  %v364 = vmul.f32 %v229, %v229
  %v365 = vmul.f32 %v234, %v234
  %v366 = vmul.f32 %v237, %v237
  %v367 = vadd.f32 %v351, %v352
  %v368 = vadd.f32 %v367, %v353
  %v369 = vadd.f32 %v368, %v354
  %v370 = vadd.f32 %v369, %v355
  %v371 = vadd.f32 %v370, %v356
  %v372 = vadd.f32 %v371, %v357
  %v373 = vadd.f32 %v372, %v358
  %v374 = vadd.f32 %v373, %v359
  %v375 = vadd.f32 %v374, %v360
  %v376 = vadd.f32 %v375, %v361
  %v377 = vadd.f32 %v376, %v362
  %v378 = vadd.f32 %v377, %v363
  %v379 = vadd.f32 %v378, %v364
  %v380 = vadd.f32 %v379, %v365
  %v381 = vadd.f32 %v380, %v366
  %v382 = vrot.slane %v381, 4
  %v383 = vadd.f32 %v381, %v382
  %v384 = vrot.slane %v383, 2
  %v385 = vadd.f32 %v383, %v384
  %v386 = vrot.slane %v385, 1
  %v387 = vadd.f32 %v385, %v386
  %v388 = vadd.f32 %v350, %v387
  %389 = vst [vmem:[%s4] sm:$0x1] %v388
  // Predicated region
  $region14: #{bottleneck_forward.2} parent=0 // pred_check
    _
  $region15: #{bottleneck_forward.2} parent=0 // pred_check_branch
    %391 = sbr.rel (0) target = $region17
  $region16: #{bottleneck_forward.2} parent=0 // pred_region
    _
  $region17: #{bottleneck_forward.2} parent=0 // pred_fallthru
    _
  // Predicated region
  $region18: #{bottleneck_forward.2} parent=0 // pred_check
    _
  $region19: #{bottleneck_forward.2} parent=0 // pred_check_branch
    %393 = sbr.rel (0) target = $region21
  $region20: #{bottleneck_forward.2} parent=0 // pred_region
    _
  $region21: #{bottleneck_forward.2} parent=0 // pred_fallthru
    _
  // Predicated region
  $region22: #{bottleneck_forward.2} parent=0 // pred_check
    _
  $region23: #{bottleneck_forward.2} parent=0 // pred_check_branch
    %395 = sbr.rel (0) target = $region25
  $region24: #{bottleneck_forward.2} parent=0 // pred_region
    _
  $region25: #{bottleneck_forward.2} parent=0 // pred_fallthru
    _
  // Predicated region
  $region26: #{bottleneck_forward.2} parent=0 // pred_check
    _
  $region27: #{bottleneck_forward.2} parent=0 // pred_check_branch
    %397 = sbr.rel (0) target = $region29
  $region28: #{bottleneck_forward.2} parent=0 // pred_region
    _
  $region29: #{bottleneck_forward.2} parent=0 // pred_fallthru
    _
  // Predicated region
  $region30: #{bottleneck_forward.2} parent=0 // pred_check
    _
  $region31: #{bottleneck_forward.2} parent=0 // pred_check_branch
    %399 = sbr.rel (0) target = $region33
  $region32: #{bottleneck_forward.2} parent=0 // pred_region
    _
  $region33: #{bottleneck_forward.2} parent=0 // pred_fallthru
    _
  // Predicated region
  $region34: #{bottleneck_forward.2} parent=0 // pred_check
    _
  $region35: #{bottleneck_forward.2} parent=0 // pred_check_branch
    %401 = sbr.rel (0) target = $region37
  $region36: #{bottleneck_forward.2} parent=0 // pred_region
    _
  $region37: #{bottleneck_forward.2} parent=0 // pred_fallthru
    _

// kernel: bottleneck_forward.3
$region0: #{bottleneck_forward.3}
  #allocation0 [shape = 'u32[]', space=smem, size = 0x4, offset = 0x4, fixed_abs, tag = 'smem constant byte address 0x4 - core index']
  #allocation1 [shape = 'u32[144,128]{1,0:T(1,128)}', space=vmem, size = 0x12000, scoped, tag = 'internal scratch']
  #allocation2 [shape = 'bf16[2,10,10,128]{3,2,1,0:T(8,128)(2,1)}', space=vmem, size = 0x14000, scoped, tag = 'scratch operand']
  %s0 = inlined_call_operand.vmem [shape: bf16[2,8,8,128], index: 0, kind: input, shape index: {}]
  %s1 = inlined_call_operand.vmem [shape: f32[1,128], index: 1, kind: input, shape index: {}]
  %s2 = inlined_call_operand.vmem [shape: f32[1,128], index: 2, kind: input, shape index: {}]
  %s3 = inlined_call_operand.vmem [shape: bf16[9,128,128], index: 3, kind: input, shape index: {}]
  %s4 = inlined_call_operand.vmem [shape: f32[1,128], index: 4, kind: input, shape index: {}]
  %s5 = inlined_call_operand.vmem [shape: f32[1,128], index: 5, kind: input, shape index: {}]
  %s6 = inlined_call_operand.vmem [shape: bf16[128,128], index: 6, kind: input, shape index: {}]
  %s7 = inlined_call_operand.vmem [shape: f32[1,128], index: 7, kind: input, shape index: {}]
  %s8 = inlined_call_operand.vmem [shape: f32[1,128], index: 8, kind: input, shape index: {}]
  %s9 = inlined_call_operand.vmem [shape: bf16[128,128], index: 9, kind: input, shape index: {}]
  %s10 = inlined_call_operand.vmem [shape: bf16[128,128], index: 10, kind: output, shape index: {}]
  %s11 = sld [smem:[#allocation0]]
  $region50: #{bottleneck_forward.3} parent=0
    _
  %s13 = ssub.s32 1, %s11
  %s14 = scalar_select 0, %s13, %s11
  // Predicated region
  $region2: #{bottleneck_forward.3} parent=0 // pred_check
    _
  $region3: #{bottleneck_forward.3} parent=0 // pred_check_branch
    %16 = sbr.rel (0) target = $region5
  $region4: #{bottleneck_forward.3} parent=0 // pred_region
    _
  $region5: #{bottleneck_forward.3} parent=0 // pred_fallthru
    _
  // Predicated region
  $region6: #{bottleneck_forward.3} parent=0 // pred_check
    _
  $region7: #{bottleneck_forward.3} parent=0 // pred_check_branch
    %18 = sbr.rel (0) target = $region9
  $region8: #{bottleneck_forward.3} parent=0 // pred_region
    _
  $region9: #{bottleneck_forward.3} parent=0 // pred_fallthru
    _
  // Predicated region
  $region10: #{bottleneck_forward.3} parent=0 // pred_check
    _
  $region11: #{bottleneck_forward.3} parent=0 // pred_check_branch
    %20 = sbr.rel (0) target = $region13
  $region12: #{bottleneck_forward.3} parent=0 // pred_region
    _
  $region13: #{bottleneck_forward.3} parent=0 // pred_fallthru
    _
  // Predicated region
  $region14: #{bottleneck_forward.3} parent=0 // pred_check
    _
  $region15: #{bottleneck_forward.3} parent=0 // pred_check_branch
    %22 = sbr.rel (0) target = $region17
  $region16: #{bottleneck_forward.3} parent=0 // pred_region
    _
  $region17: #{bottleneck_forward.3} parent=0 // pred_fallthru
    _
  // Predicated region
  $region18: #{bottleneck_forward.3} parent=0 // pred_check
    _
  $region19: #{bottleneck_forward.3} parent=0 // pred_check_branch
    %24 = sbr.rel (0) target = $region21
  $region20: #{bottleneck_forward.3} parent=0 // pred_region
    _
  $region21: #{bottleneck_forward.3} parent=0 // pred_fallthru
    _
  // Predicated region
  $region22: #{bottleneck_forward.3} parent=0 // pred_check
    _
  $region23: #{bottleneck_forward.3} parent=0 // pred_check_branch
    %26 = sbr.rel (0) target = $region25
  $region24: #{bottleneck_forward.3} parent=0 // pred_region
    _
  $region25: #{bottleneck_forward.3} parent=0 // pred_fallthru
    _
  // Predicated region
  $region26: #{bottleneck_forward.3} parent=0 // pred_check
    _
  $region27: #{bottleneck_forward.3} parent=0 // pred_check_branch
    %28 = sbr.rel (0) target = $region29
  $region28: #{bottleneck_forward.3} parent=0 // pred_region
    _
  $region29: #{bottleneck_forward.3} parent=0 // pred_fallthru
    _
  // Predicated region
  $region30: #{bottleneck_forward.3} parent=0 // pred_check
    _
  $region31: #{bottleneck_forward.3} parent=0 // pred_check_branch
    %30 = sbr.rel (0) target = $region33
  $region32: #{bottleneck_forward.3} parent=0 // pred_region
    _
  $region33: #{bottleneck_forward.3} parent=0 // pred_fallthru
    _
  // Predicated region
  $region34: #{bottleneck_forward.3} parent=0 // pred_check
    _
  $region35: #{bottleneck_forward.3} parent=0 // pred_check_branch
    %32 = sbr.rel (0) target = $region37
  $region36: #{bottleneck_forward.3} parent=0 // pred_region
    _
  $region37: #{bottleneck_forward.3} parent=0 // pred_fallthru
    _
  // Predicated region
  $region38: #{bottleneck_forward.3} parent=0 // pred_check
    _
  $region39: #{bottleneck_forward.3} parent=0 // pred_check_branch
    %34 = sbr.rel (0) target = $region41
  $region40: #{bottleneck_forward.3} parent=0 // pred_region
    _
  $region41: #{bottleneck_forward.3} parent=0 // pred_fallthru
    _
  %36 = vst [vmem:[#allocation2] sm:$0xf] 0
  %37 = vst [vmem:[#allocation2 + $0x4] sm:$0x1] 0
  %38 = vst [vmem:[#allocation2 + $0x8] sm:$0xf] 0
  %39 = vst [vmem:[#allocation2 + $0xc] sm:$0x1] 0
  %40 = vst [vmem:[#allocation2 + $0x10] sm:$0xf] 0
  %41 = vst [vmem:[#allocation2 + $0x14] sm:$0x1] 0
  %42 = vst [vmem:[#allocation2 + $0x18] sm:$0xf] 0
  %43 = vst [vmem:[#allocation2 + $0x1c] sm:$0x1] 0
  %44 = vst [vmem:[#allocation2 + $0x20] sm:$0xf] 0
  %45 = vst [vmem:[#allocation2 + $0x24] sm:$0x1] 0
  %46 = vst [vmem:[#allocation2 + $0x28] sm:$0xf] 0
  %47 = vst [vmem:[#allocation2 + $0x2c] sm:$0x1] 0
  %48 = vst [vmem:[#allocation2 + $0x30] sm:$0xf] 0
  %49 = vst [vmem:[#allocation2 + $0x34] sm:$0x1] 0
  %50 = vst [vmem:[#allocation2 + $0x38] sm:$0xf] 0
  %51 = vst [vmem:[#allocation2 + $0x3c] sm:$0x1] 0
  %52 = vst [vmem:[#allocation2 + $0x40] sm:$0xf] 0
  %53 = vst [vmem:[#allocation2 + $0x44] sm:$0x1] 0
  %54 = vst [vmem:[#allocation2 + $0x48] sm:$0xf] 0
  %55 = vst [vmem:[#allocation2 + $0x4c] sm:$0x1] 0
  %56 = vst [vmem:[#allocation2 + $0x50] sm:$0xf] 0
  %57 = vst [vmem:[#allocation2 + $0x54] sm:$0x1] 0
  %58 = vst [vmem:[#allocation2 + $0x58] sm:$0xf] 0
  %59 = vst [vmem:[#allocation2 + $0x5c] sm:$0x1] 0
  %60 = vst [vmem:[#allocation2 + $0x60] sm:$0xf] 0
  %61 = vst [vmem:[#allocation2 + $0x64] sm:$0x1] 0
  %62 = vst [vmem:[#allocation2 + $0x68] sm:$0xf] 0
  %63 = vst [vmem:[#allocation2 + $0x6c] sm:$0x1] 0
  %64 = vst [vmem:[#allocation2 + $0x70] sm:$0xf] 0
  %65 = vst [vmem:[#allocation2 + $0x74] sm:$0x1] 0
  %66 = vst [vmem:[#allocation2 + $0x78] sm:$0xf] 0
  %67 = vst [vmem:[#allocation2 + $0x7c] sm:$0x1] 0
  %68 = vst [vmem:[#allocation2 + $0x80] sm:$0xf] 0
  %69 = vst [vmem:[#allocation2 + $0x84] sm:$0x1] 0
  %70 = vst [vmem:[#allocation2 + $0x88] sm:$0xf] 0
  %71 = vst [vmem:[#allocation2 + $0x8c] sm:$0x1] 0
  %72 = vst [vmem:[#allocation2 + $0x90] sm:$0xf] 0
  %73 = vst [vmem:[#allocation2 + $0x94] sm:$0x1] 0
  %74 = vst [vmem:[#allocation2 + $0x98] sm:$0xf] 0
  %75 = vst [vmem:[#allocation2 + $0x9c] sm:$0x1] 0
  %v76 = vld [vmem:[%s1] sm:$0x1]
  %v77 = vld [vmem:[%s2] sm:$0x1]
  %v78 = vld [vmem:[%s0] sm:$0xf]
  %v79 = vld [vmem:[%s0 + $0x4] sm:$0xf]
  %v80 = vld [vmem:[%s0 + $0x8] sm:$0xf]
  %v81 = vld [vmem:[%s0 + $0xc] sm:$0xf]
  %v82 = vld [vmem:[%s0 + $0x10] sm:$0xf]
  %v83 = vld [vmem:[%s0 + $0x14] sm:$0xf]
  %v84 = vld [vmem:[%s0 + $0x18] sm:$0xf]
  %v85 = vld [vmem:[%s0 + $0x1c] sm:$0xf]
  %v86 = vld [vmem:[%s0 + $0x20] sm:$0xf]
  %v87 = vld [vmem:[%s0 + $0x24] sm:$0xf]
  %v88 = vld [vmem:[%s0 + $0x28] sm:$0xf]
  %v89 = vld [vmem:[%s0 + $0x2c] sm:$0xf]
  %v90 = vld [vmem:[%s0 + $0x30] sm:$0xf]
  %v91 = vld [vmem:[%s0 + $0x34] sm:$0xf]
  %v92 = vld [vmem:[%s0 + $0x38] sm:$0xf]
  %v93 = vld [vmem:[%s0 + $0x3c] sm:$0xf]
  %v94 = vunpack.c.l.bf16 %v78
  %v95 = vunpack.c.l.bf16 %v79
  %v96 = vunpack.c.l.bf16 %v80
  %v97 = vunpack.c.l.bf16 %v81
  %v98 = vunpack.c.l.bf16 %v82
  %v99 = vunpack.c.l.bf16 %v83
  %v100 = vunpack.c.l.bf16 %v84
  %v101 = vunpack.c.l.bf16 %v85
  %v102 = vunpack.c.l.bf16 %v86
  %v103 = vunpack.c.l.bf16 %v87
  %v104 = vunpack.c.l.bf16 %v88
  %v105 = vunpack.c.l.bf16 %v89
  %v106 = vunpack.c.l.bf16 %v90
  %v107 = vunpack.c.l.bf16 %v91
  %v108 = vunpack.c.l.bf16 %v92
  %v109 = vunpack.c.l.bf16 %v93
  %v111 = vlaneseq
  %v112 = vshrl.u32 %v111, 7
  %v113 = vsub.s32 0, %v112
  %v114 = vrot.slane %v76, %v113
  %v116 = vmul.f32 %v94, %v114
  %v117 = vmul.f32 %v95, %v114
  %v118 = vmul.f32 %v96, %v114
  %v119 = vmul.f32 %v97, %v114
  %v120 = vmul.f32 %v98, %v114
  %v121 = vmul.f32 %v99, %v114
  %v122 = vmul.f32 %v100, %v114
  %v123 = vmul.f32 %v101, %v114
  %v124 = vmul.f32 %v102, %v114
  %v125 = vmul.f32 %v103, %v114
  %v126 = vmul.f32 %v104, %v114
  %v127 = vmul.f32 %v105, %v114
  %v128 = vmul.f32 %v106, %v114
  %v129 = vmul.f32 %v107, %v114
  %v130 = vmul.f32 %v108, %v114
  %v131 = vmul.f32 %v109, %v114
  %v133 = vlaneseq
  %v134 = vshrl.u32 %v133, 7
  %v135 = vsub.s32 0, %v134
  %v136 = vrot.slane %v77, %v135
  %v138 = vadd.f32 %v116, %v136
  %v139 = vadd.f32 %v117, %v136
  %v140 = vadd.f32 %v118, %v136
  %v141 = vadd.f32 %v119, %v136
  %v142 = vadd.f32 %v120, %v136
  %v143 = vadd.f32 %v121, %v136
  %v144 = vadd.f32 %v122, %v136
  %v145 = vadd.f32 %v123, %v136
  %v146 = vadd.f32 %v124, %v136
  %v147 = vadd.f32 %v125, %v136
  %v148 = vadd.f32 %v126, %v136
  %v149 = vadd.f32 %v127, %v136
  %v150 = vadd.f32 %v128, %v136
  %v151 = vadd.f32 %v129, %v136
  %v152 = vadd.f32 %v130, %v136
  %v153 = vadd.f32 %v131, %v136
  %v154 = vmax.f32 %v138, 0.0
  %v155 = vmax.f32 %v139, 0.0
  %v156 = vmax.f32 %v140, 0.0
  %v157 = vmax.f32 %v141, 0.0
  %v158 = vmax.f32 %v142, 0.0
  %v159 = vmax.f32 %v143, 0.0
  %v160 = vmax.f32 %v144, 0.0
  %v161 = vmax.f32 %v145, 0.0
  %v162 = vmax.f32 %v146, 0.0
  %v163 = vmax.f32 %v147, 0.0
  %v164 = vmax.f32 %v148, 0.0
  %v165 = vmax.f32 %v149, 0.0
  %v166 = vmax.f32 %v150, 0.0
  %v167 = vmax.f32 %v151, 0.0
  %v168 = vmax.f32 %v152, 0.0
  %v169 = vmax.f32 %v153, 0.0
  %v170 = vpack.c.bf16 %v154, %v154
  %v171 = vpack.c.bf16 %v155, %v155
  %v172 = vpack.c.bf16 %v156, %v156
  %v173 = vpack.c.bf16 %v157, %v157
  %v174 = vpack.c.bf16 %v158, %v158
  %v175 = vpack.c.bf16 %v159, %v159
  %v176 = vpack.c.bf16 %v160, %v160
  %v177 = vpack.c.bf16 %v161, %v161
  %v178 = vpack.c.bf16 %v162, %v162
  %v179 = vpack.c.bf16 %v163, %v163
  %v180 = vpack.c.bf16 %v164, %v164
  %v181 = vpack.c.bf16 %v165, %v165
  %v182 = vpack.c.bf16 %v166, %v166
  %v183 = vpack.c.bf16 %v167, %v167
  %v184 = vpack.c.bf16 %v168, %v168
  %v185 = vpack.c.bf16 %v169, %v169
  %v202 = vunpack.c.l.b16 %v170
  %v203 = vunpack.c.l.b16 %v171
  %v204 = vunpack.c.l.b16 %v172
  %v205 = vunpack.c.l.b16 %v173
  %v206 = vunpack.c.l.b16 %v174
  %v207 = vunpack.c.l.b16 %v175
  %v208 = vunpack.c.l.b16 %v176
  %v209 = vunpack.c.l.b16 %v177
  %v210 = vunpack.c.l.b16 %v178
  %v211 = vunpack.c.l.b16 %v179
  %v212 = vunpack.c.l.b16 %v180
  %v213 = vunpack.c.l.b16 %v181
  %v214 = vunpack.c.l.b16 %v182
  %v215 = vunpack.c.l.b16 %v183
  %v216 = vunpack.c.l.b16 %v184
  %v217 = vunpack.c.l.b16 %v185
  %v218 = vpack.c.b16 %v202, %v202
  %v219 = vpack.c.b16 %v203, %v203
  %v220 = vpack.c.b16 %v204, %v204
  %v221 = vpack.c.b16 %v205, %v205
  %v222 = vpack.c.b16 %v206, %v206
  %v223 = vpack.c.b16 %v207, %v207
  %v224 = vpack.c.b16 %v208, %v208
  %v225 = vpack.c.b16 %v209, %v209
  %v226 = vpack.c.b16 %v210, %v210
  %v227 = vpack.c.b16 %v211, %v211
  %v228 = vpack.c.b16 %v212, %v212
  %v229 = vpack.c.b16 %v213, %v213
  %v230 = vpack.c.b16 %v214, %v214
  %v231 = vpack.c.b16 %v215, %v215
  %v232 = vpack.c.b16 %v216, %v216
  %v233 = vpack.c.b16 %v217, %v217
  %v235 = vshrl.u32 %v218, 16
  %v237 = vrot.slane %v235, 7
  %v238 = vshll.u32 %v218, 16
  %v240 = vor.u32 %v237, %v238
  %v241 = vrot.slane %v237, 4
  %v243 = vshrl.u32 %v219, 16
  %v245 = vrot.slane %v243, 7
  %v246 = vshll.u32 %v219, 16
  %v248 = vor.u32 %v245, %v246
  %v249 = vrot.slane %v245, 4
  %v251 = vshrl.u32 %v220, 16
  %v253 = vrot.slane %v251, 7
  %v254 = vshll.u32 %v220, 16
  %v256 = vor.u32 %v253, %v254
  %v257 = vrot.slane %v253, 4
  %v259 = vshrl.u32 %v221, 16
  %v261 = vrot.slane %v259, 7
  %v262 = vshll.u32 %v221, 16
  %v264 = vor.u32 %v261, %v262
  %v265 = vrot.slane %v261, 4
  %v267 = vshrl.u32 %v222, 16
  %v269 = vrot.slane %v267, 7
  %v270 = vshll.u32 %v222, 16
  %v272 = vor.u32 %v269, %v270
  %v273 = vrot.slane %v269, 4
  %v275 = vshrl.u32 %v223, 16
  %v277 = vrot.slane %v275, 7
  %v278 = vshll.u32 %v223, 16
  %v280 = vor.u32 %v277, %v278
  %v281 = vrot.slane %v277, 4
  %v283 = vshrl.u32 %v224, 16
  %v285 = vrot.slane %v283, 7
  %v286 = vshll.u32 %v224, 16
  %v288 = vor.u32 %v285, %v286
  %v289 = vrot.slane %v285, 4
  %v291 = vshrl.u32 %v225, 16
  %v293 = vrot.slane %v291, 7
  %v294 = vshll.u32 %v225, 16
  %v296 = vor.u32 %v293, %v294
  %v297 = vrot.slane %v293, 4
  %v299 = vshrl.u32 %v226, 16
  %v301 = vrot.slane %v299, 7
  %v302 = vshll.u32 %v226, 16
  %v304 = vor.u32 %v301, %v302
  %v305 = vrot.slane %v301, 4
  %v307 = vshrl.u32 %v227, 16
  %v309 = vrot.slane %v307, 7
  %v310 = vshll.u32 %v227, 16
  %v312 = vor.u32 %v309, %v310
  %v313 = vrot.slane %v309, 4
  %v315 = vshrl.u32 %v228, 16
  %v317 = vrot.slane %v315, 7
  %v318 = vshll.u32 %v228, 16
  %v320 = vor.u32 %v317, %v318
  %v321 = vrot.slane %v317, 4
  %v323 = vshrl.u32 %v229, 16
  %v325 = vrot.slane %v323, 7
  %v326 = vshll.u32 %v229, 16
  %v328 = vor.u32 %v325, %v326
  %v329 = vrot.slane %v325, 4
  %v331 = vshrl.u32 %v230, 16
  %v333 = vrot.slane %v331, 7
  %v334 = vshll.u32 %v230, 16
  %v336 = vor.u32 %v333, %v334
  %v337 = vrot.slane %v333, 4
  %v339 = vshrl.u32 %v231, 16
  %v341 = vrot.slane %v339, 7
  %v342 = vshll.u32 %v231, 16
  %v344 = vor.u32 %v341, %v342
  %v345 = vrot.slane %v341, 4
  %v347 = vshrl.u32 %v232, 16
  %v349 = vrot.slane %v347, 7
  %v350 = vshll.u32 %v232, 16
  %v352 = vor.u32 %v349, %v350
  %v353 = vrot.slane %v349, 4
  %v355 = vshrl.u32 %v233, 16
  %v357 = vrot.slane %v355, 7
  %v358 = vshll.u32 %v233, 16
  %v360 = vor.u32 %v357, %v358
  %v361 = vrot.slane %v357, 4
  %s394 = scalar_lea.vmem [#allocation2], 8
  %vm395 = vcmask 1043456
  %vm396 = vsmask.f32 7938
  %vm397 = vmand %vm395, %vm396
  %v398 = vld [vmem:[%s394] sm:$0xf]
  %v399 = vsel %vm397, %v240, %v398
  %400 = vst [vmem:[%s394] sm:$0xf] %v399
  %vm401 = vcmask 1040384
  %vm402 = vsmask.f32 256
  %vm403 = vmand %vm401, %vm402
  %v404 = vld [vmem:[%s394 + $0x4] sm:$0x1]
  %v405 = vsel %vm403, %v241, %v404
  %406 = vst [vmem:[%s394 + $0x4] sm:$0x1] %v405
  %v407 = vld [vmem:[%s394 + $0x8] sm:$0xf]
  %v408 = vsel %vm397, %v248, %v407
  %409 = vst [vmem:[%s394 + $0x8] sm:$0xf] %v408
  %v410 = vld [vmem:[%s394 + $0xc] sm:$0x1]
  %v411 = vsel %vm403, %v249, %v410
  %412 = vst [vmem:[%s394 + $0xc] sm:$0x1] %v411
  %v413 = vld [vmem:[%s394 + $0x10] sm:$0xf]
  %v414 = vsel %vm397, %v256, %v413
  %415 = vst [vmem:[%s394 + $0x10] sm:$0xf] %v414
  %v416 = vld [vmem:[%s394 + $0x14] sm:$0x1]
  %v417 = vsel %vm403, %v257, %v416
  %418 = vst [vmem:[%s394 + $0x14] sm:$0x1] %v417
  %v419 = vld [vmem:[%s394 + $0x18] sm:$0xf]
  %v420 = vsel %vm397, %v264, %v419
  %421 = vst [vmem:[%s394 + $0x18] sm:$0xf] %v420
  %v422 = vld [vmem:[%s394 + $0x1c] sm:$0x1]
  %v423 = vsel %vm403, %v265, %v422
  %424 = vst [vmem:[%s394 + $0x1c] sm:$0x1] %v423
  %v425 = vld [vmem:[%s394 + $0x20] sm:$0xf]
  %v426 = vsel %vm397, %v272, %v425
  %427 = vst [vmem:[%s394 + $0x20] sm:$0xf] %v426
  %v428 = vld [vmem:[%s394 + $0x24] sm:$0x1]
  %v429 = vsel %vm403, %v273, %v428
  %430 = vst [vmem:[%s394 + $0x24] sm:$0x1] %v429
  %v431 = vld [vmem:[%s394 + $0x28] sm:$0xf]
  %v432 = vsel %vm397, %v280, %v431
  %433 = vst [vmem:[%s394 + $0x28] sm:$0xf] %v432
  %v434 = vld [vmem:[%s394 + $0x2c] sm:$0x1]
  %v435 = vsel %vm403, %v281, %v434
  %436 = vst [vmem:[%s394 + $0x2c] sm:$0x1] %v435
  %v437 = vld [vmem:[%s394 + $0x30] sm:$0xf]
  %v438 = vsel %vm397, %v288, %v437
  %439 = vst [vmem:[%s394 + $0x30] sm:$0xf] %v438
  %v440 = vld [vmem:[%s394 + $0x34] sm:$0x1]
  %v441 = vsel %vm403, %v289, %v440
  %442 = vst [vmem:[%s394 + $0x34] sm:$0x1] %v441
  %v443 = vld [vmem:[%s394 + $0x38] sm:$0xf]
  %v444 = vsel %vm397, %v296, %v443
  %445 = vst [vmem:[%s394 + $0x38] sm:$0xf] %v444
  %v446 = vld [vmem:[%s394 + $0x3c] sm:$0x1]
  %v447 = vsel %vm403, %v297, %v446
  %448 = vst [vmem:[%s394 + $0x3c] sm:$0x1] %v447
  %v449 = vld [vmem:[%s394 + $0x50] sm:$0xf]
  %v450 = vsel %vm397, %v304, %v449
  %451 = vst [vmem:[%s394 + $0x50] sm:$0xf] %v450
  %v452 = vld [vmem:[%s394 + $0x54] sm:$0x1]
  %v453 = vsel %vm403, %v305, %v452
  %454 = vst [vmem:[%s394 + $0x54] sm:$0x1] %v453
  %v455 = vld [vmem:[%s394 + $0x58] sm:$0xf]
  %v456 = vsel %vm397, %v312, %v455
  %457 = vst [vmem:[%s394 + $0x58] sm:$0xf] %v456
  %v458 = vld [vmem:[%s394 + $0x5c] sm:$0x1]
  %v459 = vsel %vm403, %v313, %v458
  %460 = vst [vmem:[%s394 + $0x5c] sm:$0x1] %v459
  %v461 = vld [vmem:[%s394 + $0x60] sm:$0xf]
  %v462 = vsel %vm397, %v320, %v461
  %463 = vst [vmem:[%s394 + $0x60] sm:$0xf] %v462
  %v464 = vld [vmem:[%s394 + $0x64] sm:$0x1]
  %v465 = vsel %vm403, %v321, %v464
  %466 = vst [vmem:[%s394 + $0x64] sm:$0x1] %v465
  %v467 = vld [vmem:[%s394 + $0x68] sm:$0xf]
  %v468 = vsel %vm397, %v328, %v467
  %469 = vst [vmem:[%s394 + $0x68] sm:$0xf] %v468
  %v470 = vld [vmem:[%s394 + $0x6c] sm:$0x1]
  %v471 = vsel %vm403, %v329, %v470
  %472 = vst [vmem:[%s394 + $0x6c] sm:$0x1] %v471
  %v473 = vld [vmem:[%s394 + $0x70] sm:$0xf]
  %v474 = vsel %vm397, %v336, %v473
  %475 = vst [vmem:[%s394 + $0x70] sm:$0xf] %v474
  %v476 = vld [vmem:[%s394 + $0x74] sm:$0x1]
  %v477 = vsel %vm403, %v337, %v476
  %478 = vst [vmem:[%s394 + $0x74] sm:$0x1] %v477
  %v479 = vld [vmem:[%s394 + $0x78] sm:$0xf]
  %v480 = vsel %vm397, %v344, %v479
  %481 = vst [vmem:[%s394 + $0x78] sm:$0xf] %v480
  %v482 = vld [vmem:[%s394 + $0x7c] sm:$0x1]
  %v483 = vsel %vm403, %v345, %v482
  %484 = vst [vmem:[%s394 + $0x7c] sm:$0x1] %v483
  %v485 = vld [vmem:[%s394 + $0x80] sm:$0xf]
  %v486 = vsel %vm397, %v352, %v485
  %487 = vst [vmem:[%s394 + $0x80] sm:$0xf] %v486
  %v488 = vld [vmem:[%s394 + $0x84] sm:$0x1]
  %v489 = vsel %vm403, %v353, %v488
  %490 = vst [vmem:[%s394 + $0x84] sm:$0x1] %v489
  %v491 = vld [vmem:[%s394 + $0x88] sm:$0xf]
  %v492 = vsel %vm397, %v360, %v491
  %493 = vst [vmem:[%s394 + $0x88] sm:$0xf] %v492
  %v494 = vld [vmem:[%s394 + $0x8c] sm:$0x1]
  %v495 = vsel %vm403, %v361, %v494
  %496 = vst [vmem:[%s394 + $0x8c] sm:$0x1] %v495
  %v497 = vld [vmem:[#allocation2] sm:$0xf]
  %v498 = vld [vmem:[#allocation2 + $0x8] sm:$0xf]
  %v499 = vld [vmem:[#allocation2 + $0x10] sm:$0xf]
  %v500 = vld [vmem:[#allocation2 + $0x18] sm:$0xf]
  %v501 = vld [vmem:[#allocation2 + $0x20] sm:$0xf]
  %v502 = vld [vmem:[#allocation2 + $0x28] sm:$0xf]
  %v503 = vld [vmem:[#allocation2 + $0x30] sm:$0xf]
  %v504 = vld [vmem:[#allocation2 + $0x38] sm:$0xf]
  %v505 = vld [vmem:[#allocation2 + $0x50] sm:$0xf]
  %v506 = vld [vmem:[#allocation2 + $0x58] sm:$0xf]
  %v507 = vld [vmem:[#allocation2 + $0x60] sm:$0xf]
  %v508 = vld [vmem:[#allocation2 + $0x68] sm:$0xf]
  %v509 = vld [vmem:[#allocation2 + $0x70] sm:$0xf]
  %v510 = vld [vmem:[#allocation2 + $0x78] sm:$0xf]
  %v511 = vld [vmem:[#allocation2 + $0x80] sm:$0xf]
  %v512 = vld [vmem:[#allocation2 + $0x88] sm:$0xf]
  %v513 = vld [vmem:[%s3] sm:$0xf]
  %v514 = vld [vmem:[%s3 + $0x4] sm:$0xf]
  %v515 = vld [vmem:[%s3 + $0x8] sm:$0xf]
  %v516 = vld [vmem:[%s3 + $0xc] sm:$0xf]
  %v517 = vld [vmem:[%s3 + $0x10] sm:$0xf]
  %v518 = vld [vmem:[%s3 + $0x14] sm:$0xf]
  %v519 = vld [vmem:[%s3 + $0x18] sm:$0xf]
  %v520 = vld [vmem:[%s3 + $0x1c] sm:$0xf]
  %v521 = vld [vmem:[%s3 + $0x20] sm:$0xf]
  %v522 = vld [vmem:[%s3 + $0x24] sm:$0xf]
  %v523 = vld [vmem:[%s3 + $0x28] sm:$0xf]
  %v524 = vld [vmem:[%s3 + $0x2c] sm:$0xf]
  %v525 = vld [vmem:[%s3 + $0x30] sm:$0xf]
  %v526 = vld [vmem:[%s3 + $0x34] sm:$0xf]
  %v527 = vld [vmem:[%s3 + $0x38] sm:$0xf]
  %v528 = vld [vmem:[%s3 + $0x3c] sm:$0xf]
  %v529 = vld [vmem:[#allocation2 + $0x4] sm:$0x1]
  %v530 = vld [vmem:[#allocation2 + $0xc] sm:$0x1]
  %v531 = vld [vmem:[#allocation2 + $0x14] sm:$0x1]
  %v532 = vld [vmem:[#allocation2 + $0x1c] sm:$0x1]
  %v533 = vld [vmem:[#allocation2 + $0x24] sm:$0x1]
  %v534 = vld [vmem:[#allocation2 + $0x2c] sm:$0x1]
  %v535 = vld [vmem:[#allocation2 + $0x34] sm:$0x1]
  %v536 = vld [vmem:[#allocation2 + $0x3c] sm:$0x1]
  %v537 = vld [vmem:[#allocation2 + $0x54] sm:$0x1]
  %v538 = vld [vmem:[#allocation2 + $0x5c] sm:$0x1]
  %v539 = vld [vmem:[#allocation2 + $0x64] sm:$0x1]
  %v540 = vld [vmem:[#allocation2 + $0x6c] sm:$0x1]
  %v541 = vld [vmem:[#allocation2 + $0x74] sm:$0x1]
  %v542 = vld [vmem:[#allocation2 + $0x7c] sm:$0x1]
  %v543 = vld [vmem:[#allocation2 + $0x84] sm:$0x1]
  %v544 = vld [vmem:[#allocation2 + $0x8c] sm:$0x1]
  %vm545 = vsmask.f32 3328
  %vm546 = vsmask.f32 7440
  %vm547 = vmor %vm545, %vm546
  %v549 = vshrl.u32 %v497, 16
  %v551 = vrot.slane %v549, 4
  %v552 = vshll.u32 %v497, 16
  %v554 = vrot.slane %v552, 5
  %v555 = vor.u32 %v551, %v554
  %v556 = vrot.slane %v555, 4
  %v558 = vshll.u32 %v529, 16
  %v560 = vrot.slane %v558, 5
  %v561 = vsel %vm547, %v556, %v560
  %v563 = vshrl.u32 %v498, 16
  %v565 = vrot.slane %v563, 4
  %v566 = vshll.u32 %v498, 16
  %v568 = vrot.slane %v566, 5
  %v569 = vor.u32 %v565, %v568
  %v570 = vrot.slane %v569, 4
  %v572 = vshll.u32 %v530, 16
  %v574 = vrot.slane %v572, 5
  %v575 = vsel %vm547, %v570, %v574
  %v577 = vshrl.u32 %v499, 16
  %v579 = vrot.slane %v577, 4
  %v580 = vshll.u32 %v499, 16
  %v582 = vrot.slane %v580, 5
  %v583 = vor.u32 %v579, %v582
  %v584 = vrot.slane %v583, 4
  %v586 = vshll.u32 %v531, 16
  %v588 = vrot.slane %v586, 5
  %v589 = vsel %vm547, %v584, %v588
  %v591 = vshrl.u32 %v500, 16
  %v593 = vrot.slane %v591, 4
  %v594 = vshll.u32 %v500, 16
  %v596 = vrot.slane %v594, 5
  %v597 = vor.u32 %v593, %v596
  %v598 = vrot.slane %v597, 4
  %v600 = vshll.u32 %v532, 16
  %v602 = vrot.slane %v600, 5
  %v603 = vsel %vm547, %v598, %v602
  %v605 = vshrl.u32 %v501, 16
  %v607 = vrot.slane %v605, 4
  %v608 = vshll.u32 %v501, 16
  %v610 = vrot.slane %v608, 5
  %v611 = vor.u32 %v607, %v610
  %v612 = vrot.slane %v611, 4
  %v614 = vshll.u32 %v533, 16
  %v616 = vrot.slane %v614, 5
  %v617 = vsel %vm547, %v612, %v616
  %v619 = vshrl.u32 %v502, 16
  %v621 = vrot.slane %v619, 4
  %v622 = vshll.u32 %v502, 16
  %v624 = vrot.slane %v622, 5
  %v625 = vor.u32 %v621, %v624
  %v626 = vrot.slane %v625, 4
  %v628 = vshll.u32 %v534, 16
  %v630 = vrot.slane %v628, 5
  %v631 = vsel %vm547, %v626, %v630
  %v633 = vshrl.u32 %v503, 16
  %v635 = vrot.slane %v633, 4
  %v636 = vshll.u32 %v503, 16
  %v638 = vrot.slane %v636, 5
  %v639 = vor.u32 %v635, %v638
  %v640 = vrot.slane %v639, 4
  %v642 = vshll.u32 %v535, 16
  %v644 = vrot.slane %v642, 5
  %v645 = vsel %vm547, %v640, %v644
  %v647 = vshrl.u32 %v504, 16
  %v649 = vrot.slane %v647, 4
  %v650 = vshll.u32 %v504, 16
  %v652 = vrot.slane %v650, 5
  %v653 = vor.u32 %v649, %v652
  %v654 = vrot.slane %v653, 4
  %v656 = vshll.u32 %v536, 16
  %v658 = vrot.slane %v656, 5
  %v659 = vsel %vm547, %v654, %v658
  %v661 = vshrl.u32 %v505, 16
  %v663 = vrot.slane %v661, 4
  %v664 = vshll.u32 %v505, 16
  %v666 = vrot.slane %v664, 5
  %v667 = vor.u32 %v663, %v666
  %v668 = vrot.slane %v667, 4
  %v670 = vshll.u32 %v537, 16
  %v672 = vrot.slane %v670, 5
  %v673 = vsel %vm547, %v668, %v672
  %v675 = vshrl.u32 %v506, 16
  %v677 = vrot.slane %v675, 4
  %v678 = vshll.u32 %v506, 16
  %v680 = vrot.slane %v678, 5
  %v681 = vor.u32 %v677, %v680
  %v682 = vrot.slane %v681, 4
  %v684 = vshll.u32 %v538, 16
  %v686 = vrot.slane %v684, 5
  %v687 = vsel %vm547, %v682, %v686
  %v689 = vshrl.u32 %v507, 16
  %v691 = vrot.slane %v689, 4
  %v692 = vshll.u32 %v507, 16
  %v694 = vrot.slane %v692, 5
  %v695 = vor.u32 %v691, %v694
  %v696 = vrot.slane %v695, 4
  %v698 = vshll.u32 %v539, 16
  %v700 = vrot.slane %v698, 5
  %v701 = vsel %vm547, %v696, %v700
  %v703 = vshrl.u32 %v508, 16
  %v705 = vrot.slane %v703, 4
  %v706 = vshll.u32 %v508, 16
  %v708 = vrot.slane %v706, 5
  %v709 = vor.u32 %v705, %v708
  %v710 = vrot.slane %v709, 4
  %v712 = vshll.u32 %v540, 16
  %v714 = vrot.slane %v712, 5
  %v715 = vsel %vm547, %v710, %v714
  %v717 = vshrl.u32 %v509, 16
  %v719 = vrot.slane %v717, 4
  %v720 = vshll.u32 %v509, 16
  %v722 = vrot.slane %v720, 5
  %v723 = vor.u32 %v719, %v722
  %v724 = vrot.slane %v723, 4
  %v726 = vshll.u32 %v541, 16
  %v728 = vrot.slane %v726, 5
  %v729 = vsel %vm547, %v724, %v728
  %v731 = vshrl.u32 %v510, 16
  %v733 = vrot.slane %v731, 4
  %v734 = vshll.u32 %v510, 16
  %v736 = vrot.slane %v734, 5
  %v737 = vor.u32 %v733, %v736
  %v738 = vrot.slane %v737, 4
  %v740 = vshll.u32 %v542, 16
  %v742 = vrot.slane %v740, 5
  %v743 = vsel %vm547, %v738, %v742
  %v745 = vshrl.u32 %v511, 16
  %v747 = vrot.slane %v745, 4
  %v748 = vshll.u32 %v511, 16
  %v750 = vrot.slane %v748, 5
  %v751 = vor.u32 %v747, %v750
  %v752 = vrot.slane %v751, 4
  %v754 = vshll.u32 %v543, 16
  %v756 = vrot.slane %v754, 5
  %v757 = vsel %vm547, %v752, %v756
  %v759 = vshrl.u32 %v512, 16
  %v761 = vrot.slane %v759, 4
  %v762 = vshll.u32 %v512, 16
  %v764 = vrot.slane %v762, 5
  %v765 = vor.u32 %v761, %v764
  %v766 = vrot.slane %v765, 4
  %v768 = vshll.u32 %v544, 16
  %v770 = vrot.slane %v768, 5
  %v771 = vsel %vm547, %v766, %v770
  %s772 = scalar_lea.vmem %s3, 64
  %v773 = vld [vmem:[%s772] sm:$0xf]
  %v774 = vld [vmem:[%s772 + $0x4] sm:$0xf]
  %v775 = vld [vmem:[%s772 + $0x8] sm:$0xf]
  %v776 = vld [vmem:[%s772 + $0xc] sm:$0xf]
  %v777 = vld [vmem:[%s772 + $0x10] sm:$0xf]
  %v778 = vld [vmem:[%s772 + $0x14] sm:$0xf]
  %v779 = vld [vmem:[%s772 + $0x18] sm:$0xf]
  %v780 = vld [vmem:[%s772 + $0x1c] sm:$0xf]
  %v781 = vld [vmem:[%s772 + $0x20] sm:$0xf]
  %v782 = vld [vmem:[%s772 + $0x24] sm:$0xf]
  %v783 = vld [vmem:[%s772 + $0x28] sm:$0xf]
  %v784 = vld [vmem:[%s772 + $0x2c] sm:$0xf]
  %v785 = vld [vmem:[%s772 + $0x30] sm:$0xf]
  %v786 = vld [vmem:[%s772 + $0x34] sm:$0xf]
  %v787 = vld [vmem:[%s772 + $0x38] sm:$0xf]
  %v788 = vld [vmem:[%s772 + $0x3c] sm:$0xf]
  %v789 = vunpack.c.l.b16 %v561
  %v790 = vunpack.c.l.b16 %v575
  %v791 = vunpack.c.l.b16 %v589
  %v792 = vunpack.c.l.b16 %v603
  %v793 = vunpack.c.l.b16 %v617
  %v794 = vunpack.c.l.b16 %v631
  %v795 = vunpack.c.l.b16 %v645
  %v796 = vunpack.c.l.b16 %v659
  %v797 = vunpack.c.l.b16 %v673
  %v798 = vunpack.c.l.b16 %v687
  %v799 = vunpack.c.l.b16 %v701
  %v800 = vunpack.c.l.b16 %v715
  %v801 = vunpack.c.l.b16 %v729
  %v802 = vunpack.c.l.b16 %v743
  %v803 = vunpack.c.l.b16 %v757
  %v804 = vunpack.c.l.b16 %v771
  %v805 = vpack.c.b16 %v790, %v789
  %v806 = vpack.c.b16 %v792, %v791
  %v807 = vpack.c.b16 %v794, %v793
  %v808 = vpack.c.b16 %v796, %v795
  %v809 = vpack.c.b16 %v798, %v797
  %v810 = vpack.c.b16 %v800, %v799
  %v811 = vpack.c.b16 %v802, %v801
  %v812 = vpack.c.b16 %v804, %v803
  %v837 = vunpack.c.l.b16 %v773
  %v838 = vunpack.c.l.b16 %v774
  %v839 = vunpack.c.l.b16 %v775
  %v840 = vunpack.c.l.b16 %v776
  %v841 = vunpack.c.l.b16 %v777
  %v842 = vunpack.c.l.b16 %v778
  %v843 = vunpack.c.l.b16 %v779
  %v844 = vunpack.c.l.b16 %v780
  %v845 = vunpack.c.l.b16 %v781
  %v846 = vunpack.c.l.b16 %v782
  %v847 = vunpack.c.l.b16 %v783
  %v848 = vunpack.c.l.b16 %v784
  %v849 = vunpack.c.l.b16 %v785
  %v850 = vunpack.c.l.b16 %v786
  %v851 = vunpack.c.l.b16 %v787
  %v852 = vunpack.c.l.b16 %v788
  %v853 = vpack.c.b16 %v838, %v837
  %v854 = vpack.c.b16 %v840, %v839
  %v855 = vpack.c.b16 %v842, %v841
  %v856 = vpack.c.b16 %v844, %v843
  %v857 = vpack.c.b16 %v846, %v845
  %v858 = vpack.c.b16 %v848, %v847
  %v859 = vpack.c.b16 %v850, %v849
  %v860 = vpack.c.b16 %v852, %v851
  %869 = vmatprep.subr.bf16.mxu0 0
  %870 = vmatpush1.bf16.msra.mxu0 %v853
  %871 = vmatprep.subr.bf16.mxu0 0
  %872 = vmatpush1.bf16.msra.mxu0 %v854
  %873 = vmatprep.subr.bf16.mxu0 0
  %874 = vmatpush1.bf16.msra.mxu0 %v855
  %875 = vmatprep.subr.bf16.mxu0 0
  %876 = vmatpush1.bf16.msra.mxu0 %v856
  %877 = vmatprep.subr.bf16.mxu0 0
  %878 = vmatpush1.bf16.msra.mxu0 %v857
  %879 = vmatprep.subr.bf16.mxu0 0
  %880 = vmatpush1.bf16.msra.mxu0 %v858
  %881 = vmatprep.subr.bf16.mxu0 0
  %882 = vmatpush1.bf16.msra.mxu0 %v859
  %883 = vmatprep.subr.bf16.mxu0 0
  %884 = vmatpush1.bf16.msra.mxu0 %v860
  %885 = vmatprep.subr.bf16.mxu0 0
  %886 = vmatpush1.bf16.msra.mxu0 0
  %887 = vmatprep.subr.bf16.mxu0 0
  %888 = vmatpush1.bf16.msra.mxu0 0
  %889 = vmatprep.subr.bf16.mxu0 0
  %890 = vmatpush1.bf16.msra.mxu0 0
  %891 = vmatprep.subr.bf16.mxu0 0
  %892 = vmatpush1.bf16.msra.mxu0 0
  %893 = vmatprep.subr.bf16.mxu0 0
  %894 = vmatpush1.bf16.msra.mxu0 0
  %895 = vmatprep.subr.bf16.mxu0 0
  %896 = vmatpush1.bf16.msra.mxu0 0
  %897 = vmatprep.subr.bf16.mxu0 0
  %898 = vmatpush1.bf16.msra.mxu0 0
  %899 = vmatprep.subr.bf16.mxu0 0
  %900 = vmatpush1.bf16.msra.mxu0 0
  %901 = vmatprep.mubr.bf16.mxu0 0
  %902 = vmatmul.mubr.bf16.gmra.mrb[0].mxu0 %v805
  %v903 = vpop.f32.mrb[0].mxu0
  %v904 = vadd.f32 0.0, %v903
  %v905 = vpop.f32.mrb[0].mxu0
  %v906 = vpop.f32.mrb[0].mxu0
  %v907 = vadd.f32 0.0, %v906
  %v908 = vpop.f32.mrb[0].mxu0
  %909 = vmatprep.mubr.bf16.mxu0 0
  %910 = vmatmul.mubr.bf16.gmra.mrb[0].mxu0 %v806
  %v911 = vpop.f32.mrb[0].mxu0
  %v912 = vadd.f32 0.0, %v911
  %v913 = vpop.f32.mrb[0].mxu0
  %v914 = vpop.f32.mrb[0].mxu0
  %v915 = vadd.f32 0.0, %v914
  %v916 = vpop.f32.mrb[0].mxu0
  %917 = vmatprep.mubr.bf16.mxu0 0
  %918 = vmatmul.mubr.bf16.gmra.mrb[0].mxu0 %v807
  %v919 = vpop.f32.mrb[0].mxu0
  %v920 = vadd.f32 0.0, %v919
  %v921 = vpop.f32.mrb[0].mxu0
  %v922 = vpop.f32.mrb[0].mxu0
  %v923 = vadd.f32 0.0, %v922
  %v924 = vpop.f32.mrb[0].mxu0
  %925 = vmatprep.mubr.bf16.mxu0 0
  %926 = vmatmul.mubr.bf16.gmra.mrb[0].mxu0 %v808
  %v927 = vpop.f32.mrb[0].mxu0
  %v928 = vadd.f32 0.0, %v927
  %v929 = vpop.f32.mrb[0].mxu0
  %v930 = vpop.f32.mrb[0].mxu0
  %v931 = vadd.f32 0.0, %v930
  %v932 = vpop.f32.mrb[0].mxu0
  %933 = vmatprep.mubr.bf16.mxu0 0
  %934 = vmatmul.mubr.bf16.gmra.mrb[0].mxu0 %v809
  %v935 = vpop.f32.mrb[0].mxu0
  %v936 = vadd.f32 0.0, %v935
  %v937 = vpop.f32.mrb[0].mxu0
  %v938 = vpop.f32.mrb[0].mxu0
  %v939 = vadd.f32 0.0, %v938
  %v940 = vpop.f32.mrb[0].mxu0
  %941 = vmatprep.mubr.bf16.mxu0 0
  %942 = vmatmul.mubr.bf16.gmra.mrb[0].mxu0 %v810
  %v943 = vpop.f32.mrb[0].mxu0
  %v944 = vadd.f32 0.0, %v943
  %v945 = vpop.f32.mrb[0].mxu0
  %v946 = vpop.f32.mrb[0].mxu0
  %v947 = vadd.f32 0.0, %v946
  %v948 = vpop.f32.mrb[0].mxu0
  %949 = vmatprep.mubr.bf16.mxu0 0
  %950 = vmatmul.mubr.bf16.gmra.mrb[0].mxu0 %v811
  %v951 = vpop.f32.mrb[0].mxu0
  %v952 = vadd.f32 0.0, %v951
  %v953 = vpop.f32.mrb[0].mxu0
  %v954 = vpop.f32.mrb[0].mxu0
  %v955 = vadd.f32 0.0, %v954
  %v956 = vpop.f32.mrb[0].mxu0
  %957 = vmatprep.mubr.bf16.mxu0 0
  %958 = vmatmul.mubr.bf16.gmra.mrb[0].mxu0 %v812
  %v959 = vpop.f32.mrb[0].mxu0
  %v960 = vadd.f32 0.0, %v959
  %v961 = vpop.f32.mrb[0].mxu0
  %v962 = vpop.f32.mrb[0].mxu0
  %v963 = vadd.f32 0.0, %v962
  %v964 = vpop.f32.mrb[0].mxu0
  %965 = vdwg.mxu0
  %v982 = vunpack.c.l.b16 %v497
  %v983 = vunpack.c.l.b16 %v498
  %v984 = vunpack.c.l.b16 %v499
  %v985 = vunpack.c.l.b16 %v500
  %v986 = vunpack.c.l.b16 %v501
  %v987 = vunpack.c.l.b16 %v502
  %v988 = vunpack.c.l.b16 %v503
  %v989 = vunpack.c.l.b16 %v504
  %v990 = vunpack.c.l.b16 %v505
  %v991 = vunpack.c.l.b16 %v506
  %v992 = vunpack.c.l.b16 %v507
  %v993 = vunpack.c.l.b16 %v508
  %v994 = vunpack.c.l.b16 %v509
  %v995 = vunpack.c.l.b16 %v510
  %v996 = vunpack.c.l.b16 %v511
  %v997 = vunpack.c.l.b16 %v512
  %v998 = vpack.c.b16 %v983, %v982
  %v999 = vpack.c.b16 %v985, %v984
  %v1000 = vpack.c.b16 %v987, %v986
  %v1001 = vpack.c.b16 %v989, %v988
  %v1002 = vpack.c.b16 %v991, %v990
  %v1003 = vpack.c.b16 %v993, %v992
  %v1004 = vpack.c.b16 %v995, %v994
  %v1005 = vpack.c.b16 %v997, %v996
  %v1030 = vunpack.c.l.b16 %v513
  %v1031 = vunpack.c.l.b16 %v514
  %v1032 = vunpack.c.l.b16 %v515
  %v1033 = vunpack.c.l.b16 %v516
  %v1034 = vunpack.c.l.b16 %v517
  %v1035 = vunpack.c.l.b16 %v518
  %v1036 = vunpack.c.l.b16 %v519
  %v1037 = vunpack.c.l.b16 %v520
  %v1038 = vunpack.c.l.b16 %v521
  %v1039 = vunpack.c.l.b16 %v522
  %v1040 = vunpack.c.l.b16 %v523
  %v1041 = vunpack.c.l.b16 %v524
  %v1042 = vunpack.c.l.b16 %v525
  %v1043 = vunpack.c.l.b16 %v526
  %v1044 = vunpack.c.l.b16 %v527
  %v1045 = vunpack.c.l.b16 %v528
  %v1046 = vpack.c.b16 %v1031, %v1030
  %v1047 = vpack.c.b16 %v1033, %v1032
  %v1048 = vpack.c.b16 %v1035, %v1034
  %v1049 = vpack.c.b16 %v1037, %v1036
  %v1050 = vpack.c.b16 %v1039, %v1038
  %v1051 = vpack.c.b16 %v1041, %v1040
  %v1052 = vpack.c.b16 %v1043, %v1042
  %v1053 = vpack.c.b16 %v1045, %v1044
  %1062 = vmatprep.subr.bf16.mxu0 0
  %1063 = vmatpush1.bf16.msra.mxu0 %v1046
  %1064 = vmatprep.subr.bf16.mxu0 0
  %1065 = vmatpush1.bf16.msra.mxu0 %v1047
  %1066 = vmatprep.subr.bf16.mxu0 0
  %1067 = vmatpush1.bf16.msra.mxu0 %v1048
  %1068 = vmatprep.subr.bf16.mxu0 0
  %1069 = vmatpush1.bf16.msra.mxu0 %v1049
  %1070 = vmatprep.subr.bf16.mxu0 0
  %1071 = vmatpush1.bf16.msra.mxu0 %v1050
  %1072 = vmatprep.subr.bf16.mxu0 0
  %1073 = vmatpush1.bf16.msra.mxu0 %v1051
  %1074 = vmatprep.subr.bf16.mxu0 0
  %1075 = vmatpush1.bf16.msra.mxu0 %v1052
  %1076 = vmatprep.subr.bf16.mxu0 0
  %1077 = vmatpush1.bf16.msra.mxu0 %v1053
  %1078 = vmatprep.subr.bf16.mxu0 0
  %1079 = vmatpush1.bf16.msra.mxu0 0
  %1080 = vmatprep.subr.bf16.mxu0 0
  %1081 = vmatpush1.bf16.msra.mxu0 0
  %1082 = vmatprep.subr.bf16.mxu0 0
  %1083 = vmatpush1.bf16.msra.mxu0 0
  %1084 = vmatprep.subr.bf16.mxu0 0
  %1085 = vmatpush1.bf16.msra.mxu0 0
  %1086 = vmatprep.subr.bf16.mxu0 0
  %1087 = vmatpush1.bf16.msra.mxu0 0
  %1088 = vmatprep.subr.bf16.mxu0 0
  %1089 = vmatpush1.bf16.msra.mxu0 0
  %1090 = vmatprep.subr.bf16.mxu0 0
  %1091 = vmatpush1.bf16.msra.mxu0 0
  %1092 = vmatprep.subr.bf16.mxu0 0
  %1093 = vmatpush1.bf16.msra.mxu0 0
  %1094 = vmatprep.mubr.bf16.mxu0 0
  %1095 = vmatmul.mubr.bf16.gmra.mrb[0].mxu0 %v998
  %v1096 = vpop.f32.mrb[0].mxu0
  %v1097 = vadd.f32 %v904, %v1096
  %v1098 = vpop.f32.mrb[0].mxu0
  %v1099 = vpop.f32.mrb[0].mxu0
  %v1100 = vadd.f32 %v907, %v1099
  %v1101 = vpop.f32.mrb[0].mxu0
  %1102 = vmatprep.mubr.bf16.mxu0 0
  %1103 = vmatmul.mubr.bf16.gmra.mrb[0].mxu0 %v999
  %v1104 = vpop.f32.mrb[0].mxu0
  %v1105 = vadd.f32 %v912, %v1104
  %v1106 = vpop.f32.mrb[0].mxu0
  %v1107 = vpop.f32.mrb[0].mxu0
  %v1108 = vadd.f32 %v915, %v1107
  %v1109 = vpop.f32.mrb[0].mxu0
  %1110 = vmatprep.mubr.bf16.mxu0 0
  %1111 = vmatmul.mubr.bf16.gmra.mrb[0].mxu0 %v1000
  %v1112 = vpop.f32.mrb[0].mxu0
  %v1113 = vadd.f32 %v920, %v1112
  %v1114 = vpop.f32.mrb[0].mxu0
  %v1115 = vpop.f32.mrb[0].mxu0
  %v1116 = vadd.f32 %v923, %v1115
  %v1117 = vpop.f32.mrb[0].mxu0
  %1118 = vmatprep.mubr.bf16.mxu0 0
  %1119 = vmatmul.mubr.bf16.gmra.mrb[0].mxu0 %v1001
  %v1120 = vpop.f32.mrb[0].mxu0
  %v1121 = vadd.f32 %v928, %v1120
  %v1122 = vpop.f32.mrb[0].mxu0
  %v1123 = vpop.f32.mrb[0].mxu0
  %v1124 = vadd.f32 %v931, %v1123
  %v1125 = vpop.f32.mrb[0].mxu0
  %1126 = vmatprep.mubr.bf16.mxu0 0
  %1127 = vmatmul.mubr.bf16.gmra.mrb[0].mxu0 %v1002
  %v1128 = vpop.f32.mrb[0].mxu0
  %v1129 = vadd.f32 %v936, %v1128
  %v1130 = vpop.f32.mrb[0].mxu0
  %v1131 = vpop.f32.mrb[0].mxu0
  %v1132 = vadd.f32 %v939, %v1131
  %v1133 = vpop.f32.mrb[0].mxu0
  %1134 = vmatprep.mubr.bf16.mxu0 0
  %1135 = vmatmul.mubr.bf16.gmra.mrb[0].mxu0 %v1003
  %v1136 = vpop.f32.mrb[0].mxu0
  %v1137 = vadd.f32 %v944, %v1136
  %v1138 = vpop.f32.mrb[0].mxu0
  %v1139 = vpop.f32.mrb[0].mxu0
  %v1140 = vadd.f32 %v947, %v1139
  %v1141 = vpop.f32.mrb[0].mxu0
  %1142 = vmatprep.mubr.bf16.mxu0 0
  %1143 = vmatmul.mubr.bf16.gmra.mrb[0].mxu0 %v1004
  %v1144 = vpop.f32.mrb[0].mxu0
  %v1145 = vadd.f32 %v952, %v1144
  %v1146 = vpop.f32.mrb[0].mxu0
  %v1147 = vpop.f32.mrb[0].mxu0
  %v1148 = vadd.f32 %v955, %v1147
  %v1149 = vpop.f32.mrb[0].mxu0
  %1150 = vmatprep.mubr.bf16.mxu0 0
  %1151 = vmatmul.mubr.bf16.gmra.mrb[0].mxu0 %v1005
  %v1152 = vpop.f32.mrb[0].mxu0
  %v1153 = vadd.f32 %v960, %v1152
  %v1154 = vpop.f32.mrb[0].mxu0
  %v1155 = vpop.f32.mrb[0].mxu0
  %v1156 = vadd.f32 %v963, %v1155
  %v1157 = vpop.f32.mrb[0].mxu0
  %1158 = vdwg.mxu0
  %v1159 = vld [vmem:[#allocation2] sm:$0xe]
  %v1160 = vld [vmem:[#allocation2 + $0x8] sm:$0xe]
  %v1161 = vld [vmem:[#allocation2 + $0x10] sm:$0xe]
  %v1162 = vld [vmem:[#allocation2 + $0x18] sm:$0xe]
  %v1163 = vld [vmem:[#allocation2 + $0x20] sm:$0xe]
  %v1164 = vld [vmem:[#allocation2 + $0x28] sm:$0xe]
  %v1165 = vld [vmem:[#allocation2 + $0x30] sm:$0xe]
  %v1166 = vld [vmem:[#allocation2 + $0x38] sm:$0xe]
  %v1167 = vld [vmem:[#allocation2 + $0x50] sm:$0xe]
  %v1168 = vld [vmem:[#allocation2 + $0x58] sm:$0xe]
  %v1169 = vld [vmem:[#allocation2 + $0x60] sm:$0xe]
  %v1170 = vld [vmem:[#allocation2 + $0x68] sm:$0xe]
  %v1171 = vld [vmem:[#allocation2 + $0x70] sm:$0xe]
  %v1172 = vld [vmem:[#allocation2 + $0x78] sm:$0xe]
  %v1173 = vld [vmem:[#allocation2 + $0x80] sm:$0xe]
  %v1174 = vld [vmem:[#allocation2 + $0x88] sm:$0xe]
  %vm1207 = vcmask 1042432
  %vm1208 = vcmask 1046532
  %vm1209 = vmor %vm1207, %vm1208
  %v1210 = vrot.slane %v1159, 5
  %v1211 = vrot.slane %v1210, 4
  %v1212 = vrot.slane %v529, 5
  %v1213 = vsel %vm1209, %v1211, %v1212
  %v1214 = vrot.slane %v1160, 5
  %v1215 = vrot.slane %v1214, 4
  %v1216 = vrot.slane %v530, 5
  %v1217 = vsel %vm1209, %v1215, %v1216
  %v1218 = vrot.slane %v1161, 5
  %v1219 = vrot.slane %v1218, 4
  %v1220 = vrot.slane %v531, 5
  %v1221 = vsel %vm1209, %v1219, %v1220
  %v1222 = vrot.slane %v1162, 5
  %v1223 = vrot.slane %v1222, 4
  %v1224 = vrot.slane %v532, 5
  %v1225 = vsel %vm1209, %v1223, %v1224
  %v1226 = vrot.slane %v1163, 5
  %v1227 = vrot.slane %v1226, 4
  %v1228 = vrot.slane %v533, 5
  %v1229 = vsel %vm1209, %v1227, %v1228
  %v1230 = vrot.slane %v1164, 5
  %v1231 = vrot.slane %v1230, 4
  %v1232 = vrot.slane %v534, 5
  %v1233 = vsel %vm1209, %v1231, %v1232
  %v1234 = vrot.slane %v1165, 5
  %v1235 = vrot.slane %v1234, 4
  %v1236 = vrot.slane %v535, 5
  %v1237 = vsel %vm1209, %v1235, %v1236
  %v1238 = vrot.slane %v1166, 5
  %v1239 = vrot.slane %v1238, 4
  %v1240 = vrot.slane %v536, 5
  %v1241 = vsel %vm1209, %v1239, %v1240
  %v1242 = vrot.slane %v1167, 5
  %v1243 = vrot.slane %v1242, 4
  %v1244 = vrot.slane %v537, 5
  %v1245 = vsel %vm1209, %v1243, %v1244
  %v1246 = vrot.slane %v1168, 5
  %v1247 = vrot.slane %v1246, 4
  %v1248 = vrot.slane %v538, 5
  %v1249 = vsel %vm1209, %v1247, %v1248
  %v1250 = vrot.slane %v1169, 5
  %v1251 = vrot.slane %v1250, 4
  %v1252 = vrot.slane %v539, 5
  %v1253 = vsel %vm1209, %v1251, %v1252
  %v1254 = vrot.slane %v1170, 5
  %v1255 = vrot.slane %v1254, 4
  %v1256 = vrot.slane %v540, 5
  %v1257 = vsel %vm1209, %v1255, %v1256
  %v1258 = vrot.slane %v1171, 5
  %v1259 = vrot.slane %v1258, 4
  %v1260 = vrot.slane %v541, 5
  %v1261 = vsel %vm1209, %v1259, %v1260
  %v1262 = vrot.slane %v1172, 5
  %v1263 = vrot.slane %v1262, 4
  %v1264 = vrot.slane %v542, 5
  %v1265 = vsel %vm1209, %v1263, %v1264
  %v1266 = vrot.slane %v1173, 5
  %v1267 = vrot.slane %v1266, 4
  %v1268 = vrot.slane %v543, 5
  %v1269 = vsel %vm1209, %v1267, %v1268
  %v1270 = vrot.slane %v1174, 5
  %v1271 = vrot.slane %v1270, 4
  %v1272 = vrot.slane %v544, 5
  %v1273 = vsel %vm1209, %v1271, %v1272
  %s1274 = scalar_lea.vmem %s3, 128
  %v1275 = vld [vmem:[%s1274] sm:$0xf]
  %v1276 = vld [vmem:[%s1274 + $0x4] sm:$0xf]
  %v1277 = vld [vmem:[%s1274 + $0x8] sm:$0xf]
  %v1278 = vld [vmem:[%s1274 + $0xc] sm:$0xf]
  %v1279 = vld [vmem:[%s1274 + $0x10] sm:$0xf]
  %v1280 = vld [vmem:[%s1274 + $0x14] sm:$0xf]
  %v1281 = vld [vmem:[%s1274 + $0x18] sm:$0xf]
  %v1282 = vld [vmem:[%s1274 + $0x1c] sm:$0xf]
  %v1283 = vld [vmem:[%s1274 + $0x20] sm:$0xf]
  %v1284 = vld [vmem:[%s1274 + $0x24] sm:$0xf]
  %v1285 = vld [vmem:[%s1274 + $0x28] sm:$0xf]
  %v1286 = vld [vmem:[%s1274 + $0x2c] sm:$0xf]
  %v1287 = vld [vmem:[%s1274 + $0x30] sm:$0xf]
  %v1288 = vld [vmem:[%s1274 + $0x34] sm:$0xf]
  %v1289 = vld [vmem:[%s1274 + $0x38] sm:$0xf]
  %v1290 = vld [vmem:[%s1274 + $0x3c] sm:$0xf]
  %v1291 = vunpack.c.l.b16 %v1213
  %v1292 = vunpack.c.l.b16 %v1217
  %v1293 = vunpack.c.l.b16 %v1221
  %v1294 = vunpack.c.l.b16 %v1225
  %v1295 = vunpack.c.l.b16 %v1229
  %v1296 = vunpack.c.l.b16 %v1233
  %v1297 = vunpack.c.l.b16 %v1237
  %v1298 = vunpack.c.l.b16 %v1241
  %v1299 = vunpack.c.l.b16 %v1245
  %v1300 = vunpack.c.l.b16 %v1249
  %v1301 = vunpack.c.l.b16 %v1253
  %v1302 = vunpack.c.l.b16 %v1257
  %v1303 = vunpack.c.l.b16 %v1261
  %v1304 = vunpack.c.l.b16 %v1265
  %v1305 = vunpack.c.l.b16 %v1269
  %v1306 = vunpack.c.l.b16 %v1273
  %v1307 = vpack.c.b16 %v1292, %v1291
  %v1308 = vpack.c.b16 %v1294, %v1293
  %v1309 = vpack.c.b16 %v1296, %v1295
  %v1310 = vpack.c.b16 %v1298, %v1297
  %v1311 = vpack.c.b16 %v1300, %v1299
  %v1312 = vpack.c.b16 %v1302, %v1301
  %v1313 = vpack.c.b16 %v1304, %v1303
  %v1314 = vpack.c.b16 %v1306, %v1305
  %v1339 = vunpack.c.l.b16 %v1275
  %v1340 = vunpack.c.l.b16 %v1276
  %v1341 = vunpack.c.l.b16 %v1277
  %v1342 = vunpack.c.l.b16 %v1278
  %v1343 = vunpack.c.l.b16 %v1279
  %v1344 = vunpack.c.l.b16 %v1280
  %v1345 = vunpack.c.l.b16 %v1281
  %v1346 = vunpack.c.l.b16 %v1282
  %v1347 = vunpack.c.l.b16 %v1283
  %v1348 = vunpack.c.l.b16 %v1284
  %v1349 = vunpack.c.l.b16 %v1285
  %v1350 = vunpack.c.l.b16 %v1286
  %v1351 = vunpack.c.l.b16 %v1287
  %v1352 = vunpack.c.l.b16 %v1288
  %v1353 = vunpack.c.l.b16 %v1289
  %v1354 = vunpack.c.l.b16 %v1290
  %v1355 = vpack.c.b16 %v1340, %v1339
  %v1356 = vpack.c.b16 %v1342, %v1341
  %v1357 = vpack.c.b16 %v1344, %v1343
  %v1358 = vpack.c.b16 %v1346, %v1345
  %v1359 = vpack.c.b16 %v1348, %v1347
  %v1360 = vpack.c.b16 %v1350, %v1349
  %v1361 = vpack.c.b16 %v1352, %v1351
  %v1362 = vpack.c.b16 %v1354, %v1353
  %1371 = vmatprep.subr.bf16.mxu0 0
  %1372 = vmatpush1.bf16.msra.mxu0 %v1355
  %1373 = vmatprep.subr.bf16.mxu0 0
  %1374 = vmatpush1.bf16.msra.mxu0 %v1356
  %1375 = vmatprep.subr.bf16.mxu0 0
  %1376 = vmatpush1.bf16.msra.mxu0 %v1357
  %1377 = vmatprep.subr.bf16.mxu0 0
  %1378 = vmatpush1.bf16.msra.mxu0 %v1358
  %1379 = vmatprep.subr.bf16.mxu0 0
  %1380 = vmatpush1.bf16.msra.mxu0 %v1359
  %1381 = vmatprep.subr.bf16.mxu0 0
  %1382 = vmatpush1.bf16.msra.mxu0 %v1360
  %1383 = vmatprep.subr.bf16.mxu0 0
  %1384 = vmatpush1.bf16.msra.mxu0 %v1361
  %1385 = vmatprep.subr.bf16.mxu0 0
  %1386 = vmatpush1.bf16.msra.mxu0 %v1362
  %1387 = vmatprep.subr.bf16.mxu0 0
  %1388 = vmatpush1.bf16.msra.mxu0 0
  %1389 = vmatprep.subr.bf16.mxu0 0
  %1390 = vmatpush1.bf16.msra.mxu0 0
  %1391 = vmatprep.subr.bf16.mxu0 0
  %1392 = vmatpush1.bf16.msra.mxu0 0
  %1393 = vmatprep.subr.bf16.mxu0 0
  %1394 = vmatpush1.bf16.msra.mxu0 0
  %1395 = vmatprep.subr.bf16.mxu0 0
  %1396 = vmatpush1.bf16.msra.mxu0 0
  %1397 = vmatprep.subr.bf16.mxu0 0
  %1398 = vmatpush1.bf16.msra.mxu0 0
  %1399 = vmatprep.subr.bf16.mxu0 0
  %1400 = vmatpush1.bf16.msra.mxu0 0
  %1401 = vmatprep.subr.bf16.mxu0 0
  %1402 = vmatpush1.bf16.msra.mxu0 0
  %1403 = vmatprep.mubr.bf16.mxu0 0
  %1404 = vmatmul.mubr.bf16.gmra.mrb[0].mxu0 %v1307
  %v1405 = vpop.f32.mrb[0].mxu0
  %v1406 = vadd.f32 0.0, %v1405
  %v1407 = vpop.f32.mrb[0].mxu0
  %v1408 = vpop.f32.mrb[0].mxu0
  %v1409 = vadd.f32 0.0, %v1408
  %v1410 = vpop.f32.mrb[0].mxu0
  %1411 = vmatprep.mubr.bf16.mxu0 0
  %1412 = vmatmul.mubr.bf16.gmra.mrb[0].mxu0 %v1308
  %v1413 = vpop.f32.mrb[0].mxu0
  %v1414 = vadd.f32 0.0, %v1413
  %v1415 = vpop.f32.mrb[0].mxu0
  %v1416 = vpop.f32.mrb[0].mxu0
  %v1417 = vadd.f32 0.0, %v1416
  %v1418 = vpop.f32.mrb[0].mxu0
  %1419 = vmatprep.mubr.bf16.mxu0 0
  %1420 = vmatmul.mubr.bf16.gmra.mrb[0].mxu0 %v1309
  %v1421 = vpop.f32.mrb[0].mxu0
  %v1422 = vadd.f32 0.0, %v1421
  %v1423 = vpop.f32.mrb[0].mxu0
  %v1424 = vpop.f32.mrb[0].mxu0
  %v1425 = vadd.f32 0.0, %v1424
  %v1426 = vpop.f32.mrb[0].mxu0
  %1427 = vmatprep.mubr.bf16.mxu0 0
  %1428 = vmatmul.mubr.bf16.gmra.mrb[0].mxu0 %v1310
  %v1429 = vpop.f32.mrb[0].mxu0
  %v1430 = vadd.f32 0.0, %v1429
  %v1431 = vpop.f32.mrb[0].mxu0
  %v1432 = vpop.f32.mrb[0].mxu0
  %v1433 = vadd.f32 0.0, %v1432
  %v1434 = vpop.f32.mrb[0].mxu0
  %1435 = vmatprep.mubr.bf16.mxu0 0
  %1436 = vmatmul.mubr.bf16.gmra.mrb[0].mxu0 %v1311
  %v1437 = vpop.f32.mrb[0].mxu0
  %v1438 = vadd.f32 0.0, %v1437
  %v1439 = vpop.f32.mrb[0].mxu0
  %v1440 = vpop.f32.mrb[0].mxu0
  %v1441 = vadd.f32 0.0, %v1440
  %v1442 = vpop.f32.mrb[0].mxu0
  %1443 = vmatprep.mubr.bf16.mxu0 0
  %1444 = vmatmul.mubr.bf16.gmra.mrb[0].mxu0 %v1312
  %v1445 = vpop.f32.mrb[0].mxu0
  %v1446 = vadd.f32 0.0, %v1445
  %v1447 = vpop.f32.mrb[0].mxu0
  %v1448 = vpop.f32.mrb[0].mxu0
  %v1449 = vadd.f32 0.0, %v1448
  %v1450 = vpop.f32.mrb[0].mxu0
  %1451 = vmatprep.mubr.bf16.mxu0 0
  %1452 = vmatmul.mubr.bf16.gmra.mrb[0].mxu0 %v1313
  %v1453 = vpop.f32.mrb[0].mxu0
  %v1454 = vadd.f32 0.0, %v1453
  %v1455 = vpop.f32.mrb[0].mxu0
  %v1456 = vpop.f32.mrb[0].mxu0
  %v1457 = vadd.f32 0.0, %v1456
  %v1458 = vpop.f32.mrb[0].mxu0
  %1459 = vmatprep.mubr.bf16.mxu0 0
  %1460 = vmatmul.mubr.bf16.gmra.mrb[0].mxu0 %v1314
  %v1461 = vpop.f32.mrb[0].mxu0
  %v1462 = vadd.f32 0.0, %v1461
  %v1463 = vpop.f32.mrb[0].mxu0
  %v1464 = vpop.f32.mrb[0].mxu0
  %v1465 = vadd.f32 0.0, %v1464
  %v1466 = vpop.f32.mrb[0].mxu0
  %1467 = vdwg.mxu0
  %v1468 = vadd.f32 %v1097, %v1406
  %v1469 = vadd.f32 %v1100, %v1409
  %v1470 = vadd.f32 %v1105, %v1414
  %v1471 = vadd.f32 %v1108, %v1417
  %v1472 = vadd.f32 %v1113, %v1422
  %v1473 = vadd.f32 %v1116, %v1425
  %v1474 = vadd.f32 %v1121, %v1430
  %v1475 = vadd.f32 %v1124, %v1433
  %v1476 = vadd.f32 %v1129, %v1438
  %v1477 = vadd.f32 %v1132, %v1441
  %v1478 = vadd.f32 %v1137, %v1446
  %v1479 = vadd.f32 %v1140, %v1449
  %v1480 = vadd.f32 %v1145, %v1454
  %v1481 = vadd.f32 %v1148, %v1457
  %v1482 = vadd.f32 %v1153, %v1462
  %v1483 = vadd.f32 %v1156, %v1465
  %v1484 = vld [vmem:[%s394] sm:$0xf]
  %v1485 = vld [vmem:[%s394 + $0x8] sm:$0xf]
  %v1486 = vld [vmem:[%s394 + $0x10] sm:$0xf]
  %v1487 = vld [vmem:[%s394 + $0x18] sm:$0xf]
  %v1488 = vld [vmem:[%s394 + $0x20] sm:$0xf]
  %v1489 = vld [vmem:[%s394 + $0x28] sm:$0xf]
  %v1490 = vld [vmem:[%s394 + $0x30] sm:$0xf]
  %v1491 = vld [vmem:[%s394 + $0x38] sm:$0xf]
  %v1492 = vld [vmem:[%s394 + $0x50] sm:$0xf]
  %v1493 = vld [vmem:[%s394 + $0x58] sm:$0xf]
  %v1494 = vld [vmem:[%s394 + $0x60] sm:$0xf]
  %v1495 = vld [vmem:[%s394 + $0x68] sm:$0xf]
  %v1496 = vld [vmem:[%s394 + $0x70] sm:$0xf]
  %v1497 = vld [vmem:[%s394 + $0x78] sm:$0xf]
  %v1498 = vld [vmem:[%s394 + $0x80] sm:$0xf]
  %v1499 = vld [vmem:[%s394 + $0x88] sm:$0xf]
  %s1500 = scalar_lea.vmem %s3, 192
  %v1501 = vld [vmem:[%s1500] sm:$0xf]
  %v1502 = vld [vmem:[%s1500 + $0x4] sm:$0xf]
  %v1503 = vld [vmem:[%s1500 + $0x8] sm:$0xf]
  %v1504 = vld [vmem:[%s1500 + $0xc] sm:$0xf]
  %v1505 = vld [vmem:[%s1500 + $0x10] sm:$0xf]
  %v1506 = vld [vmem:[%s1500 + $0x14] sm:$0xf]
  %v1507 = vld [vmem:[%s1500 + $0x18] sm:$0xf]
  %v1508 = vld [vmem:[%s1500 + $0x1c] sm:$0xf]
  %v1509 = vld [vmem:[%s1500 + $0x20] sm:$0xf]
  %v1510 = vld [vmem:[%s1500 + $0x24] sm:$0xf]
  %v1511 = vld [vmem:[%s1500 + $0x28] sm:$0xf]
  %v1512 = vld [vmem:[%s1500 + $0x2c] sm:$0xf]
  %v1513 = vld [vmem:[%s1500 + $0x30] sm:$0xf]
  %v1514 = vld [vmem:[%s1500 + $0x34] sm:$0xf]
  %v1515 = vld [vmem:[%s1500 + $0x38] sm:$0xf]
  %v1516 = vld [vmem:[%s1500 + $0x3c] sm:$0xf]
  %v1533 = vunpack.c.l.b16 %v1484
  %v1534 = vunpack.c.l.b16 %v1485
  %v1535 = vunpack.c.l.b16 %v1486
  %v1536 = vunpack.c.l.b16 %v1487
  %v1537 = vunpack.c.l.b16 %v1488
  %v1538 = vunpack.c.l.b16 %v1489
  %v1539 = vunpack.c.l.b16 %v1490
  %v1540 = vunpack.c.l.b16 %v1491
  %v1541 = vunpack.c.l.b16 %v1492
  %v1542 = vunpack.c.l.b16 %v1493
  %v1543 = vunpack.c.l.b16 %v1494
  %v1544 = vunpack.c.l.b16 %v1495
  %v1545 = vunpack.c.l.b16 %v1496
  %v1546 = vunpack.c.l.b16 %v1497
  %v1547 = vunpack.c.l.b16 %v1498
  %v1548 = vunpack.c.l.b16 %v1499
  %v1549 = vpack.c.b16 %v1534, %v1533
  %v1550 = vpack.c.b16 %v1536, %v1535
  %v1551 = vpack.c.b16 %v1538, %v1537
  %v1552 = vpack.c.b16 %v1540, %v1539
  %v1553 = vpack.c.b16 %v1542, %v1541
  %v1554 = vpack.c.b16 %v1544, %v1543
  %v1555 = vpack.c.b16 %v1546, %v1545
  %v1556 = vpack.c.b16 %v1548, %v1547
  %v1581 = vunpack.c.l.b16 %v1501
  %v1582 = vunpack.c.l.b16 %v1502
  %v1583 = vunpack.c.l.b16 %v1503
  %v1584 = vunpack.c.l.b16 %v1504
  %v1585 = vunpack.c.l.b16 %v1505
  %v1586 = vunpack.c.l.b16 %v1506
  %v1587 = vunpack.c.l.b16 %v1507
  %v1588 = vunpack.c.l.b16 %v1508
  %v1589 = vunpack.c.l.b16 %v1509
  %v1590 = vunpack.c.l.b16 %v1510
  %v1591 = vunpack.c.l.b16 %v1511
  %v1592 = vunpack.c.l.b16 %v1512
  %v1593 = vunpack.c.l.b16 %v1513
  %v1594 = vunpack.c.l.b16 %v1514
  %v1595 = vunpack.c.l.b16 %v1515
  %v1596 = vunpack.c.l.b16 %v1516
  %v1597 = vpack.c.b16 %v1582, %v1581
  %v1598 = vpack.c.b16 %v1584, %v1583
  %v1599 = vpack.c.b16 %v1586, %v1585
  %v1600 = vpack.c.b16 %v1588, %v1587
  %v1601 = vpack.c.b16 %v1590, %v1589
  %v1602 = vpack.c.b16 %v1592, %v1591
  %v1603 = vpack.c.b16 %v1594, %v1593
  %v1604 = vpack.c.b16 %v1596, %v1595
  %1613 = vmatprep.subr.bf16.mxu0 0
  %1614 = vmatpush1.bf16.msra.mxu0 %v1597
  %1615 = vmatprep.subr.bf16.mxu0 0
  %1616 = vmatpush1.bf16.msra.mxu0 %v1598
  %1617 = vmatprep.subr.bf16.mxu0 0
  %1618 = vmatpush1.bf16.msra.mxu0 %v1599
  %1619 = vmatprep.subr.bf16.mxu0 0
  %1620 = vmatpush1.bf16.msra.mxu0 %v1600
  %1621 = vmatprep.subr.bf16.mxu0 0
  %1622 = vmatpush1.bf16.msra.mxu0 %v1601
  %1623 = vmatprep.subr.bf16.mxu0 0
  %1624 = vmatpush1.bf16.msra.mxu0 %v1602
  %1625 = vmatprep.subr.bf16.mxu0 0
  %1626 = vmatpush1.bf16.msra.mxu0 %v1603
  %1627 = vmatprep.subr.bf16.mxu0 0
  %1628 = vmatpush1.bf16.msra.mxu0 %v1604
  %1629 = vmatprep.subr.bf16.mxu0 0
  %1630 = vmatpush1.bf16.msra.mxu0 0
  %1631 = vmatprep.subr.bf16.mxu0 0
  %1632 = vmatpush1.bf16.msra.mxu0 0
  %1633 = vmatprep.subr.bf16.mxu0 0
  %1634 = vmatpush1.bf16.msra.mxu0 0
  %1635 = vmatprep.subr.bf16.mxu0 0
  %1636 = vmatpush1.bf16.msra.mxu0 0
  %1637 = vmatprep.subr.bf16.mxu0 0
  %1638 = vmatpush1.bf16.msra.mxu0 0
  %1639 = vmatprep.subr.bf16.mxu0 0
  %1640 = vmatpush1.bf16.msra.mxu0 0
  %1641 = vmatprep.subr.bf16.mxu0 0
  %1642 = vmatpush1.bf16.msra.mxu0 0
  %1643 = vmatprep.subr.bf16.mxu0 0
  %1644 = vmatpush1.bf16.msra.mxu0 0
  %1645 = vmatprep.mubr.bf16.mxu0 0
  %1646 = vmatmul.mubr.bf16.gmra.mrb[0].mxu0 %v1549
  %v1647 = vpop.f32.mrb[0].mxu0
  %v1648 = vadd.f32 0.0, %v1647
  %v1649 = vpop.f32.mrb[0].mxu0
  %v1650 = vpop.f32.mrb[0].mxu0
  %v1651 = vadd.f32 0.0, %v1650
  %v1652 = vpop.f32.mrb[0].mxu0
  %1653 = vmatprep.mubr.bf16.mxu0 0
  %1654 = vmatmul.mubr.bf16.gmra.mrb[0].mxu0 %v1550
  %v1655 = vpop.f32.mrb[0].mxu0
  %v1656 = vadd.f32 0.0, %v1655
  %v1657 = vpop.f32.mrb[0].mxu0
  %v1658 = vpop.f32.mrb[0].mxu0
  %v1659 = vadd.f32 0.0, %v1658
  %v1660 = vpop.f32.mrb[0].mxu0
  %1661 = vmatprep.mubr.bf16.mxu0 0
  %1662 = vmatmul.mubr.bf16.gmra.mrb[0].mxu0 %v1551
  %v1663 = vpop.f32.mrb[0].mxu0
  %v1664 = vadd.f32 0.0, %v1663
  %v1665 = vpop.f32.mrb[0].mxu0
  %v1666 = vpop.f32.mrb[0].mxu0
  %v1667 = vadd.f32 0.0, %v1666
  %v1668 = vpop.f32.mrb[0].mxu0
  %1669 = vmatprep.mubr.bf16.mxu0 0
  %1670 = vmatmul.mubr.bf16.gmra.mrb[0].mxu0 %v1552
  %v1671 = vpop.f32.mrb[0].mxu0
  %v1672 = vadd.f32 0.0, %v1671
  %v1673 = vpop.f32.mrb[0].mxu0
  %v1674 = vpop.f32.mrb[0].mxu0
  %v1675 = vadd.f32 0.0, %v1674
  %v1676 = vpop.f32.mrb[0].mxu0
  %1677 = vmatprep.mubr.bf16.mxu0 0
  %1678 = vmatmul.mubr.bf16.gmra.mrb[0].mxu0 %v1553
  %v1679 = vpop.f32.mrb[0].mxu0
  %v1680 = vadd.f32 0.0, %v1679
  %v1681 = vpop.f32.mrb[0].mxu0
  %v1682 = vpop.f32.mrb[0].mxu0
  %v1683 = vadd.f32 0.0, %v1682
  %v1684 = vpop.f32.mrb[0].mxu0
  %1685 = vmatprep.mubr.bf16.mxu0 0
  %1686 = vmatmul.mubr.bf16.gmra.mrb[0].mxu0 %v1554
  %v1687 = vpop.f32.mrb[0].mxu0
  %v1688 = vadd.f32 0.0, %v1687
  %v1689 = vpop.f32.mrb[0].mxu0
  %v1690 = vpop.f32.mrb[0].mxu0
  %v1691 = vadd.f32 0.0, %v1690
  %v1692 = vpop.f32.mrb[0].mxu0
  %1693 = vmatprep.mubr.bf16.mxu0 0
  %1694 = vmatmul.mubr.bf16.gmra.mrb[0].mxu0 %v1555
  %v1695 = vpop.f32.mrb[0].mxu0
  %v1696 = vadd.f32 0.0, %v1695
  %v1697 = vpop.f32.mrb[0].mxu0
  %v1698 = vpop.f32.mrb[0].mxu0
  %v1699 = vadd.f32 0.0, %v1698
  %v1700 = vpop.f32.mrb[0].mxu0
  %1701 = vmatprep.mubr.bf16.mxu0 0
  %1702 = vmatmul.mubr.bf16.gmra.mrb[0].mxu0 %v1556
  %v1703 = vpop.f32.mrb[0].mxu0
  %v1704 = vadd.f32 0.0, %v1703
  %v1705 = vpop.f32.mrb[0].mxu0
  %v1706 = vpop.f32.mrb[0].mxu0
  %v1707 = vadd.f32 0.0, %v1706
  %v1708 = vpop.f32.mrb[0].mxu0
  %1709 = vdwg.mxu0
  %v1710 = vadd.f32 %v1468, %v1648
  %v1711 = vadd.f32 %v1469, %v1651
  %v1712 = vadd.f32 %v1470, %v1656
  %v1713 = vadd.f32 %v1471, %v1659
  %v1714 = vadd.f32 %v1472, %v1664
  %v1715 = vadd.f32 %v1473, %v1667
  %v1716 = vadd.f32 %v1474, %v1672
  %v1717 = vadd.f32 %v1475, %v1675
  %v1718 = vadd.f32 %v1476, %v1680
  %v1719 = vadd.f32 %v1477, %v1683
  %v1720 = vadd.f32 %v1478, %v1688
  %v1721 = vadd.f32 %v1479, %v1691
  %v1722 = vadd.f32 %v1480, %v1696
  %v1723 = vadd.f32 %v1481, %v1699
  %v1724 = vadd.f32 %v1482, %v1704
  %v1725 = vadd.f32 %v1483, %v1707
  %v1726 = vld [vmem:[%s394] sm:$0xf]
  %v1727 = vld [vmem:[%s394 + $0x4] sm:$0x1]
  %v1728 = vld [vmem:[%s394 + $0x8] sm:$0xf]
  %v1729 = vld [vmem:[%s394 + $0xc] sm:$0x1]
  %v1730 = vld [vmem:[%s394 + $0x10] sm:$0xf]
  %v1731 = vld [vmem:[%s394 + $0x14] sm:$0x1]
  %v1732 = vld [vmem:[%s394 + $0x18] sm:$0xf]
  %v1733 = vld [vmem:[%s394 + $0x1c] sm:$0x1]
  %v1734 = vld [vmem:[%s394 + $0x20] sm:$0xf]
  %v1735 = vld [vmem:[%s394 + $0x24] sm:$0x1]
  %v1736 = vld [vmem:[%s394 + $0x28] sm:$0xf]
  %v1737 = vld [vmem:[%s394 + $0x2c] sm:$0x1]
  %v1738 = vld [vmem:[%s394 + $0x30] sm:$0xf]
  %v1739 = vld [vmem:[%s394 + $0x34] sm:$0x1]
  %v1740 = vld [vmem:[%s394 + $0x38] sm:$0xf]
  %v1741 = vld [vmem:[%s394 + $0x3c] sm:$0x1]
  %v1742 = vld [vmem:[%s394 + $0x50] sm:$0xf]
  %v1743 = vld [vmem:[%s394 + $0x54] sm:$0x1]
  %v1744 = vld [vmem:[%s394 + $0x58] sm:$0xf]
  %v1745 = vld [vmem:[%s394 + $0x5c] sm:$0x1]
  %v1746 = vld [vmem:[%s394 + $0x60] sm:$0xf]
  %v1747 = vld [vmem:[%s394 + $0x64] sm:$0x1]
  %v1748 = vld [vmem:[%s394 + $0x68] sm:$0xf]
  %v1749 = vld [vmem:[%s394 + $0x6c] sm:$0x1]
  %v1750 = vld [vmem:[%s394 + $0x70] sm:$0xf]
  %v1751 = vld [vmem:[%s394 + $0x74] sm:$0x1]
  %v1752 = vld [vmem:[%s394 + $0x78] sm:$0xf]
  %v1753 = vld [vmem:[%s394 + $0x7c] sm:$0x1]
  %v1754 = vld [vmem:[%s394 + $0x80] sm:$0xf]
  %v1755 = vld [vmem:[%s394 + $0x84] sm:$0x1]
  %v1756 = vld [vmem:[%s394 + $0x88] sm:$0xf]
  %v1757 = vld [vmem:[%s394 + $0x8c] sm:$0x1]
  %v1759 = vshrl.u32 %v1726, 16
  %v1761 = vrot.slane %v1759, 4
  %v1762 = vshll.u32 %v1726, 16
  %v1764 = vrot.slane %v1762, 5
  %v1765 = vor.u32 %v1761, %v1764
  %v1766 = vrot.slane %v1765, 4
  %v1768 = vshll.u32 %v1727, 16
  %v1770 = vrot.slane %v1768, 5
  %v1771 = vsel %vm547, %v1766, %v1770
  %v1773 = vshrl.u32 %v1728, 16
  %v1775 = vrot.slane %v1773, 4
  %v1776 = vshll.u32 %v1728, 16
  %v1778 = vrot.slane %v1776, 5
  %v1779 = vor.u32 %v1775, %v1778
  %v1780 = vrot.slane %v1779, 4
  %v1782 = vshll.u32 %v1729, 16
  %v1784 = vrot.slane %v1782, 5
  %v1785 = vsel %vm547, %v1780, %v1784
  %v1787 = vshrl.u32 %v1730, 16
  %v1789 = vrot.slane %v1787, 4
  %v1790 = vshll.u32 %v1730, 16
  %v1792 = vrot.slane %v1790, 5
  %v1793 = vor.u32 %v1789, %v1792
  %v1794 = vrot.slane %v1793, 4
  %v1796 = vshll.u32 %v1731, 16
  %v1798 = vrot.slane %v1796, 5
  %v1799 = vsel %vm547, %v1794, %v1798
  %v1801 = vshrl.u32 %v1732, 16
  %v1803 = vrot.slane %v1801, 4
  %v1804 = vshll.u32 %v1732, 16
  %v1806 = vrot.slane %v1804, 5
  %v1807 = vor.u32 %v1803, %v1806
  %v1808 = vrot.slane %v1807, 4
  %v1810 = vshll.u32 %v1733, 16
  %v1812 = vrot.slane %v1810, 5
  %v1813 = vsel %vm547, %v1808, %v1812
  %v1815 = vshrl.u32 %v1734, 16
  %v1817 = vrot.slane %v1815, 4
  %v1818 = vshll.u32 %v1734, 16
  %v1820 = vrot.slane %v1818, 5
  %v1821 = vor.u32 %v1817, %v1820
  %v1822 = vrot.slane %v1821, 4
  %v1824 = vshll.u32 %v1735, 16
  %v1826 = vrot.slane %v1824, 5
  %v1827 = vsel %vm547, %v1822, %v1826
  %v1829 = vshrl.u32 %v1736, 16
  %v1831 = vrot.slane %v1829, 4
  %v1832 = vshll.u32 %v1736, 16
  %v1834 = vrot.slane %v1832, 5
  %v1835 = vor.u32 %v1831, %v1834
  %v1836 = vrot.slane %v1835, 4
  %v1838 = vshll.u32 %v1737, 16
  %v1840 = vrot.slane %v1838, 5
  %v1841 = vsel %vm547, %v1836, %v1840
  %v1843 = vshrl.u32 %v1738, 16
  %v1845 = vrot.slane %v1843, 4
  %v1846 = vshll.u32 %v1738, 16
  %v1848 = vrot.slane %v1846, 5
  %v1849 = vor.u32 %v1845, %v1848
  %v1850 = vrot.slane %v1849, 4
  %v1852 = vshll.u32 %v1739, 16
  %v1854 = vrot.slane %v1852, 5
  %v1855 = vsel %vm547, %v1850, %v1854
  %v1857 = vshrl.u32 %v1740, 16
  %v1859 = vrot.slane %v1857, 4
  %v1860 = vshll.u32 %v1740, 16
  %v1862 = vrot.slane %v1860, 5
  %v1863 = vor.u32 %v1859, %v1862
  %v1864 = vrot.slane %v1863, 4
  %v1866 = vshll.u32 %v1741, 16
  %v1868 = vrot.slane %v1866, 5
  %v1869 = vsel %vm547, %v1864, %v1868
  %v1871 = vshrl.u32 %v1742, 16
  %v1873 = vrot.slane %v1871, 4
  %v1874 = vshll.u32 %v1742, 16
  %v1876 = vrot.slane %v1874, 5
  %v1877 = vor.u32 %v1873, %v1876
  %v1878 = vrot.slane %v1877, 4
  %v1880 = vshll.u32 %v1743, 16
  %v1882 = vrot.slane %v1880, 5
  %v1883 = vsel %vm547, %v1878, %v1882
  %v1885 = vshrl.u32 %v1744, 16
  %v1887 = vrot.slane %v1885, 4
  %v1888 = vshll.u32 %v1744, 16
  %v1890 = vrot.slane %v1888, 5
  %v1891 = vor.u32 %v1887, %v1890
  %v1892 = vrot.slane %v1891, 4
  %v1894 = vshll.u32 %v1745, 16
  %v1896 = vrot.slane %v1894, 5
  %v1897 = vsel %vm547, %v1892, %v1896
  %v1899 = vshrl.u32 %v1746, 16
  %v1901 = vrot.slane %v1899, 4
  %v1902 = vshll.u32 %v1746, 16
  %v1904 = vrot.slane %v1902, 5
  %v1905 = vor.u32 %v1901, %v1904
  %v1906 = vrot.slane %v1905, 4
  %v1908 = vshll.u32 %v1747, 16
  %v1910 = vrot.slane %v1908, 5
  %v1911 = vsel %vm547, %v1906, %v1910
  %v1913 = vshrl.u32 %v1748, 16
  %v1915 = vrot.slane %v1913, 4
  %v1916 = vshll.u32 %v1748, 16
  %v1918 = vrot.slane %v1916, 5
  %v1919 = vor.u32 %v1915, %v1918
  %v1920 = vrot.slane %v1919, 4
  %v1922 = vshll.u32 %v1749, 16
  %v1924 = vrot.slane %v1922, 5
  %v1925 = vsel %vm547, %v1920, %v1924
  %v1927 = vshrl.u32 %v1750, 16
  %v1929 = vrot.slane %v1927, 4
  %v1930 = vshll.u32 %v1750, 16
  %v1932 = vrot.slane %v1930, 5
  %v1933 = vor.u32 %v1929, %v1932
  %v1934 = vrot.slane %v1933, 4
  %v1936 = vshll.u32 %v1751, 16
  %v1938 = vrot.slane %v1936, 5
  %v1939 = vsel %vm547, %v1934, %v1938
  %v1941 = vshrl.u32 %v1752, 16
  %v1943 = vrot.slane %v1941, 4
  %v1944 = vshll.u32 %v1752, 16
  %v1946 = vrot.slane %v1944, 5
  %v1947 = vor.u32 %v1943, %v1946
  %v1948 = vrot.slane %v1947, 4
  %v1950 = vshll.u32 %v1753, 16
  %v1952 = vrot.slane %v1950, 5
  %v1953 = vsel %vm547, %v1948, %v1952
  %v1955 = vshrl.u32 %v1754, 16
  %v1957 = vrot.slane %v1955, 4
  %v1958 = vshll.u32 %v1754, 16
  %v1960 = vrot.slane %v1958, 5
  %v1961 = vor.u32 %v1957, %v1960
  %v1962 = vrot.slane %v1961, 4
  %v1964 = vshll.u32 %v1755, 16
  %v1966 = vrot.slane %v1964, 5
  %v1967 = vsel %vm547, %v1962, %v1966
  %v1969 = vshrl.u32 %v1756, 16
  %v1971 = vrot.slane %v1969, 4
  %v1972 = vshll.u32 %v1756, 16
  %v1974 = vrot.slane %v1972, 5
  %v1975 = vor.u32 %v1971, %v1974
  %v1976 = vrot.slane %v1975, 4
  %v1978 = vshll.u32 %v1757, 16
  %v1980 = vrot.slane %v1978, 5
  %v1981 = vsel %vm547, %v1976, %v1980
  %s1982 = scalar_lea.vmem %s3, 256
  %v1983 = vld [vmem:[%s1982] sm:$0xf]
  %v1984 = vld [vmem:[%s1982 + $0x4] sm:$0xf]
  %v1985 = vld [vmem:[%s1982 + $0x8] sm:$0xf]
  %v1986 = vld [vmem:[%s1982 + $0xc] sm:$0xf]
  %v1987 = vld [vmem:[%s1982 + $0x10] sm:$0xf]
  %v1988 = vld [vmem:[%s1982 + $0x14] sm:$0xf]
  %v1989 = vld [vmem:[%s1982 + $0x18] sm:$0xf]
  %v1990 = vld [vmem:[%s1982 + $0x1c] sm:$0xf]
  %v1991 = vld [vmem:[%s1982 + $0x20] sm:$0xf]
  %v1992 = vld [vmem:[%s1982 + $0x24] sm:$0xf]
  %v1993 = vld [vmem:[%s1982 + $0x28] sm:$0xf]
  %v1994 = vld [vmem:[%s1982 + $0x2c] sm:$0xf]
  %v1995 = vld [vmem:[%s1982 + $0x30] sm:$0xf]
  %v1996 = vld [vmem:[%s1982 + $0x34] sm:$0xf]
  %v1997 = vld [vmem:[%s1982 + $0x38] sm:$0xf]
  %v1998 = vld [vmem:[%s1982 + $0x3c] sm:$0xf]
  %v1999 = vunpack.c.l.b16 %v1771
  %v2000 = vunpack.c.l.b16 %v1785
  %v2001 = vunpack.c.l.b16 %v1799
  %v2002 = vunpack.c.l.b16 %v1813
  %v2003 = vunpack.c.l.b16 %v1827
  %v2004 = vunpack.c.l.b16 %v1841
  %v2005 = vunpack.c.l.b16 %v1855
  %v2006 = vunpack.c.l.b16 %v1869
  %v2007 = vunpack.c.l.b16 %v1883
  %v2008 = vunpack.c.l.b16 %v1897
  %v2009 = vunpack.c.l.b16 %v1911
  %v2010 = vunpack.c.l.b16 %v1925
  %v2011 = vunpack.c.l.b16 %v1939
  %v2012 = vunpack.c.l.b16 %v1953
  %v2013 = vunpack.c.l.b16 %v1967
  %v2014 = vunpack.c.l.b16 %v1981
  %v2015 = vpack.c.b16 %v2000, %v1999
  %v2016 = vpack.c.b16 %v2002, %v2001
  %v2017 = vpack.c.b16 %v2004, %v2003
  %v2018 = vpack.c.b16 %v2006, %v2005
  %v2019 = vpack.c.b16 %v2008, %v2007
  %v2020 = vpack.c.b16 %v2010, %v2009
  %v2021 = vpack.c.b16 %v2012, %v2011
  %v2022 = vpack.c.b16 %v2014, %v2013
  %v2047 = vunpack.c.l.b16 %v1983
  %v2048 = vunpack.c.l.b16 %v1984
  %v2049 = vunpack.c.l.b16 %v1985
  %v2050 = vunpack.c.l.b16 %v1986
  %v2051 = vunpack.c.l.b16 %v1987
  %v2052 = vunpack.c.l.b16 %v1988
  %v2053 = vunpack.c.l.b16 %v1989
  %v2054 = vunpack.c.l.b16 %v1990
  %v2055 = vunpack.c.l.b16 %v1991
  %v2056 = vunpack.c.l.b16 %v1992
  %v2057 = vunpack.c.l.b16 %v1993
  %v2058 = vunpack.c.l.b16 %v1994
  %v2059 = vunpack.c.l.b16 %v1995
  %v2060 = vunpack.c.l.b16 %v1996
  %v2061 = vunpack.c.l.b16 %v1997
  %v2062 = vunpack.c.l.b16 %v1998
  %v2063 = vpack.c.b16 %v2048, %v2047
  %v2064 = vpack.c.b16 %v2050, %v2049
  %v2065 = vpack.c.b16 %v2052, %v2051
  %v2066 = vpack.c.b16 %v2054, %v2053
  %v2067 = vpack.c.b16 %v2056, %v2055
  %v2068 = vpack.c.b16 %v2058, %v2057
  %v2069 = vpack.c.b16 %v2060, %v2059
  %v2070 = vpack.c.b16 %v2062, %v2061
  %2079 = vmatprep.subr.bf16.mxu0 0
  %2080 = vmatpush1.bf16.msra.mxu0 %v2063
  %2081 = vmatprep.subr.bf16.mxu0 0
  %2082 = vmatpush1.bf16.msra.mxu0 %v2064
  %2083 = vmatprep.subr.bf16.mxu0 0
  %2084 = vmatpush1.bf16.msra.mxu0 %v2065
  %2085 = vmatprep.subr.bf16.mxu0 0
  %2086 = vmatpush1.bf16.msra.mxu0 %v2066
  %2087 = vmatprep.subr.bf16.mxu0 0
  %2088 = vmatpush1.bf16.msra.mxu0 %v2067
  %2089 = vmatprep.subr.bf16.mxu0 0
  %2090 = vmatpush1.bf16.msra.mxu0 %v2068
  %2091 = vmatprep.subr.bf16.mxu0 0
  %2092 = vmatpush1.bf16.msra.mxu0 %v2069
  %2093 = vmatprep.subr.bf16.mxu0 0
  %2094 = vmatpush1.bf16.msra.mxu0 %v2070
  %2095 = vmatprep.subr.bf16.mxu0 0
  %2096 = vmatpush1.bf16.msra.mxu0 0
  %2097 = vmatprep.subr.bf16.mxu0 0
  %2098 = vmatpush1.bf16.msra.mxu0 0
  %2099 = vmatprep.subr.bf16.mxu0 0
  %2100 = vmatpush1.bf16.msra.mxu0 0
  %2101 = vmatprep.subr.bf16.mxu0 0
  %2102 = vmatpush1.bf16.msra.mxu0 0
  %2103 = vmatprep.subr.bf16.mxu0 0
  %2104 = vmatpush1.bf16.msra.mxu0 0
  %2105 = vmatprep.subr.bf16.mxu0 0
  %2106 = vmatpush1.bf16.msra.mxu0 0
  %2107 = vmatprep.subr.bf16.mxu0 0
  %2108 = vmatpush1.bf16.msra.mxu0 0
  %2109 = vmatprep.subr.bf16.mxu0 0
  %2110 = vmatpush1.bf16.msra.mxu0 0
  %2111 = vmatprep.mubr.bf16.mxu0 0
  %2112 = vmatmul.mubr.bf16.gmra.mrb[0].mxu0 %v2015
  %v2113 = vpop.f32.mrb[0].mxu0
  %v2114 = vadd.f32 0.0, %v2113
  %v2115 = vpop.f32.mrb[0].mxu0
  %v2116 = vpop.f32.mrb[0].mxu0
  %v2117 = vadd.f32 0.0, %v2116
  %v2118 = vpop.f32.mrb[0].mxu0
  %2119 = vmatprep.mubr.bf16.mxu0 0
  %2120 = vmatmul.mubr.bf16.gmra.mrb[0].mxu0 %v2016
  %v2121 = vpop.f32.mrb[0].mxu0
  %v2122 = vadd.f32 0.0, %v2121
  %v2123 = vpop.f32.mrb[0].mxu0
  %v2124 = vpop.f32.mrb[0].mxu0
  %v2125 = vadd.f32 0.0, %v2124
  %v2126 = vpop.f32.mrb[0].mxu0
  %2127 = vmatprep.mubr.bf16.mxu0 0
  %2128 = vmatmul.mubr.bf16.gmra.mrb[0].mxu0 %v2017
  %v2129 = vpop.f32.mrb[0].mxu0
  %v2130 = vadd.f32 0.0, %v2129
  %v2131 = vpop.f32.mrb[0].mxu0
  %v2132 = vpop.f32.mrb[0].mxu0
  %v2133 = vadd.f32 0.0, %v2132
  %v2134 = vpop.f32.mrb[0].mxu0
  %2135 = vmatprep.mubr.bf16.mxu0 0
  %2136 = vmatmul.mubr.bf16.gmra.mrb[0].mxu0 %v2018
  %v2137 = vpop.f32.mrb[0].mxu0
  %v2138 = vadd.f32 0.0, %v2137
  %v2139 = vpop.f32.mrb[0].mxu0
  %v2140 = vpop.f32.mrb[0].mxu0
  %v2141 = vadd.f32 0.0, %v2140
  %v2142 = vpop.f32.mrb[0].mxu0
  %2143 = vmatprep.mubr.bf16.mxu0 0
  %2144 = vmatmul.mubr.bf16.gmra.mrb[0].mxu0 %v2019
  %v2145 = vpop.f32.mrb[0].mxu0
  %v2146 = vadd.f32 0.0, %v2145
  %v2147 = vpop.f32.mrb[0].mxu0
  %v2148 = vpop.f32.mrb[0].mxu0
  %v2149 = vadd.f32 0.0, %v2148
  %v2150 = vpop.f32.mrb[0].mxu0
  %2151 = vmatprep.mubr.bf16.mxu0 0
  %2152 = vmatmul.mubr.bf16.gmra.mrb[0].mxu0 %v2020
  %v2153 = vpop.f32.mrb[0].mxu0
  %v2154 = vadd.f32 0.0, %v2153
  %v2155 = vpop.f32.mrb[0].mxu0
  %v2156 = vpop.f32.mrb[0].mxu0
  %v2157 = vadd.f32 0.0, %v2156
  %v2158 = vpop.f32.mrb[0].mxu0
  %2159 = vmatprep.mubr.bf16.mxu0 0
  %2160 = vmatmul.mubr.bf16.gmra.mrb[0].mxu0 %v2021
  %v2161 = vpop.f32.mrb[0].mxu0
  %v2162 = vadd.f32 0.0, %v2161
  %v2163 = vpop.f32.mrb[0].mxu0
  %v2164 = vpop.f32.mrb[0].mxu0
  %v2165 = vadd.f32 0.0, %v2164
  %v2166 = vpop.f32.mrb[0].mxu0
  %2167 = vmatprep.mubr.bf16.mxu0 0
  %2168 = vmatmul.mubr.bf16.gmra.mrb[0].mxu0 %v2022
  %v2169 = vpop.f32.mrb[0].mxu0
  %v2170 = vadd.f32 0.0, %v2169
  %v2171 = vpop.f32.mrb[0].mxu0
  %v2172 = vpop.f32.mrb[0].mxu0
  %v2173 = vadd.f32 0.0, %v2172
  %v2174 = vpop.f32.mrb[0].mxu0
  %2175 = vdwg.mxu0
  %v2176 = vadd.f32 %v1710, %v2114
  %v2177 = vadd.f32 %v1711, %v2117
  %v2178 = vadd.f32 %v1712, %v2122
  %v2179 = vadd.f32 %v1713, %v2125
  %v2180 = vadd.f32 %v1714, %v2130
  %v2181 = vadd.f32 %v1715, %v2133
  %v2182 = vadd.f32 %v1716, %v2138
  %v2183 = vadd.f32 %v1717, %v2141
  %v2184 = vadd.f32 %v1718, %v2146
  %v2185 = vadd.f32 %v1719, %v2149
  %v2186 = vadd.f32 %v1720, %v2154
  %v2187 = vadd.f32 %v1721, %v2157
  %v2188 = vadd.f32 %v1722, %v2162
  %v2189 = vadd.f32 %v1723, %v2165
  %v2190 = vadd.f32 %v1724, %v2170
  %v2191 = vadd.f32 %v1725, %v2173
  %v2192 = vld [vmem:[%s394] sm:$0xe]
  %v2193 = vld [vmem:[%s394 + $0x8] sm:$0xe]
  %v2194 = vld [vmem:[%s394 + $0x10] sm:$0xe]
  %v2195 = vld [vmem:[%s394 + $0x18] sm:$0xe]
  %v2196 = vld [vmem:[%s394 + $0x20] sm:$0xe]
  %v2197 = vld [vmem:[%s394 + $0x28] sm:$0xe]
  %v2198 = vld [vmem:[%s394 + $0x30] sm:$0xe]
  %v2199 = vld [vmem:[%s394 + $0x38] sm:$0xe]
  %v2200 = vld [vmem:[%s394 + $0x50] sm:$0xe]
  %v2201 = vld [vmem:[%s394 + $0x58] sm:$0xe]
  %v2202 = vld [vmem:[%s394 + $0x60] sm:$0xe]
  %v2203 = vld [vmem:[%s394 + $0x68] sm:$0xe]
  %v2204 = vld [vmem:[%s394 + $0x70] sm:$0xe]
  %v2205 = vld [vmem:[%s394 + $0x78] sm:$0xe]
  %v2206 = vld [vmem:[%s394 + $0x80] sm:$0xe]
  %v2207 = vld [vmem:[%s394 + $0x88] sm:$0xe]
  %v2240 = vrot.slane %v2192, 5
  %v2241 = vrot.slane %v2240, 4
  %v2242 = vrot.slane %v1727, 5
  %v2243 = vsel %vm1209, %v2241, %v2242
  %v2244 = vrot.slane %v2193, 5
  %v2245 = vrot.slane %v2244, 4
  %v2246 = vrot.slane %v1729, 5
  %v2247 = vsel %vm1209, %v2245, %v2246
  %v2248 = vrot.slane %v2194, 5
  %v2249 = vrot.slane %v2248, 4
  %v2250 = vrot.slane %v1731, 5
  %v2251 = vsel %vm1209, %v2249, %v2250
  %v2252 = vrot.slane %v2195, 5
  %v2253 = vrot.slane %v2252, 4
  %v2254 = vrot.slane %v1733, 5
  %v2255 = vsel %vm1209, %v2253, %v2254
  %v2256 = vrot.slane %v2196, 5
  %v2257 = vrot.slane %v2256, 4
  %v2258 = vrot.slane %v1735, 5
  %v2259 = vsel %vm1209, %v2257, %v2258
  %v2260 = vrot.slane %v2197, 5
  %v2261 = vrot.slane %v2260, 4
  %v2262 = vrot.slane %v1737, 5
  %v2263 = vsel %vm1209, %v2261, %v2262
  %v2264 = vrot.slane %v2198, 5
  %v2265 = vrot.slane %v2264, 4
  %v2266 = vrot.slane %v1739, 5
  %v2267 = vsel %vm1209, %v2265, %v2266
  %v2268 = vrot.slane %v2199, 5
  %v2269 = vrot.slane %v2268, 4
  %v2270 = vrot.slane %v1741, 5
  %v2271 = vsel %vm1209, %v2269, %v2270
  %v2272 = vrot.slane %v2200, 5
  %v2273 = vrot.slane %v2272, 4
  %v2274 = vrot.slane %v1743, 5
  %v2275 = vsel %vm1209, %v2273, %v2274
  %v2276 = vrot.slane %v2201, 5
  %v2277 = vrot.slane %v2276, 4
  %v2278 = vrot.slane %v1745, 5
  %v2279 = vsel %vm1209, %v2277, %v2278
  %v2280 = vrot.slane %v2202, 5
  %v2281 = vrot.slane %v2280, 4
  %v2282 = vrot.slane %v1747, 5
  %v2283 = vsel %vm1209, %v2281, %v2282
  %v2284 = vrot.slane %v2203, 5
  %v2285 = vrot.slane %v2284, 4
  %v2286 = vrot.slane %v1749, 5
  %v2287 = vsel %vm1209, %v2285, %v2286
  %v2288 = vrot.slane %v2204, 5
  %v2289 = vrot.slane %v2288, 4
  %v2290 = vrot.slane %v1751, 5
  %v2291 = vsel %vm1209, %v2289, %v2290
  %v2292 = vrot.slane %v2205, 5
  %v2293 = vrot.slane %v2292, 4
  %v2294 = vrot.slane %v1753, 5
  %v2295 = vsel %vm1209, %v2293, %v2294
  %v2296 = vrot.slane %v2206, 5
  %v2297 = vrot.slane %v2296, 4
  %v2298 = vrot.slane %v1755, 5
  %v2299 = vsel %vm1209, %v2297, %v2298
  %v2300 = vrot.slane %v2207, 5
  %v2301 = vrot.slane %v2300, 4
  %v2302 = vrot.slane %v1757, 5
  %v2303 = vsel %vm1209, %v2301, %v2302
  %s2304 = scalar_lea.vmem %s3, 320
  %v2305 = vld [vmem:[%s2304] sm:$0xf]
  %v2306 = vld [vmem:[%s2304 + $0x4] sm:$0xf]
  %v2307 = vld [vmem:[%s2304 + $0x8] sm:$0xf]
  %v2308 = vld [vmem:[%s2304 + $0xc] sm:$0xf]
  %v2309 = vld [vmem:[%s2304 + $0x10] sm:$0xf]
  %v2310 = vld [vmem:[%s2304 + $0x14] sm:$0xf]
  %v2311 = vld [vmem:[%s2304 + $0x18] sm:$0xf]
  %v2312 = vld [vmem:[%s2304 + $0x1c] sm:$0xf]
  %v2313 = vld [vmem:[%s2304 + $0x20] sm:$0xf]
  %v2314 = vld [vmem:[%s2304 + $0x24] sm:$0xf]
  %v2315 = vld [vmem:[%s2304 + $0x28] sm:$0xf]
  %v2316 = vld [vmem:[%s2304 + $0x2c] sm:$0xf]
  %v2317 = vld [vmem:[%s2304 + $0x30] sm:$0xf]
  %v2318 = vld [vmem:[%s2304 + $0x34] sm:$0xf]
  %v2319 = vld [vmem:[%s2304 + $0x38] sm:$0xf]
  %v2320 = vld [vmem:[%s2304 + $0x3c] sm:$0xf]
  %v2321 = vunpack.c.l.b16 %v2243
  %v2322 = vunpack.c.l.b16 %v2247
  %v2323 = vunpack.c.l.b16 %v2251
  %v2324 = vunpack.c.l.b16 %v2255
  %v2325 = vunpack.c.l.b16 %v2259
  %v2326 = vunpack.c.l.b16 %v2263
  %v2327 = vunpack.c.l.b16 %v2267
  %v2328 = vunpack.c.l.b16 %v2271
  %v2329 = vunpack.c.l.b16 %v2275
  %v2330 = vunpack.c.l.b16 %v2279
  %v2331 = vunpack.c.l.b16 %v2283
  %v2332 = vunpack.c.l.b16 %v2287
  %v2333 = vunpack.c.l.b16 %v2291
  %v2334 = vunpack.c.l.b16 %v2295
  %v2335 = vunpack.c.l.b16 %v2299
  %v2336 = vunpack.c.l.b16 %v2303
  %v2337 = vpack.c.b16 %v2322, %v2321
  %v2338 = vpack.c.b16 %v2324, %v2323
  %v2339 = vpack.c.b16 %v2326, %v2325
  %v2340 = vpack.c.b16 %v2328, %v2327
  %v2341 = vpack.c.b16 %v2330, %v2329
  %v2342 = vpack.c.b16 %v2332, %v2331
  %v2343 = vpack.c.b16 %v2334, %v2333
  %v2344 = vpack.c.b16 %v2336, %v2335
  %v2369 = vunpack.c.l.b16 %v2305
  %v2370 = vunpack.c.l.b16 %v2306
  %v2371 = vunpack.c.l.b16 %v2307
  %v2372 = vunpack.c.l.b16 %v2308
  %v2373 = vunpack.c.l.b16 %v2309
  %v2374 = vunpack.c.l.b16 %v2310
  %v2375 = vunpack.c.l.b16 %v2311
  %v2376 = vunpack.c.l.b16 %v2312
  %v2377 = vunpack.c.l.b16 %v2313
  %v2378 = vunpack.c.l.b16 %v2314
  %v2379 = vunpack.c.l.b16 %v2315
  %v2380 = vunpack.c.l.b16 %v2316
  %v2381 = vunpack.c.l.b16 %v2317
  %v2382 = vunpack.c.l.b16 %v2318
  %v2383 = vunpack.c.l.b16 %v2319
  %v2384 = vunpack.c.l.b16 %v2320
  %v2385 = vpack.c.b16 %v2370, %v2369
  %v2386 = vpack.c.b16 %v2372, %v2371
  %v2387 = vpack.c.b16 %v2374, %v2373
  %v2388 = vpack.c.b16 %v2376, %v2375
  %v2389 = vpack.c.b16 %v2378, %v2377
  %v2390 = vpack.c.b16 %v2380, %v2379
  %v2391 = vpack.c.b16 %v2382, %v2381
  %v2392 = vpack.c.b16 %v2384, %v2383
  %2401 = vmatprep.subr.bf16.mxu0 0
  %2402 = vmatpush1.bf16.msra.mxu0 %v2385
  %2403 = vmatprep.subr.bf16.mxu0 0
  %2404 = vmatpush1.bf16.msra.mxu0 %v2386
  %2405 = vmatprep.subr.bf16.mxu0 0
  %2406 = vmatpush1.bf16.msra.mxu0 %v2387
  %2407 = vmatprep.subr.bf16.mxu0 0
  %2408 = vmatpush1.bf16.msra.mxu0 %v2388
  %2409 = vmatprep.subr.bf16.mxu0 0
  %2410 = vmatpush1.bf16.msra.mxu0 %v2389
  %2411 = vmatprep.subr.bf16.mxu0 0
  %2412 = vmatpush1.bf16.msra.mxu0 %v2390
  %2413 = vmatprep.subr.bf16.mxu0 0
  %2414 = vmatpush1.bf16.msra.mxu0 %v2391
  %2415 = vmatprep.subr.bf16.mxu0 0
  %2416 = vmatpush1.bf16.msra.mxu0 %v2392
  %2417 = vmatprep.subr.bf16.mxu0 0
  %2418 = vmatpush1.bf16.msra.mxu0 0
  %2419 = vmatprep.subr.bf16.mxu0 0
  %2420 = vmatpush1.bf16.msra.mxu0 0
  %2421 = vmatprep.subr.bf16.mxu0 0
  %2422 = vmatpush1.bf16.msra.mxu0 0
  %2423 = vmatprep.subr.bf16.mxu0 0
  %2424 = vmatpush1.bf16.msra.mxu0 0
  %2425 = vmatprep.subr.bf16.mxu0 0
  %2426 = vmatpush1.bf16.msra.mxu0 0
  %2427 = vmatprep.subr.bf16.mxu0 0
  %2428 = vmatpush1.bf16.msra.mxu0 0
  %2429 = vmatprep.subr.bf16.mxu0 0
  %2430 = vmatpush1.bf16.msra.mxu0 0
  %2431 = vmatprep.subr.bf16.mxu0 0
  %2432 = vmatpush1.bf16.msra.mxu0 0
  %2433 = vmatprep.mubr.bf16.mxu0 0
  %2434 = vmatmul.mubr.bf16.gmra.mrb[0].mxu0 %v2337
  %v2435 = vpop.f32.mrb[0].mxu0
  %v2436 = vadd.f32 0.0, %v2435
  %v2437 = vpop.f32.mrb[0].mxu0
  %v2438 = vpop.f32.mrb[0].mxu0
  %v2439 = vadd.f32 0.0, %v2438
  %v2440 = vpop.f32.mrb[0].mxu0
  %2441 = vmatprep.mubr.bf16.mxu0 0
  %2442 = vmatmul.mubr.bf16.gmra.mrb[0].mxu0 %v2338
  %v2443 = vpop.f32.mrb[0].mxu0
  %v2444 = vadd.f32 0.0, %v2443
  %v2445 = vpop.f32.mrb[0].mxu0
  %v2446 = vpop.f32.mrb[0].mxu0
  %v2447 = vadd.f32 0.0, %v2446
  %v2448 = vpop.f32.mrb[0].mxu0
  %2449 = vmatprep.mubr.bf16.mxu0 0
  %2450 = vmatmul.mubr.bf16.gmra.mrb[0].mxu0 %v2339
  %v2451 = vpop.f32.mrb[0].mxu0
  %v2452 = vadd.f32 0.0, %v2451
  %v2453 = vpop.f32.mrb[0].mxu0
  %v2454 = vpop.f32.mrb[0].mxu0
  %v2455 = vadd.f32 0.0, %v2454
  %v2456 = vpop.f32.mrb[0].mxu0
  %2457 = vmatprep.mubr.bf16.mxu0 0
  %2458 = vmatmul.mubr.bf16.gmra.mrb[0].mxu0 %v2340
  %v2459 = vpop.f32.mrb[0].mxu0
  %v2460 = vadd.f32 0.0, %v2459
  %v2461 = vpop.f32.mrb[0].mxu0
  %v2462 = vpop.f32.mrb[0].mxu0
  %v2463 = vadd.f32 0.0, %v2462
  %v2464 = vpop.f32.mrb[0].mxu0
  %2465 = vmatprep.mubr.bf16.mxu0 0
  %2466 = vmatmul.mubr.bf16.gmra.mrb[0].mxu0 %v2341
  %v2467 = vpop.f32.mrb[0].mxu0
  %v2468 = vadd.f32 0.0, %v2467
  %v2469 = vpop.f32.mrb[0].mxu0
  %v2470 = vpop.f32.mrb[0].mxu0
  %v2471 = vadd.f32 0.0, %v2470
  %v2472 = vpop.f32.mrb[0].mxu0
  %2473 = vmatprep.mubr.bf16.mxu0 0
  %2474 = vmatmul.mubr.bf16.gmra.mrb[0].mxu0 %v2342
  %v2475 = vpop.f32.mrb[0].mxu0
  %v2476 = vadd.f32 0.0, %v2475
  %v2477 = vpop.f32.mrb[0].mxu0
  %v2478 = vpop.f32.mrb[0].mxu0
  %v2479 = vadd.f32 0.0, %v2478
  %v2480 = vpop.f32.mrb[0].mxu0
  %2481 = vmatprep.mubr.bf16.mxu0 0
  %2482 = vmatmul.mubr.bf16.gmra.mrb[0].mxu0 %v2343
  %v2483 = vpop.f32.mrb[0].mxu0
  %v2484 = vadd.f32 0.0, %v2483
  %v2485 = vpop.f32.mrb[0].mxu0
  %v2486 = vpop.f32.mrb[0].mxu0
  %v2487 = vadd.f32 0.0, %v2486
  %v2488 = vpop.f32.mrb[0].mxu0
  %2489 = vmatprep.mubr.bf16.mxu0 0
  %2490 = vmatmul.mubr.bf16.gmra.mrb[0].mxu0 %v2344
  %v2491 = vpop.f32.mrb[0].mxu0
  %v2492 = vadd.f32 0.0, %v2491
  %v2493 = vpop.f32.mrb[0].mxu0
  %v2494 = vpop.f32.mrb[0].mxu0
  %v2495 = vadd.f32 0.0, %v2494
  %v2496 = vpop.f32.mrb[0].mxu0
  %2497 = vdwg.mxu0
  %v2498 = vadd.f32 %v2176, %v2436
  %v2499 = vadd.f32 %v2177, %v2439
  %v2500 = vadd.f32 %v2178, %v2444
  %v2501 = vadd.f32 %v2179, %v2447
  %v2502 = vadd.f32 %v2180, %v2452
  %v2503 = vadd.f32 %v2181, %v2455
  %v2504 = vadd.f32 %v2182, %v2460
  %v2505 = vadd.f32 %v2183, %v2463
  %v2506 = vadd.f32 %v2184, %v2468
  %v2507 = vadd.f32 %v2185, %v2471
  %v2508 = vadd.f32 %v2186, %v2476
  %v2509 = vadd.f32 %v2187, %v2479
  %v2510 = vadd.f32 %v2188, %v2484
  %v2511 = vadd.f32 %v2189, %v2487
  %v2512 = vadd.f32 %v2190, %v2492
  %v2513 = vadd.f32 %v2191, %v2495
  %s2514 = scalar_lea.vmem [#allocation2], 16
  %v2515 = vld [vmem:[%s2514] sm:$0xf]
  %v2516 = vld [vmem:[%s2514 + $0x8] sm:$0xf]
  %v2517 = vld [vmem:[%s2514 + $0x10] sm:$0xf]
  %v2518 = vld [vmem:[%s2514 + $0x18] sm:$0xf]
  %v2519 = vld [vmem:[%s2514 + $0x20] sm:$0xf]
  %v2520 = vld [vmem:[%s2514 + $0x28] sm:$0xf]
  %v2521 = vld [vmem:[%s2514 + $0x30] sm:$0xf]
  %v2522 = vld [vmem:[%s2514 + $0x38] sm:$0xf]
  %v2523 = vld [vmem:[%s2514 + $0x50] sm:$0xf]
  %v2524 = vld [vmem:[%s2514 + $0x58] sm:$0xf]
  %v2525 = vld [vmem:[%s2514 + $0x60] sm:$0xf]
  %v2526 = vld [vmem:[%s2514 + $0x68] sm:$0xf]
  %v2527 = vld [vmem:[%s2514 + $0x70] sm:$0xf]
  %v2528 = vld [vmem:[%s2514 + $0x78] sm:$0xf]
  %v2529 = vld [vmem:[%s2514 + $0x80] sm:$0xf]
  %v2530 = vld [vmem:[%s2514 + $0x88] sm:$0xf]
  %s2531 = scalar_lea.vmem %s3, 384
  %v2532 = vld [vmem:[%s2531] sm:$0xf]
  %v2533 = vld [vmem:[%s2531 + $0x4] sm:$0xf]
  %v2534 = vld [vmem:[%s2531 + $0x8] sm:$0xf]
  %v2535 = vld [vmem:[%s2531 + $0xc] sm:$0xf]
  %v2536 = vld [vmem:[%s2531 + $0x10] sm:$0xf]
  %v2537 = vld [vmem:[%s2531 + $0x14] sm:$0xf]
  %v2538 = vld [vmem:[%s2531 + $0x18] sm:$0xf]
  %v2539 = vld [vmem:[%s2531 + $0x1c] sm:$0xf]
  %v2540 = vld [vmem:[%s2531 + $0x20] sm:$0xf]
  %v2541 = vld [vmem:[%s2531 + $0x24] sm:$0xf]
  %v2542 = vld [vmem:[%s2531 + $0x28] sm:$0xf]
  %v2543 = vld [vmem:[%s2531 + $0x2c] sm:$0xf]
  %v2544 = vld [vmem:[%s2531 + $0x30] sm:$0xf]
  %v2545 = vld [vmem:[%s2531 + $0x34] sm:$0xf]
  %v2546 = vld [vmem:[%s2531 + $0x38] sm:$0xf]
  %v2547 = vld [vmem:[%s2531 + $0x3c] sm:$0xf]
  %v2564 = vunpack.c.l.b16 %v2515
  %v2565 = vunpack.c.l.b16 %v2516
  %v2566 = vunpack.c.l.b16 %v2517
  %v2567 = vunpack.c.l.b16 %v2518
  %v2568 = vunpack.c.l.b16 %v2519
  %v2569 = vunpack.c.l.b16 %v2520
  %v2570 = vunpack.c.l.b16 %v2521
  %v2571 = vunpack.c.l.b16 %v2522
  %v2572 = vunpack.c.l.b16 %v2523
  %v2573 = vunpack.c.l.b16 %v2524
  %v2574 = vunpack.c.l.b16 %v2525
  %v2575 = vunpack.c.l.b16 %v2526
  %v2576 = vunpack.c.l.b16 %v2527
  %v2577 = vunpack.c.l.b16 %v2528
  %v2578 = vunpack.c.l.b16 %v2529
  %v2579 = vunpack.c.l.b16 %v2530
  %v2580 = vpack.c.b16 %v2565, %v2564
  %v2581 = vpack.c.b16 %v2567, %v2566
  %v2582 = vpack.c.b16 %v2569, %v2568
  %v2583 = vpack.c.b16 %v2571, %v2570
  %v2584 = vpack.c.b16 %v2573, %v2572
  %v2585 = vpack.c.b16 %v2575, %v2574
  %v2586 = vpack.c.b16 %v2577, %v2576
  %v2587 = vpack.c.b16 %v2579, %v2578
  %v2612 = vunpack.c.l.b16 %v2532
  %v2613 = vunpack.c.l.b16 %v2533
  %v2614 = vunpack.c.l.b16 %v2534
  %v2615 = vunpack.c.l.b16 %v2535
  %v2616 = vunpack.c.l.b16 %v2536
  %v2617 = vunpack.c.l.b16 %v2537
  %v2618 = vunpack.c.l.b16 %v2538
  %v2619 = vunpack.c.l.b16 %v2539
  %v2620 = vunpack.c.l.b16 %v2540
  %v2621 = vunpack.c.l.b16 %v2541
  %v2622 = vunpack.c.l.b16 %v2542
  %v2623 = vunpack.c.l.b16 %v2543
  %v2624 = vunpack.c.l.b16 %v2544
  %v2625 = vunpack.c.l.b16 %v2545
  %v2626 = vunpack.c.l.b16 %v2546
  %v2627 = vunpack.c.l.b16 %v2547
  %v2628 = vpack.c.b16 %v2613, %v2612
  %v2629 = vpack.c.b16 %v2615, %v2614
  %v2630 = vpack.c.b16 %v2617, %v2616
  %v2631 = vpack.c.b16 %v2619, %v2618
  %v2632 = vpack.c.b16 %v2621, %v2620
  %v2633 = vpack.c.b16 %v2623, %v2622
  %v2634 = vpack.c.b16 %v2625, %v2624
  %v2635 = vpack.c.b16 %v2627, %v2626
  %2644 = vmatprep.subr.bf16.mxu0 0
  %2645 = vmatpush1.bf16.msra.mxu0 %v2628
  %2646 = vmatprep.subr.bf16.mxu0 0
  %2647 = vmatpush1.bf16.msra.mxu0 %v2629
  %2648 = vmatprep.subr.bf16.mxu0 0
  %2649 = vmatpush1.bf16.msra.mxu0 %v2630
  %2650 = vmatprep.subr.bf16.mxu0 0
  %2651 = vmatpush1.bf16.msra.mxu0 %v2631
  %2652 = vmatprep.subr.bf16.mxu0 0
  %2653 = vmatpush1.bf16.msra.mxu0 %v2632
  %2654 = vmatprep.subr.bf16.mxu0 0
  %2655 = vmatpush1.bf16.msra.mxu0 %v2633
  %2656 = vmatprep.subr.bf16.mxu0 0
  %2657 = vmatpush1.bf16.msra.mxu0 %v2634
  %2658 = vmatprep.subr.bf16.mxu0 0
  %2659 = vmatpush1.bf16.msra.mxu0 %v2635
  %2660 = vmatprep.subr.bf16.mxu0 0
  %2661 = vmatpush1.bf16.msra.mxu0 0
  %2662 = vmatprep.subr.bf16.mxu0 0
  %2663 = vmatpush1.bf16.msra.mxu0 0
  %2664 = vmatprep.subr.bf16.mxu0 0
  %2665 = vmatpush1.bf16.msra.mxu0 0
  %2666 = vmatprep.subr.bf16.mxu0 0
  %2667 = vmatpush1.bf16.msra.mxu0 0
  %2668 = vmatprep.subr.bf16.mxu0 0
  %2669 = vmatpush1.bf16.msra.mxu0 0
  %2670 = vmatprep.subr.bf16.mxu0 0
  %2671 = vmatpush1.bf16.msra.mxu0 0
  %2672 = vmatprep.subr.bf16.mxu0 0
  %2673 = vmatpush1.bf16.msra.mxu0 0
  %2674 = vmatprep.subr.bf16.mxu0 0
  %2675 = vmatpush1.bf16.msra.mxu0 0
  %2676 = vmatprep.mubr.bf16.mxu0 0
  %2677 = vmatmul.mubr.bf16.gmra.mrb[0].mxu0 %v2580
  %v2678 = vpop.f32.mrb[0].mxu0
  %v2679 = vadd.f32 0.0, %v2678
  %v2680 = vpop.f32.mrb[0].mxu0
  %v2681 = vpop.f32.mrb[0].mxu0
  %v2682 = vadd.f32 0.0, %v2681
  %v2683 = vpop.f32.mrb[0].mxu0
  %2684 = vmatprep.mubr.bf16.mxu0 0
  %2685 = vmatmul.mubr.bf16.gmra.mrb[0].mxu0 %v2581
  %v2686 = vpop.f32.mrb[0].mxu0
  %v2687 = vadd.f32 0.0, %v2686
  %v2688 = vpop.f32.mrb[0].mxu0
  %v2689 = vpop.f32.mrb[0].mxu0
  %v2690 = vadd.f32 0.0, %v2689
  %v2691 = vpop.f32.mrb[0].mxu0
  %2692 = vmatprep.mubr.bf16.mxu0 0
  %2693 = vmatmul.mubr.bf16.gmra.mrb[0].mxu0 %v2582
  %v2694 = vpop.f32.mrb[0].mxu0
  %v2695 = vadd.f32 0.0, %v2694
  %v2696 = vpop.f32.mrb[0].mxu0
  %v2697 = vpop.f32.mrb[0].mxu0
  %v2698 = vadd.f32 0.0, %v2697
  %v2699 = vpop.f32.mrb[0].mxu0
  %2700 = vmatprep.mubr.bf16.mxu0 0
  %2701 = vmatmul.mubr.bf16.gmra.mrb[0].mxu0 %v2583
  %v2702 = vpop.f32.mrb[0].mxu0
  %v2703 = vadd.f32 0.0, %v2702
  %v2704 = vpop.f32.mrb[0].mxu0
  %v2705 = vpop.f32.mrb[0].mxu0
  %v2706 = vadd.f32 0.0, %v2705
  %v2707 = vpop.f32.mrb[0].mxu0
  %2708 = vmatprep.mubr.bf16.mxu0 0
  %2709 = vmatmul.mubr.bf16.gmra.mrb[0].mxu0 %v2584
  %v2710 = vpop.f32.mrb[0].mxu0
  %v2711 = vadd.f32 0.0, %v2710
  %v2712 = vpop.f32.mrb[0].mxu0
  %v2713 = vpop.f32.mrb[0].mxu0
  %v2714 = vadd.f32 0.0, %v2713
  %v2715 = vpop.f32.mrb[0].mxu0
  %2716 = vmatprep.mubr.bf16.mxu0 0
  %2717 = vmatmul.mubr.bf16.gmra.mrb[0].mxu0 %v2585
  %v2718 = vpop.f32.mrb[0].mxu0
  %v2719 = vadd.f32 0.0, %v2718
  %v2720 = vpop.f32.mrb[0].mxu0
  %v2721 = vpop.f32.mrb[0].mxu0
  %v2722 = vadd.f32 0.0, %v2721
  %v2723 = vpop.f32.mrb[0].mxu0
  %2724 = vmatprep.mubr.bf16.mxu0 0
  %2725 = vmatmul.mubr.bf16.gmra.mrb[0].mxu0 %v2586
  %v2726 = vpop.f32.mrb[0].mxu0
  %v2727 = vadd.f32 0.0, %v2726
  %v2728 = vpop.f32.mrb[0].mxu0
  %v2729 = vpop.f32.mrb[0].mxu0
  %v2730 = vadd.f32 0.0, %v2729
  %v2731 = vpop.f32.mrb[0].mxu0
  %2732 = vmatprep.mubr.bf16.mxu0 0
  %2733 = vmatmul.mubr.bf16.gmra.mrb[0].mxu0 %v2587
  %v2734 = vpop.f32.mrb[0].mxu0
  %v2735 = vadd.f32 0.0, %v2734
  %v2736 = vpop.f32.mrb[0].mxu0
  %v2737 = vpop.f32.mrb[0].mxu0
  %v2738 = vadd.f32 0.0, %v2737
  %v2739 = vpop.f32.mrb[0].mxu0
  %2740 = vdwg.mxu0
  %v2741 = vadd.f32 %v2498, %v2679
  %v2742 = vadd.f32 %v2499, %v2682
  %v2743 = vadd.f32 %v2500, %v2687
  %v2744 = vadd.f32 %v2501, %v2690
  %v2745 = vadd.f32 %v2502, %v2695
  %v2746 = vadd.f32 %v2503, %v2698
  %v2747 = vadd.f32 %v2504, %v2703
  %v2748 = vadd.f32 %v2505, %v2706
  %v2749 = vadd.f32 %v2506, %v2711
  %v2750 = vadd.f32 %v2507, %v2714
  %v2751 = vadd.f32 %v2508, %v2719
  %v2752 = vadd.f32 %v2509, %v2722
  %v2753 = vadd.f32 %v2510, %v2727
  %v2754 = vadd.f32 %v2511, %v2730
  %v2755 = vadd.f32 %v2512, %v2735
  %v2756 = vadd.f32 %v2513, %v2738
  %v2757 = vld [vmem:[%s2514] sm:$0xf]
  %v2758 = vld [vmem:[%s2514 + $0x4] sm:$0x1]
  %v2759 = vld [vmem:[%s2514 + $0x8] sm:$0xf]
  %v2760 = vld [vmem:[%s2514 + $0xc] sm:$0x1]
  %v2761 = vld [vmem:[%s2514 + $0x10] sm:$0xf]
  %v2762 = vld [vmem:[%s2514 + $0x14] sm:$0x1]
  %v2763 = vld [vmem:[%s2514 + $0x18] sm:$0xf]
  %v2764 = vld [vmem:[%s2514 + $0x1c] sm:$0x1]
  %v2765 = vld [vmem:[%s2514 + $0x20] sm:$0xf]
  %v2766 = vld [vmem:[%s2514 + $0x24] sm:$0x1]
  %v2767 = vld [vmem:[%s2514 + $0x28] sm:$0xf]
  %v2768 = vld [vmem:[%s2514 + $0x2c] sm:$0x1]
  %v2769 = vld [vmem:[%s2514 + $0x30] sm:$0xf]
  %v2770 = vld [vmem:[%s2514 + $0x34] sm:$0x1]
  %v2771 = vld [vmem:[%s2514 + $0x38] sm:$0xf]
  %v2772 = vld [vmem:[%s2514 + $0x3c] sm:$0x1]
  %v2773 = vld [vmem:[%s2514 + $0x50] sm:$0xf]
  %v2774 = vld [vmem:[%s2514 + $0x54] sm:$0x1]
  %v2775 = vld [vmem:[%s2514 + $0x58] sm:$0xf]
  %v2776 = vld [vmem:[%s2514 + $0x5c] sm:$0x1]
  %v2777 = vld [vmem:[%s2514 + $0x60] sm:$0xf]
  %v2778 = vld [vmem:[%s2514 + $0x64] sm:$0x1]
  %v2779 = vld [vmem:[%s2514 + $0x68] sm:$0xf]
  %v2780 = vld [vmem:[%s2514 + $0x6c] sm:$0x1]
  %v2781 = vld [vmem:[%s2514 + $0x70] sm:$0xf]
  %v2782 = vld [vmem:[%s2514 + $0x74] sm:$0x1]
  %v2783 = vld [vmem:[%s2514 + $0x78] sm:$0xf]
  %v2784 = vld [vmem:[%s2514 + $0x7c] sm:$0x1]
  %v2785 = vld [vmem:[%s2514 + $0x80] sm:$0xf]
  %v2786 = vld [vmem:[%s2514 + $0x84] sm:$0x1]
  %v2787 = vld [vmem:[%s2514 + $0x88] sm:$0xf]
  %v2788 = vld [vmem:[%s2514 + $0x8c] sm:$0x1]
  %v2790 = vshrl.u32 %v2757, 16
  %v2792 = vrot.slane %v2790, 4
  %v2793 = vshll.u32 %v2757, 16
  %v2795 = vrot.slane %v2793, 5
  %v2796 = vor.u32 %v2792, %v2795
  %v2797 = vrot.slane %v2796, 4
  %v2799 = vshll.u32 %v2758, 16
  %v2801 = vrot.slane %v2799, 5
  %v2802 = vsel %vm547, %v2797, %v2801
  %v2804 = vshrl.u32 %v2759, 16
  %v2806 = vrot.slane %v2804, 4
  %v2807 = vshll.u32 %v2759, 16
  %v2809 = vrot.slane %v2807, 5
  %v2810 = vor.u32 %v2806, %v2809
  %v2811 = vrot.slane %v2810, 4
  %v2813 = vshll.u32 %v2760, 16
  %v2815 = vrot.slane %v2813, 5
  %v2816 = vsel %vm547, %v2811, %v2815
  %v2818 = vshrl.u32 %v2761, 16
  %v2820 = vrot.slane %v2818, 4
  %v2821 = vshll.u32 %v2761, 16
  %v2823 = vrot.slane %v2821, 5
  %v2824 = vor.u32 %v2820, %v2823
  %v2825 = vrot.slane %v2824, 4
  %v2827 = vshll.u32 %v2762, 16
  %v2829 = vrot.slane %v2827, 5
  %v2830 = vsel %vm547, %v2825, %v2829
  %v2832 = vshrl.u32 %v2763, 16
  %v2834 = vrot.slane %v2832, 4
  %v2835 = vshll.u32 %v2763, 16
  %v2837 = vrot.slane %v2835, 5
  %v2838 = vor.u32 %v2834, %v2837
  %v2839 = vrot.slane %v2838, 4
  %v2841 = vshll.u32 %v2764, 16
  %v2843 = vrot.slane %v2841, 5
  %v2844 = vsel %vm547, %v2839, %v2843
  %v2846 = vshrl.u32 %v2765, 16
  %v2848 = vrot.slane %v2846, 4
  %v2849 = vshll.u32 %v2765, 16
  %v2851 = vrot.slane %v2849, 5
  %v2852 = vor.u32 %v2848, %v2851
  %v2853 = vrot.slane %v2852, 4
  %v2855 = vshll.u32 %v2766, 16
  %v2857 = vrot.slane %v2855, 5
  %v2858 = vsel %vm547, %v2853, %v2857
  %v2860 = vshrl.u32 %v2767, 16
  %v2862 = vrot.slane %v2860, 4
  %v2863 = vshll.u32 %v2767, 16
  %v2865 = vrot.slane %v2863, 5
  %v2866 = vor.u32 %v2862, %v2865
  %v2867 = vrot.slane %v2866, 4
  %v2869 = vshll.u32 %v2768, 16
  %v2871 = vrot.slane %v2869, 5
  %v2872 = vsel %vm547, %v2867, %v2871
  %v2874 = vshrl.u32 %v2769, 16
  %v2876 = vrot.slane %v2874, 4
  %v2877 = vshll.u32 %v2769, 16
  %v2879 = vrot.slane %v2877, 5
  %v2880 = vor.u32 %v2876, %v2879
  %v2881 = vrot.slane %v2880, 4
  %v2883 = vshll.u32 %v2770, 16
  %v2885 = vrot.slane %v2883, 5
  %v2886 = vsel %vm547, %v2881, %v2885
  %v2888 = vshrl.u32 %v2771, 16
  %v2890 = vrot.slane %v2888, 4
  %v2891 = vshll.u32 %v2771, 16
  %v2893 = vrot.slane %v2891, 5
  %v2894 = vor.u32 %v2890, %v2893
  %v2895 = vrot.slane %v2894, 4
  %v2897 = vshll.u32 %v2772, 16
  %v2899 = vrot.slane %v2897, 5
  %v2900 = vsel %vm547, %v2895, %v2899
  %v2902 = vshrl.u32 %v2773, 16
  %v2904 = vrot.slane %v2902, 4
  %v2905 = vshll.u32 %v2773, 16
  %v2907 = vrot.slane %v2905, 5
  %v2908 = vor.u32 %v2904, %v2907
  %v2909 = vrot.slane %v2908, 4
  %v2911 = vshll.u32 %v2774, 16
  %v2913 = vrot.slane %v2911, 5
  %v2914 = vsel %vm547, %v2909, %v2913
  %v2916 = vshrl.u32 %v2775, 16
  %v2918 = vrot.slane %v2916, 4
  %v2919 = vshll.u32 %v2775, 16
  %v2921 = vrot.slane %v2919, 5
  %v2922 = vor.u32 %v2918, %v2921
  %v2923 = vrot.slane %v2922, 4
  %v2925 = vshll.u32 %v2776, 16
  %v2927 = vrot.slane %v2925, 5
  %v2928 = vsel %vm547, %v2923, %v2927
  %v2930 = vshrl.u32 %v2777, 16
  %v2932 = vrot.slane %v2930, 4
  %v2933 = vshll.u32 %v2777, 16
  %v2935 = vrot.slane %v2933, 5
  %v2936 = vor.u32 %v2932, %v2935
  %v2937 = vrot.slane %v2936, 4
  %v2939 = vshll.u32 %v2778, 16
  %v2941 = vrot.slane %v2939, 5
  %v2942 = vsel %vm547, %v2937, %v2941
  %v2944 = vshrl.u32 %v2779, 16
  %v2946 = vrot.slane %v2944, 4
  %v2947 = vshll.u32 %v2779, 16
  %v2949 = vrot.slane %v2947, 5
  %v2950 = vor.u32 %v2946, %v2949
  %v2951 = vrot.slane %v2950, 4
  %v2953 = vshll.u32 %v2780, 16
  %v2955 = vrot.slane %v2953, 5
  %v2956 = vsel %vm547, %v2951, %v2955
  %v2958 = vshrl.u32 %v2781, 16
  %v2960 = vrot.slane %v2958, 4
  %v2961 = vshll.u32 %v2781, 16
  %v2963 = vrot.slane %v2961, 5
  %v2964 = vor.u32 %v2960, %v2963
  %v2965 = vrot.slane %v2964, 4
  %v2967 = vshll.u32 %v2782, 16
  %v2969 = vrot.slane %v2967, 5
  %v2970 = vsel %vm547, %v2965, %v2969
  %v2972 = vshrl.u32 %v2783, 16
  %v2974 = vrot.slane %v2972, 4
  %v2975 = vshll.u32 %v2783, 16
  %v2977 = vrot.slane %v2975, 5
  %v2978 = vor.u32 %v2974, %v2977
  %v2979 = vrot.slane %v2978, 4
  %v2981 = vshll.u32 %v2784, 16
  %v2983 = vrot.slane %v2981, 5
  %v2984 = vsel %vm547, %v2979, %v2983
  %v2986 = vshrl.u32 %v2785, 16
  %v2988 = vrot.slane %v2986, 4
  %v2989 = vshll.u32 %v2785, 16
  %v2991 = vrot.slane %v2989, 5
  %v2992 = vor.u32 %v2988, %v2991
  %v2993 = vrot.slane %v2992, 4
  %v2995 = vshll.u32 %v2786, 16
  %v2997 = vrot.slane %v2995, 5
  %v2998 = vsel %vm547, %v2993, %v2997
  %v3000 = vshrl.u32 %v2787, 16
  %v3002 = vrot.slane %v3000, 4
  %v3003 = vshll.u32 %v2787, 16
  %v3005 = vrot.slane %v3003, 5
  %v3006 = vor.u32 %v3002, %v3005
  %v3007 = vrot.slane %v3006, 4
  %v3009 = vshll.u32 %v2788, 16
  %v3011 = vrot.slane %v3009, 5
  %v3012 = vsel %vm547, %v3007, %v3011
  %s3013 = scalar_lea.vmem %s3, 448
  %v3014 = vld [vmem:[%s3013] sm:$0xf]
  %v3015 = vld [vmem:[%s3013 + $0x4] sm:$0xf]
  %v3016 = vld [vmem:[%s3013 + $0x8] sm:$0xf]
  %v3017 = vld [vmem:[%s3013 + $0xc] sm:$0xf]
  %v3018 = vld [vmem:[%s3013 + $0x10] sm:$0xf]
  %v3019 = vld [vmem:[%s3013 + $0x14] sm:$0xf]
  %v3020 = vld [vmem:[%s3013 + $0x18] sm:$0xf]
  %v3021 = vld [vmem:[%s3013 + $0x1c] sm:$0xf]
  %v3022 = vld [vmem:[%s3013 + $0x20] sm:$0xf]
  %v3023 = vld [vmem:[%s3013 + $0x24] sm:$0xf]
  %v3024 = vld [vmem:[%s3013 + $0x28] sm:$0xf]
  %v3025 = vld [vmem:[%s3013 + $0x2c] sm:$0xf]
  %v3026 = vld [vmem:[%s3013 + $0x30] sm:$0xf]
  %v3027 = vld [vmem:[%s3013 + $0x34] sm:$0xf]
  %v3028 = vld [vmem:[%s3013 + $0x38] sm:$0xf]
  %v3029 = vld [vmem:[%s3013 + $0x3c] sm:$0xf]
  %v3030 = vunpack.c.l.b16 %v2802
  %v3031 = vunpack.c.l.b16 %v2816
  %v3032 = vunpack.c.l.b16 %v2830
  %v3033 = vunpack.c.l.b16 %v2844
  %v3034 = vunpack.c.l.b16 %v2858
  %v3035 = vunpack.c.l.b16 %v2872
  %v3036 = vunpack.c.l.b16 %v2886
  %v3037 = vunpack.c.l.b16 %v2900
  %v3038 = vunpack.c.l.b16 %v2914
  %v3039 = vunpack.c.l.b16 %v2928
  %v3040 = vunpack.c.l.b16 %v2942
  %v3041 = vunpack.c.l.b16 %v2956
  %v3042 = vunpack.c.l.b16 %v2970
  %v3043 = vunpack.c.l.b16 %v2984
  %v3044 = vunpack.c.l.b16 %v2998
  %v3045 = vunpack.c.l.b16 %v3012
  %v3046 = vpack.c.b16 %v3031, %v3030
  %v3047 = vpack.c.b16 %v3033, %v3032
  %v3048 = vpack.c.b16 %v3035, %v3034
  %v3049 = vpack.c.b16 %v3037, %v3036
  %v3050 = vpack.c.b16 %v3039, %v3038
  %v3051 = vpack.c.b16 %v3041, %v3040
  %v3052 = vpack.c.b16 %v3043, %v3042
  %v3053 = vpack.c.b16 %v3045, %v3044
  %v3078 = vunpack.c.l.b16 %v3014
  %v3079 = vunpack.c.l.b16 %v3015
  %v3080 = vunpack.c.l.b16 %v3016
  %v3081 = vunpack.c.l.b16 %v3017
  %v3082 = vunpack.c.l.b16 %v3018
  %v3083 = vunpack.c.l.b16 %v3019
  %v3084 = vunpack.c.l.b16 %v3020
  %v3085 = vunpack.c.l.b16 %v3021
  %v3086 = vunpack.c.l.b16 %v3022
  %v3087 = vunpack.c.l.b16 %v3023
  %v3088 = vunpack.c.l.b16 %v3024
  %v3089 = vunpack.c.l.b16 %v3025
  %v3090 = vunpack.c.l.b16 %v3026
  %v3091 = vunpack.c.l.b16 %v3027
  %v3092 = vunpack.c.l.b16 %v3028
  %v3093 = vunpack.c.l.b16 %v3029
  %v3094 = vpack.c.b16 %v3079, %v3078
  %v3095 = vpack.c.b16 %v3081, %v3080
  %v3096 = vpack.c.b16 %v3083, %v3082
  %v3097 = vpack.c.b16 %v3085, %v3084
  %v3098 = vpack.c.b16 %v3087, %v3086
  %v3099 = vpack.c.b16 %v3089, %v3088
  %v3100 = vpack.c.b16 %v3091, %v3090
  %v3101 = vpack.c.b16 %v3093, %v3092
  %3110 = vmatprep.subr.bf16.mxu0 0
  %3111 = vmatpush1.bf16.msra.mxu0 %v3094
  %3112 = vmatprep.subr.bf16.mxu0 0
  %3113 = vmatpush1.bf16.msra.mxu0 %v3095
  %3114 = vmatprep.subr.bf16.mxu0 0
  %3115 = vmatpush1.bf16.msra.mxu0 %v3096
  %3116 = vmatprep.subr.bf16.mxu0 0
  %3117 = vmatpush1.bf16.msra.mxu0 %v3097
  %3118 = vmatprep.subr.bf16.mxu0 0
  %3119 = vmatpush1.bf16.msra.mxu0 %v3098
  %3120 = vmatprep.subr.bf16.mxu0 0
  %3121 = vmatpush1.bf16.msra.mxu0 %v3099
  %3122 = vmatprep.subr.bf16.mxu0 0
  %3123 = vmatpush1.bf16.msra.mxu0 %v3100
  %3124 = vmatprep.subr.bf16.mxu0 0
  %3125 = vmatpush1.bf16.msra.mxu0 %v3101
  %3126 = vmatprep.subr.bf16.mxu0 0
  %3127 = vmatpush1.bf16.msra.mxu0 0
  %3128 = vmatprep.subr.bf16.mxu0 0
  %3129 = vmatpush1.bf16.msra.mxu0 0
  %3130 = vmatprep.subr.bf16.mxu0 0
  %3131 = vmatpush1.bf16.msra.mxu0 0
  %3132 = vmatprep.subr.bf16.mxu0 0
  %3133 = vmatpush1.bf16.msra.mxu0 0
  %3134 = vmatprep.subr.bf16.mxu0 0
  %3135 = vmatpush1.bf16.msra.mxu0 0
  %3136 = vmatprep.subr.bf16.mxu0 0
  %3137 = vmatpush1.bf16.msra.mxu0 0
  %3138 = vmatprep.subr.bf16.mxu0 0
  %3139 = vmatpush1.bf16.msra.mxu0 0
  %3140 = vmatprep.subr.bf16.mxu0 0
  %3141 = vmatpush1.bf16.msra.mxu0 0
  %3142 = vmatprep.mubr.bf16.mxu0 0
  %3143 = vmatmul.mubr.bf16.gmra.mrb[0].mxu0 %v3046
  %v3144 = vpop.f32.mrb[0].mxu0
  %v3145 = vadd.f32 0.0, %v3144
  %v3146 = vpop.f32.mrb[0].mxu0
  %v3147 = vpop.f32.mrb[0].mxu0
  %v3148 = vadd.f32 0.0, %v3147
  %v3149 = vpop.f32.mrb[0].mxu0
  %3150 = vmatprep.mubr.bf16.mxu0 0
  %3151 = vmatmul.mubr.bf16.gmra.mrb[0].mxu0 %v3047
  %v3152 = vpop.f32.mrb[0].mxu0
  %v3153 = vadd.f32 0.0, %v3152
  %v3154 = vpop.f32.mrb[0].mxu0
  %v3155 = vpop.f32.mrb[0].mxu0
  %v3156 = vadd.f32 0.0, %v3155
  %v3157 = vpop.f32.mrb[0].mxu0
  %3158 = vmatprep.mubr.bf16.mxu0 0
  %3159 = vmatmul.mubr.bf16.gmra.mrb[0].mxu0 %v3048
  %v3160 = vpop.f32.mrb[0].mxu0
  %v3161 = vadd.f32 0.0, %v3160
  %v3162 = vpop.f32.mrb[0].mxu0
  %v3163 = vpop.f32.mrb[0].mxu0
  %v3164 = vadd.f32 0.0, %v3163
  %v3165 = vpop.f32.mrb[0].mxu0
  %3166 = vmatprep.mubr.bf16.mxu0 0
  %3167 = vmatmul.mubr.bf16.gmra.mrb[0].mxu0 %v3049
  %v3168 = vpop.f32.mrb[0].mxu0
  %v3169 = vadd.f32 0.0, %v3168
  %v3170 = vpop.f32.mrb[0].mxu0
  %v3171 = vpop.f32.mrb[0].mxu0
  %v3172 = vadd.f32 0.0, %v3171
  %v3173 = vpop.f32.mrb[0].mxu0
  %3174 = vmatprep.mubr.bf16.mxu0 0
  %3175 = vmatmul.mubr.bf16.gmra.mrb[0].mxu0 %v3050
  %v3176 = vpop.f32.mrb[0].mxu0
  %v3177 = vadd.f32 0.0, %v3176
  %v3178 = vpop.f32.mrb[0].mxu0
  %v3179 = vpop.f32.mrb[0].mxu0
  %v3180 = vadd.f32 0.0, %v3179
  %v3181 = vpop.f32.mrb[0].mxu0
  %3182 = vmatprep.mubr.bf16.mxu0 0
  %3183 = vmatmul.mubr.bf16.gmra.mrb[0].mxu0 %v3051
  %v3184 = vpop.f32.mrb[0].mxu0
  %v3185 = vadd.f32 0.0, %v3184
  %v3186 = vpop.f32.mrb[0].mxu0
  %v3187 = vpop.f32.mrb[0].mxu0
  %v3188 = vadd.f32 0.0, %v3187
  %v3189 = vpop.f32.mrb[0].mxu0
  %3190 = vmatprep.mubr.bf16.mxu0 0
  %3191 = vmatmul.mubr.bf16.gmra.mrb[0].mxu0 %v3052
  %v3192 = vpop.f32.mrb[0].mxu0
  %v3193 = vadd.f32 0.0, %v3192
  %v3194 = vpop.f32.mrb[0].mxu0
  %v3195 = vpop.f32.mrb[0].mxu0
  %v3196 = vadd.f32 0.0, %v3195
  %v3197 = vpop.f32.mrb[0].mxu0
  %3198 = vmatprep.mubr.bf16.mxu0 0
  %3199 = vmatmul.mubr.bf16.gmra.mrb[0].mxu0 %v3053
  %v3200 = vpop.f32.mrb[0].mxu0
  %v3201 = vadd.f32 0.0, %v3200
  %v3202 = vpop.f32.mrb[0].mxu0
  %v3203 = vpop.f32.mrb[0].mxu0
  %v3204 = vadd.f32 0.0, %v3203
  %v3205 = vpop.f32.mrb[0].mxu0
  %3206 = vdwg.mxu0
  %v3207 = vadd.f32 %v2741, %v3145
  %v3208 = vadd.f32 %v2742, %v3148
  %v3209 = vadd.f32 %v2743, %v3153
  %v3210 = vadd.f32 %v2744, %v3156
  %v3211 = vadd.f32 %v2745, %v3161
  %v3212 = vadd.f32 %v2746, %v3164
  %v3213 = vadd.f32 %v2747, %v3169
  %v3214 = vadd.f32 %v2748, %v3172
  %v3215 = vadd.f32 %v2749, %v3177
  %v3216 = vadd.f32 %v2750, %v3180
  %v3217 = vadd.f32 %v2751, %v3185
  %v3218 = vadd.f32 %v2752, %v3188
  %v3219 = vadd.f32 %v2753, %v3193
  %v3220 = vadd.f32 %v2754, %v3196
  %v3221 = vadd.f32 %v2755, %v3201
  %v3222 = vadd.f32 %v2756, %v3204
  %v3223 = vld [vmem:[%s2514] sm:$0xe]
  %v3224 = vld [vmem:[%s2514 + $0x8] sm:$0xe]
  %v3225 = vld [vmem:[%s2514 + $0x10] sm:$0xe]
  %v3226 = vld [vmem:[%s2514 + $0x18] sm:$0xe]
  %v3227 = vld [vmem:[%s2514 + $0x20] sm:$0xe]
  %v3228 = vld [vmem:[%s2514 + $0x28] sm:$0xe]
  %v3229 = vld [vmem:[%s2514 + $0x30] sm:$0xe]
  %v3230 = vld [vmem:[%s2514 + $0x38] sm:$0xe]
  %v3231 = vld [vmem:[%s2514 + $0x50] sm:$0xe]
  %v3232 = vld [vmem:[%s2514 + $0x58] sm:$0xe]
  %v3233 = vld [vmem:[%s2514 + $0x60] sm:$0xe]
  %v3234 = vld [vmem:[%s2514 + $0x68] sm:$0xe]
  %v3235 = vld [vmem:[%s2514 + $0x70] sm:$0xe]
  %v3236 = vld [vmem:[%s2514 + $0x78] sm:$0xe]
  %v3237 = vld [vmem:[%s2514 + $0x80] sm:$0xe]
  %v3238 = vld [vmem:[%s2514 + $0x88] sm:$0xe]
  %v3271 = vrot.slane %v3223, 5
  %v3272 = vrot.slane %v3271, 4
  %v3273 = vrot.slane %v2758, 5
  %v3274 = vsel %vm1209, %v3272, %v3273
  %v3275 = vrot.slane %v3224, 5
  %v3276 = vrot.slane %v3275, 4
  %v3277 = vrot.slane %v2760, 5
  %v3278 = vsel %vm1209, %v3276, %v3277
  %v3279 = vrot.slane %v3225, 5
  %v3280 = vrot.slane %v3279, 4
  %v3281 = vrot.slane %v2762, 5
  %v3282 = vsel %vm1209, %v3280, %v3281
  %v3283 = vrot.slane %v3226, 5
  %v3284 = vrot.slane %v3283, 4
  %v3285 = vrot.slane %v2764, 5
  %v3286 = vsel %vm1209, %v3284, %v3285
  %v3287 = vrot.slane %v3227, 5
  %v3288 = vrot.slane %v3287, 4
  %v3289 = vrot.slane %v2766, 5
  %v3290 = vsel %vm1209, %v3288, %v3289
  %v3291 = vrot.slane %v3228, 5
  %v3292 = vrot.slane %v3291, 4
  %v3293 = vrot.slane %v2768, 5
  %v3294 = vsel %vm1209, %v3292, %v3293
  %v3295 = vrot.slane %v3229, 5
  %v3296 = vrot.slane %v3295, 4
  %v3297 = vrot.slane %v2770, 5
  %v3298 = vsel %vm1209, %v3296, %v3297
  %v3299 = vrot.slane %v3230, 5
  %v3300 = vrot.slane %v3299, 4
  %v3301 = vrot.slane %v2772, 5
  %v3302 = vsel %vm1209, %v3300, %v3301
  %v3303 = vrot.slane %v3231, 5
  %v3304 = vrot.slane %v3303, 4
  %v3305 = vrot.slane %v2774, 5
  %v3306 = vsel %vm1209, %v3304, %v3305
  %v3307 = vrot.slane %v3232, 5
  %v3308 = vrot.slane %v3307, 4
  %v3309 = vrot.slane %v2776, 5
  %v3310 = vsel %vm1209, %v3308, %v3309
  %v3311 = vrot.slane %v3233, 5
  %v3312 = vrot.slane %v3311, 4
  %v3313 = vrot.slane %v2778, 5
  %v3314 = vsel %vm1209, %v3312, %v3313
  %v3315 = vrot.slane %v3234, 5
  %v3316 = vrot.slane %v3315, 4
  %v3317 = vrot.slane %v2780, 5
  %v3318 = vsel %vm1209, %v3316, %v3317
  %v3319 = vrot.slane %v3235, 5
  %v3320 = vrot.slane %v3319, 4
  %v3321 = vrot.slane %v2782, 5
  %v3322 = vsel %vm1209, %v3320, %v3321
  %v3323 = vrot.slane %v3236, 5
  %v3324 = vrot.slane %v3323, 4
  %v3325 = vrot.slane %v2784, 5
  %v3326 = vsel %vm1209, %v3324, %v3325
  %v3327 = vrot.slane %v3237, 5
  %v3328 = vrot.slane %v3327, 4
  %v3329 = vrot.slane %v2786, 5
  %v3330 = vsel %vm1209, %v3328, %v3329
  %v3331 = vrot.slane %v3238, 5
  %v3332 = vrot.slane %v3331, 4
  %v3333 = vrot.slane %v2788, 5
  %v3334 = vsel %vm1209, %v3332, %v3333
  %s3335 = scalar_lea.vmem %s3, 512
  %v3336 = vld [vmem:[%s3335] sm:$0xf]
  %v3337 = vld [vmem:[%s3335 + $0x4] sm:$0xf]
  %v3338 = vld [vmem:[%s3335 + $0x8] sm:$0xf]
  %v3339 = vld [vmem:[%s3335 + $0xc] sm:$0xf]
  %v3340 = vld [vmem:[%s3335 + $0x10] sm:$0xf]
  %v3341 = vld [vmem:[%s3335 + $0x14] sm:$0xf]
  %v3342 = vld [vmem:[%s3335 + $0x18] sm:$0xf]
  %v3343 = vld [vmem:[%s3335 + $0x1c] sm:$0xf]
  %v3344 = vld [vmem:[%s3335 + $0x20] sm:$0xf]
  %v3345 = vld [vmem:[%s3335 + $0x24] sm:$0xf]
  %v3346 = vld [vmem:[%s3335 + $0x28] sm:$0xf]
  %v3347 = vld [vmem:[%s3335 + $0x2c] sm:$0xf]
  %v3348 = vld [vmem:[%s3335 + $0x30] sm:$0xf]
  %v3349 = vld [vmem:[%s3335 + $0x34] sm:$0xf]
  %v3350 = vld [vmem:[%s3335 + $0x38] sm:$0xf]
  %v3351 = vld [vmem:[%s3335 + $0x3c] sm:$0xf]
  %v3352 = vunpack.c.l.b16 %v3274
  %v3353 = vunpack.c.l.b16 %v3278
  %v3354 = vunpack.c.l.b16 %v3282
  %v3355 = vunpack.c.l.b16 %v3286
  %v3356 = vunpack.c.l.b16 %v3290
  %v3357 = vunpack.c.l.b16 %v3294
  %v3358 = vunpack.c.l.b16 %v3298
  %v3359 = vunpack.c.l.b16 %v3302
  %v3360 = vunpack.c.l.b16 %v3306
  %v3361 = vunpack.c.l.b16 %v3310
  %v3362 = vunpack.c.l.b16 %v3314
  %v3363 = vunpack.c.l.b16 %v3318
  %v3364 = vunpack.c.l.b16 %v3322
  %v3365 = vunpack.c.l.b16 %v3326
  %v3366 = vunpack.c.l.b16 %v3330
  %v3367 = vunpack.c.l.b16 %v3334
  %v3368 = vpack.c.b16 %v3353, %v3352
  %v3369 = vpack.c.b16 %v3355, %v3354
  %v3370 = vpack.c.b16 %v3357, %v3356
  %v3371 = vpack.c.b16 %v3359, %v3358
  %v3372 = vpack.c.b16 %v3361, %v3360
  %v3373 = vpack.c.b16 %v3363, %v3362
  %v3374 = vpack.c.b16 %v3365, %v3364
  %v3375 = vpack.c.b16 %v3367, %v3366
  %v3400 = vunpack.c.l.b16 %v3336
  %v3401 = vunpack.c.l.b16 %v3337
  %v3402 = vunpack.c.l.b16 %v3338
  %v3403 = vunpack.c.l.b16 %v3339
  %v3404 = vunpack.c.l.b16 %v3340
  %v3405 = vunpack.c.l.b16 %v3341
  %v3406 = vunpack.c.l.b16 %v3342
  %v3407 = vunpack.c.l.b16 %v3343
  %v3408 = vunpack.c.l.b16 %v3344
  %v3409 = vunpack.c.l.b16 %v3345
  %v3410 = vunpack.c.l.b16 %v3346
  %v3411 = vunpack.c.l.b16 %v3347
  %v3412 = vunpack.c.l.b16 %v3348
  %v3413 = vunpack.c.l.b16 %v3349
  %v3414 = vunpack.c.l.b16 %v3350
  %v3415 = vunpack.c.l.b16 %v3351
  %v3416 = vpack.c.b16 %v3401, %v3400
  %v3417 = vpack.c.b16 %v3403, %v3402
  %v3418 = vpack.c.b16 %v3405, %v3404
  %v3419 = vpack.c.b16 %v3407, %v3406
  %v3420 = vpack.c.b16 %v3409, %v3408
  %v3421 = vpack.c.b16 %v3411, %v3410
  %v3422 = vpack.c.b16 %v3413, %v3412
  %v3423 = vpack.c.b16 %v3415, %v3414
  %3432 = vmatprep.subr.bf16.mxu0 0
  %3433 = vmatpush1.bf16.msra.mxu0 %v3416
  %3434 = vmatprep.subr.bf16.mxu0 0
  %3435 = vmatpush1.bf16.msra.mxu0 %v3417
  %3436 = vmatprep.subr.bf16.mxu0 0
  %3437 = vmatpush1.bf16.msra.mxu0 %v3418
  %3438 = vmatprep.subr.bf16.mxu0 0
  %3439 = vmatpush1.bf16.msra.mxu0 %v3419
  %3440 = vmatprep.subr.bf16.mxu0 0
  %3441 = vmatpush1.bf16.msra.mxu0 %v3420
  %3442 = vmatprep.subr.bf16.mxu0 0
  %3443 = vmatpush1.bf16.msra.mxu0 %v3421
  %3444 = vmatprep.subr.bf16.mxu0 0
  %3445 = vmatpush1.bf16.msra.mxu0 %v3422
  %3446 = vmatprep.subr.bf16.mxu0 0
  %3447 = vmatpush1.bf16.msra.mxu0 %v3423
  %3448 = vmatprep.subr.bf16.mxu0 0
  %3449 = vmatpush1.bf16.msra.mxu0 0
  %3450 = vmatprep.subr.bf16.mxu0 0
  %3451 = vmatpush1.bf16.msra.mxu0 0
  %3452 = vmatprep.subr.bf16.mxu0 0
  %3453 = vmatpush1.bf16.msra.mxu0 0
  %3454 = vmatprep.subr.bf16.mxu0 0
  %3455 = vmatpush1.bf16.msra.mxu0 0
  %3456 = vmatprep.subr.bf16.mxu0 0
  %3457 = vmatpush1.bf16.msra.mxu0 0
  %3458 = vmatprep.subr.bf16.mxu0 0
  %3459 = vmatpush1.bf16.msra.mxu0 0
  %3460 = vmatprep.subr.bf16.mxu0 0
  %3461 = vmatpush1.bf16.msra.mxu0 0
  %3462 = vmatprep.subr.bf16.mxu0 0
  %3463 = vmatpush1.bf16.msra.mxu0 0
  %3464 = vmatprep.mubr.bf16.mxu0 0
  %3465 = vmatmul.mubr.bf16.gmra.mrb[0].mxu0 %v3368
  %v3466 = vpop.f32.mrb[0].mxu0
  %v3467 = vadd.f32 0.0, %v3466
  %v3468 = vpop.f32.mrb[0].mxu0
  %v3469 = vpop.f32.mrb[0].mxu0
  %v3470 = vadd.f32 0.0, %v3469
  %v3471 = vpop.f32.mrb[0].mxu0
  %3472 = vmatprep.mubr.bf16.mxu0 0
  %3473 = vmatmul.mubr.bf16.gmra.mrb[0].mxu0 %v3369
  %v3474 = vpop.f32.mrb[0].mxu0
  %v3475 = vadd.f32 0.0, %v3474
  %v3476 = vpop.f32.mrb[0].mxu0
  %v3477 = vpop.f32.mrb[0].mxu0
  %v3478 = vadd.f32 0.0, %v3477
  %v3479 = vpop.f32.mrb[0].mxu0
  %3480 = vmatprep.mubr.bf16.mxu0 0
  %3481 = vmatmul.mubr.bf16.gmra.mrb[0].mxu0 %v3370
  %v3482 = vpop.f32.mrb[0].mxu0
  %v3483 = vadd.f32 0.0, %v3482
  %v3484 = vpop.f32.mrb[0].mxu0
  %v3485 = vpop.f32.mrb[0].mxu0
  %v3486 = vadd.f32 0.0, %v3485
  %v3487 = vpop.f32.mrb[0].mxu0
  %3488 = vmatprep.mubr.bf16.mxu0 0
  %3489 = vmatmul.mubr.bf16.gmra.mrb[0].mxu0 %v3371
  %v3490 = vpop.f32.mrb[0].mxu0
  %v3491 = vadd.f32 0.0, %v3490
  %v3492 = vpop.f32.mrb[0].mxu0
  %v3493 = vpop.f32.mrb[0].mxu0
  %v3494 = vadd.f32 0.0, %v3493
  %v3495 = vpop.f32.mrb[0].mxu0
  %3496 = vmatprep.mubr.bf16.mxu0 0
  %3497 = vmatmul.mubr.bf16.gmra.mrb[0].mxu0 %v3372
  %v3498 = vpop.f32.mrb[0].mxu0
  %v3499 = vadd.f32 0.0, %v3498
  %v3500 = vpop.f32.mrb[0].mxu0
  %v3501 = vpop.f32.mrb[0].mxu0
  %v3502 = vadd.f32 0.0, %v3501
  %v3503 = vpop.f32.mrb[0].mxu0
  %3504 = vmatprep.mubr.bf16.mxu0 0
  %3505 = vmatmul.mubr.bf16.gmra.mrb[0].mxu0 %v3373
  %v3506 = vpop.f32.mrb[0].mxu0
  %v3507 = vadd.f32 0.0, %v3506
  %v3508 = vpop.f32.mrb[0].mxu0
  %v3509 = vpop.f32.mrb[0].mxu0
  %v3510 = vadd.f32 0.0, %v3509
  %v3511 = vpop.f32.mrb[0].mxu0
  %3512 = vmatprep.mubr.bf16.mxu0 0
  %3513 = vmatmul.mubr.bf16.gmra.mrb[0].mxu0 %v3374
  %v3514 = vpop.f32.mrb[0].mxu0
  %v3515 = vadd.f32 0.0, %v3514
  %v3516 = vpop.f32.mrb[0].mxu0
  %v3517 = vpop.f32.mrb[0].mxu0
  %v3518 = vadd.f32 0.0, %v3517
  %v3519 = vpop.f32.mrb[0].mxu0
  %3520 = vmatprep.mubr.bf16.mxu0 0
  %3521 = vmatmul.mubr.bf16.gmra.mrb[0].mxu0 %v3375
  %v3522 = vpop.f32.mrb[0].mxu0
  %v3523 = vadd.f32 0.0, %v3522
  %v3524 = vpop.f32.mrb[0].mxu0
  %v3525 = vpop.f32.mrb[0].mxu0
  %v3526 = vadd.f32 0.0, %v3525
  %v3527 = vpop.f32.mrb[0].mxu0
  %3528 = vdwg.mxu0
  %v3529 = vadd.f32 %v3207, %v3467
  %v3530 = vadd.f32 %v3208, %v3470
  %v3531 = vadd.f32 %v3209, %v3475
  %v3532 = vadd.f32 %v3210, %v3478
  %v3533 = vadd.f32 %v3211, %v3483
  %v3534 = vadd.f32 %v3212, %v3486
  %v3535 = vadd.f32 %v3213, %v3491
  %v3536 = vadd.f32 %v3214, %v3494
  %v3537 = vadd.f32 %v3215, %v3499
  %v3538 = vadd.f32 %v3216, %v3502
  %v3539 = vadd.f32 %v3217, %v3507
  %v3540 = vadd.f32 %v3218, %v3510
  %v3541 = vadd.f32 %v3219, %v3515
  %v3542 = vadd.f32 %v3220, %v3518
  %v3543 = vadd.f32 %v3221, %v3523
  %v3544 = vadd.f32 %v3222, %v3526
  %v3545 = vadd.f32 %v3529, %v3530
  %v3546 = vadd.f32 %v3545, %v3531
  %v3547 = vadd.f32 %v3546, %v3532
  %v3548 = vadd.f32 %v3547, %v3533
  %v3549 = vadd.f32 %v3548, %v3534
  %v3550 = vadd.f32 %v3549, %v3535
  %v3551 = vadd.f32 %v3550, %v3536
  %v3552 = vadd.f32 %v3551, %v3537
  %v3553 = vadd.f32 %v3552, %v3538
  %v3554 = vadd.f32 %v3553, %v3539
  %v3555 = vadd.f32 %v3554, %v3540
  %v3556 = vadd.f32 %v3555, %v3541
  %v3557 = vadd.f32 %v3556, %v3542
  %v3558 = vadd.f32 %v3557, %v3543
  %v3559 = vadd.f32 %v3558, %v3544
  %v3560 = vrot.slane %v3559, 4
  %v3561 = vadd.f32 %v3559, %v3560
  %v3562 = vrot.slane %v3561, 2
  %v3563 = vadd.f32 %v3561, %v3562
  %v3564 = vrot.slane %v3563, 1
  %v3565 = vadd.f32 %v3563, %v3564
  %v3566 = vmul.f32 %v3565, 0.0078125
  %v3567 = vmul.f32 %v3529, %v3529
  %v3568 = vmul.f32 %v3530, %v3530
  %v3569 = vmul.f32 %v3531, %v3531
  %v3570 = vmul.f32 %v3532, %v3532
  %v3571 = vmul.f32 %v3533, %v3533
  %v3572 = vmul.f32 %v3534, %v3534
  %v3573 = vmul.f32 %v3535, %v3535
  %v3574 = vmul.f32 %v3536, %v3536
  %v3575 = vmul.f32 %v3537, %v3537
  %v3576 = vmul.f32 %v3538, %v3538
  %v3577 = vmul.f32 %v3539, %v3539
  %v3578 = vmul.f32 %v3540, %v3540
  %v3579 = vmul.f32 %v3541, %v3541
  %v3580 = vmul.f32 %v3542, %v3542
  %v3581 = vmul.f32 %v3543, %v3543
  %v3582 = vmul.f32 %v3544, %v3544
  %v3583 = vadd.f32 %v3567, %v3568
  %v3584 = vadd.f32 %v3583, %v3569
  %v3585 = vadd.f32 %v3584, %v3570
  %v3586 = vadd.f32 %v3585, %v3571
  %v3587 = vadd.f32 %v3586, %v3572
  %v3588 = vadd.f32 %v3587, %v3573
  %v3589 = vadd.f32 %v3588, %v3574
  %v3590 = vadd.f32 %v3589, %v3575
  %v3591 = vadd.f32 %v3590, %v3576
  %v3592 = vadd.f32 %v3591, %v3577
  %v3593 = vadd.f32 %v3592, %v3578
  %v3594 = vadd.f32 %v3593, %v3579
  %v3595 = vadd.f32 %v3594, %v3580
  %v3596 = vadd.f32 %v3595, %v3581
  %v3597 = vadd.f32 %v3596, %v3582
  %v3598 = vrot.slane %v3597, 4
  %v3599 = vadd.f32 %v3597, %v3598
  %v3600 = vrot.slane %v3599, 2
  %v3601 = vadd.f32 %v3599, %v3600
  %v3602 = vrot.slane %v3601, 1
  %v3603 = vadd.f32 %v3601, %v3602
  %v3604 = vmul.f32 %v3603, 0.0078125
  %v3605 = vmul.f32 %v3566, %v3566
  %v3606 = vsub.f32 %v3604, %v3605
  %v3607 = vmax.f32 %v3606, 0.0
  %v3608 = vld [vmem:[%s4] sm:$0x1]
  %v3609 = vadd.f32 %v3607, 1e-05
  %v3610 = vrsqrt.pop %v3609
  %v3611 = vmul.f32 %v3608, %v3610
  %v3612 = vld [vmem:[%s5] sm:$0x1]
  %v3613 = vmul.f32 %v3566, %v3611
  %v3614 = vsub.f32 %v3612, %v3613
  %v3616 = vlaneseq
  %v3617 = vshrl.u32 %v3616, 7
  %v3618 = vsub.s32 0, %v3617
  %v3619 = vrot.slane %v3611, %v3618
  %v3621 = vmul.f32 %v3529, %v3619
  %v3622 = vmul.f32 %v3530, %v3619
  %v3623 = vmul.f32 %v3531, %v3619
  %v3624 = vmul.f32 %v3532, %v3619
  %v3625 = vmul.f32 %v3533, %v3619
  %v3626 = vmul.f32 %v3534, %v3619
  %v3627 = vmul.f32 %v3535, %v3619
  %v3628 = vmul.f32 %v3536, %v3619
  %v3629 = vmul.f32 %v3537, %v3619
  %v3630 = vmul.f32 %v3538, %v3619
  %v3631 = vmul.f32 %v3539, %v3619
  %v3632 = vmul.f32 %v3540, %v3619
  %v3633 = vmul.f32 %v3541, %v3619
  %v3634 = vmul.f32 %v3542, %v3619
  %v3635 = vmul.f32 %v3543, %v3619
  %v3636 = vmul.f32 %v3544, %v3619
  %v3638 = vlaneseq
  %v3639 = vshrl.u32 %v3638, 7
  %v3640 = vsub.s32 0, %v3639
  %v3641 = vrot.slane %v3614, %v3640
  %v3643 = vadd.f32 %v3621, %v3641
  %v3644 = vadd.f32 %v3622, %v3641
  %v3645 = vadd.f32 %v3623, %v3641
  %v3646 = vadd.f32 %v3624, %v3641
  %v3647 = vadd.f32 %v3625, %v3641
  %v3648 = vadd.f32 %v3626, %v3641
  %v3649 = vadd.f32 %v3627, %v3641
  %v3650 = vadd.f32 %v3628, %v3641
  %v3651 = vadd.f32 %v3629, %v3641
  %v3652 = vadd.f32 %v3630, %v3641
  %v3653 = vadd.f32 %v3631, %v3641
  %v3654 = vadd.f32 %v3632, %v3641
  %v3655 = vadd.f32 %v3633, %v3641
  %v3656 = vadd.f32 %v3634, %v3641
  %v3657 = vadd.f32 %v3635, %v3641
  %v3658 = vadd.f32 %v3636, %v3641
  %v3659 = vmax.f32 %v3643, 0.0
  %v3660 = vmax.f32 %v3644, 0.0
  %v3661 = vmax.f32 %v3645, 0.0
  %v3662 = vmax.f32 %v3646, 0.0
  %v3663 = vmax.f32 %v3647, 0.0
  %v3664 = vmax.f32 %v3648, 0.0
  %v3665 = vmax.f32 %v3649, 0.0
  %v3666 = vmax.f32 %v3650, 0.0
  %v3667 = vmax.f32 %v3651, 0.0
  %v3668 = vmax.f32 %v3652, 0.0
  %v3669 = vmax.f32 %v3653, 0.0
  %v3670 = vmax.f32 %v3654, 0.0
  %v3671 = vmax.f32 %v3655, 0.0
  %v3672 = vmax.f32 %v3656, 0.0
  %v3673 = vmax.f32 %v3657, 0.0
  %v3674 = vmax.f32 %v3658, 0.0
  %v3675 = vpack.c.bf16 %v3660, %v3659
  %v3676 = vpack.c.bf16 %v3662, %v3661
  %v3677 = vpack.c.bf16 %v3664, %v3663
  %v3678 = vpack.c.bf16 %v3666, %v3665
  %v3679 = vpack.c.bf16 %v3668, %v3667
  %v3680 = vpack.c.bf16 %v3670, %v3669
  %v3681 = vpack.c.bf16 %v3672, %v3671
  %v3682 = vpack.c.bf16 %v3674, %v3673
  %v3683 = vld [vmem:[%s6] sm:$0xf]
  %v3684 = vld [vmem:[%s6 + $0x4] sm:$0xf]
  %v3685 = vld [vmem:[%s6 + $0x8] sm:$0xf]
  %v3686 = vld [vmem:[%s6 + $0xc] sm:$0xf]
  %v3687 = vld [vmem:[%s6 + $0x10] sm:$0xf]
  %v3688 = vld [vmem:[%s6 + $0x14] sm:$0xf]
  %v3689 = vld [vmem:[%s6 + $0x18] sm:$0xf]
  %v3690 = vld [vmem:[%s6 + $0x1c] sm:$0xf]
  %v3691 = vld [vmem:[%s6 + $0x20] sm:$0xf]
  %v3692 = vld [vmem:[%s6 + $0x24] sm:$0xf]
  %v3693 = vld [vmem:[%s6 + $0x28] sm:$0xf]
  %v3694 = vld [vmem:[%s6 + $0x2c] sm:$0xf]
  %v3695 = vld [vmem:[%s6 + $0x30] sm:$0xf]
  %v3696 = vld [vmem:[%s6 + $0x34] sm:$0xf]
  %v3697 = vld [vmem:[%s6 + $0x38] sm:$0xf]
  %v3698 = vld [vmem:[%s6 + $0x3c] sm:$0xf]
  %v3715 = vunpack.c.l.b16 %v3683
  %v3716 = vunpack.c.l.b16 %v3684
  %v3717 = vunpack.c.l.b16 %v3685
  %v3718 = vunpack.c.l.b16 %v3686
  %v3719 = vunpack.c.l.b16 %v3687
  %v3720 = vunpack.c.l.b16 %v3688
  %v3721 = vunpack.c.l.b16 %v3689
  %v3722 = vunpack.c.l.b16 %v3690
  %v3723 = vunpack.c.l.b16 %v3691
  %v3724 = vunpack.c.l.b16 %v3692
  %v3725 = vunpack.c.l.b16 %v3693
  %v3726 = vunpack.c.l.b16 %v3694
  %v3727 = vunpack.c.l.b16 %v3695
  %v3728 = vunpack.c.l.b16 %v3696
  %v3729 = vunpack.c.l.b16 %v3697
  %v3730 = vunpack.c.l.b16 %v3698
  %v3731 = vpack.c.b16 %v3716, %v3715
  %v3732 = vpack.c.b16 %v3718, %v3717
  %v3733 = vpack.c.b16 %v3720, %v3719
  %v3734 = vpack.c.b16 %v3722, %v3721
  %v3735 = vpack.c.b16 %v3724, %v3723
  %v3736 = vpack.c.b16 %v3726, %v3725
  %v3737 = vpack.c.b16 %v3728, %v3727
  %v3738 = vpack.c.b16 %v3730, %v3729
  %3747 = vmatprep.subr.bf16.mxu0 0
  %3748 = vmatpush1.bf16.msra.mxu0 %v3731
  %3749 = vmatprep.subr.bf16.mxu0 0
  %3750 = vmatpush1.bf16.msra.mxu0 %v3732
  %3751 = vmatprep.subr.bf16.mxu0 0
  %3752 = vmatpush1.bf16.msra.mxu0 %v3733
  %3753 = vmatprep.subr.bf16.mxu0 0
  %3754 = vmatpush1.bf16.msra.mxu0 %v3734
  %3755 = vmatprep.subr.bf16.mxu0 0
  %3756 = vmatpush1.bf16.msra.mxu0 %v3735
  %3757 = vmatprep.subr.bf16.mxu0 0
  %3758 = vmatpush1.bf16.msra.mxu0 %v3736
  %3759 = vmatprep.subr.bf16.mxu0 0
  %3760 = vmatpush1.bf16.msra.mxu0 %v3737
  %3761 = vmatprep.subr.bf16.mxu0 0
  %3762 = vmatpush1.bf16.msra.mxu0 %v3738
  %3763 = vmatprep.subr.bf16.mxu0 0
  %3764 = vmatpush1.bf16.msra.mxu0 0
  %3765 = vmatprep.subr.bf16.mxu0 0
  %3766 = vmatpush1.bf16.msra.mxu0 0
  %3767 = vmatprep.subr.bf16.mxu0 0
  %3768 = vmatpush1.bf16.msra.mxu0 0
  %3769 = vmatprep.subr.bf16.mxu0 0
  %3770 = vmatpush1.bf16.msra.mxu0 0
  %3771 = vmatprep.subr.bf16.mxu0 0
  %3772 = vmatpush1.bf16.msra.mxu0 0
  %3773 = vmatprep.subr.bf16.mxu0 0
  %3774 = vmatpush1.bf16.msra.mxu0 0
  %3775 = vmatprep.subr.bf16.mxu0 0
  %3776 = vmatpush1.bf16.msra.mxu0 0
  %3777 = vmatprep.subr.bf16.mxu0 0
  %3778 = vmatpush1.bf16.msra.mxu0 0
  %3779 = vmatprep.mubr.bf16.mxu0 0
  %3780 = vmatmul.mubr.bf16.gmra.mrb[0].mxu0 %v3675
  %v3781 = vpop.f32.mrb[0].mxu0
  %v3782 = vadd.f32 0.0, %v3781
  %v3783 = vpop.f32.mrb[0].mxu0
  %v3784 = vpop.f32.mrb[0].mxu0
  %v3785 = vadd.f32 0.0, %v3784
  %v3786 = vpop.f32.mrb[0].mxu0
  %3787 = vmatprep.mubr.bf16.mxu0 0
  %3788 = vmatmul.mubr.bf16.gmra.mrb[0].mxu0 %v3676
  %v3789 = vpop.f32.mrb[0].mxu0
  %v3790 = vadd.f32 0.0, %v3789
  %v3791 = vpop.f32.mrb[0].mxu0
  %v3792 = vpop.f32.mrb[0].mxu0
  %v3793 = vadd.f32 0.0, %v3792
  %v3794 = vpop.f32.mrb[0].mxu0
  %3795 = vmatprep.mubr.bf16.mxu0 0
  %3796 = vmatmul.mubr.bf16.gmra.mrb[0].mxu0 %v3677
  %v3797 = vpop.f32.mrb[0].mxu0
  %v3798 = vadd.f32 0.0, %v3797
  %v3799 = vpop.f32.mrb[0].mxu0
  %v3800 = vpop.f32.mrb[0].mxu0
  %v3801 = vadd.f32 0.0, %v3800
  %v3802 = vpop.f32.mrb[0].mxu0
  %3803 = vmatprep.mubr.bf16.mxu0 0
  %3804 = vmatmul.mubr.bf16.gmra.mrb[0].mxu0 %v3678
  %v3805 = vpop.f32.mrb[0].mxu0
  %v3806 = vadd.f32 0.0, %v3805
  %v3807 = vpop.f32.mrb[0].mxu0
  %v3808 = vpop.f32.mrb[0].mxu0
  %v3809 = vadd.f32 0.0, %v3808
  %v3810 = vpop.f32.mrb[0].mxu0
  %3811 = vmatprep.mubr.bf16.mxu0 0
  %3812 = vmatmul.mubr.bf16.gmra.mrb[0].mxu0 %v3679
  %v3813 = vpop.f32.mrb[0].mxu0
  %v3814 = vadd.f32 0.0, %v3813
  %v3815 = vpop.f32.mrb[0].mxu0
  %v3816 = vpop.f32.mrb[0].mxu0
  %v3817 = vadd.f32 0.0, %v3816
  %v3818 = vpop.f32.mrb[0].mxu0
  %3819 = vmatprep.mubr.bf16.mxu0 0
  %3820 = vmatmul.mubr.bf16.gmra.mrb[0].mxu0 %v3680
  %v3821 = vpop.f32.mrb[0].mxu0
  %v3822 = vadd.f32 0.0, %v3821
  %v3823 = vpop.f32.mrb[0].mxu0
  %v3824 = vpop.f32.mrb[0].mxu0
  %v3825 = vadd.f32 0.0, %v3824
  %v3826 = vpop.f32.mrb[0].mxu0
  %3827 = vmatprep.mubr.bf16.mxu0 0
  %3828 = vmatmul.mubr.bf16.gmra.mrb[0].mxu0 %v3681
  %v3829 = vpop.f32.mrb[0].mxu0
  %v3830 = vadd.f32 0.0, %v3829
  %v3831 = vpop.f32.mrb[0].mxu0
  %v3832 = vpop.f32.mrb[0].mxu0
  %v3833 = vadd.f32 0.0, %v3832
  %v3834 = vpop.f32.mrb[0].mxu0
  %3835 = vmatprep.mubr.bf16.mxu0 0
  %3836 = vmatmul.mubr.bf16.gmra.mrb[0].mxu0 %v3682
  %v3837 = vpop.f32.mrb[0].mxu0
  %v3838 = vadd.f32 0.0, %v3837
  %v3839 = vpop.f32.mrb[0].mxu0
  %v3840 = vpop.f32.mrb[0].mxu0
  %v3841 = vadd.f32 0.0, %v3840
  %v3842 = vpop.f32.mrb[0].mxu0
  %3843 = vdwg.mxu0
  %v3844 = vadd.f32 %v3782, %v3785
  %v3845 = vadd.f32 %v3844, %v3790
  %v3846 = vadd.f32 %v3845, %v3793
  %v3847 = vadd.f32 %v3846, %v3798
  %v3848 = vadd.f32 %v3847, %v3801
  %v3849 = vadd.f32 %v3848, %v3806
  %v3850 = vadd.f32 %v3849, %v3809
  %v3851 = vadd.f32 %v3850, %v3814
  %v3852 = vadd.f32 %v3851, %v3817
  %v3853 = vadd.f32 %v3852, %v3822
  %v3854 = vadd.f32 %v3853, %v3825
  %v3855 = vadd.f32 %v3854, %v3830
  %v3856 = vadd.f32 %v3855, %v3833
  %v3857 = vadd.f32 %v3856, %v3838
  %v3858 = vadd.f32 %v3857, %v3841
  %v3859 = vrot.slane %v3858, 4
  %v3860 = vadd.f32 %v3858, %v3859
  %v3861 = vrot.slane %v3860, 2
  %v3862 = vadd.f32 %v3860, %v3861
  %v3863 = vrot.slane %v3862, 1
  %v3864 = vadd.f32 %v3862, %v3863
  %v3865 = vmul.f32 %v3864, 0.0078125
  %v3866 = vmul.f32 %v3782, %v3782
  %v3867 = vmul.f32 %v3785, %v3785
  %v3868 = vmul.f32 %v3790, %v3790
  %v3869 = vmul.f32 %v3793, %v3793
  %v3870 = vmul.f32 %v3798, %v3798
  %v3871 = vmul.f32 %v3801, %v3801
  %v3872 = vmul.f32 %v3806, %v3806
  %v3873 = vmul.f32 %v3809, %v3809
  %v3874 = vmul.f32 %v3814, %v3814
  %v3875 = vmul.f32 %v3817, %v3817
  %v3876 = vmul.f32 %v3822, %v3822
  %v3877 = vmul.f32 %v3825, %v3825
  %v3878 = vmul.f32 %v3830, %v3830
  %v3879 = vmul.f32 %v3833, %v3833
  %v3880 = vmul.f32 %v3838, %v3838
  %v3881 = vmul.f32 %v3841, %v3841
  %v3882 = vadd.f32 %v3866, %v3867
  %v3883 = vadd.f32 %v3882, %v3868
  %v3884 = vadd.f32 %v3883, %v3869
  %v3885 = vadd.f32 %v3884, %v3870
  %v3886 = vadd.f32 %v3885, %v3871
  %v3887 = vadd.f32 %v3886, %v3872
  %v3888 = vadd.f32 %v3887, %v3873
  %v3889 = vadd.f32 %v3888, %v3874
  %v3890 = vadd.f32 %v3889, %v3875
  %v3891 = vadd.f32 %v3890, %v3876
  %v3892 = vadd.f32 %v3891, %v3877
  %v3893 = vadd.f32 %v3892, %v3878
  %v3894 = vadd.f32 %v3893, %v3879
  %v3895 = vadd.f32 %v3894, %v3880
  %v3896 = vadd.f32 %v3895, %v3881
  %v3897 = vrot.slane %v3896, 4
  %v3898 = vadd.f32 %v3896, %v3897
  %v3899 = vrot.slane %v3898, 2
  %v3900 = vadd.f32 %v3898, %v3899
  %v3901 = vrot.slane %v3900, 1
  %v3902 = vadd.f32 %v3900, %v3901
  %v3903 = vmul.f32 %v3902, 0.0078125
  %v3904 = vmul.f32 %v3865, %v3865
  %v3905 = vsub.f32 %v3903, %v3904
  %v3906 = vmax.f32 %v3905, 0.0
  %v3907 = vld [vmem:[%s7] sm:$0x1]
  %v3908 = vadd.f32 %v3906, 1e-05
  %v3909 = vrsqrt.pop %v3908
  %v3910 = vmul.f32 %v3907, %v3909
  %v3911 = vld [vmem:[%s8] sm:$0x1]
  %v3912 = vmul.f32 %v3865, %v3910
  %v3913 = vsub.f32 %v3911, %v3912
  %v3915 = vlaneseq
  %v3916 = vshrl.u32 %v3915, 7
  %v3917 = vsub.s32 0, %v3916
  %v3918 = vrot.slane %v3910, %v3917
  %v3920 = vmul.f32 %v3782, %v3918
  %v3921 = vmul.f32 %v3785, %v3918
  %v3922 = vmul.f32 %v3790, %v3918
  %v3923 = vmul.f32 %v3793, %v3918
  %v3924 = vmul.f32 %v3798, %v3918
  %v3925 = vmul.f32 %v3801, %v3918
  %v3926 = vmul.f32 %v3806, %v3918
  %v3927 = vmul.f32 %v3809, %v3918
  %v3928 = vmul.f32 %v3814, %v3918
  %v3929 = vmul.f32 %v3817, %v3918
  %v3930 = vmul.f32 %v3822, %v3918
  %v3931 = vmul.f32 %v3825, %v3918
  %v3932 = vmul.f32 %v3830, %v3918
  %v3933 = vmul.f32 %v3833, %v3918
  %v3934 = vmul.f32 %v3838, %v3918
  %v3935 = vmul.f32 %v3841, %v3918
  %v3937 = vlaneseq
  %v3938 = vshrl.u32 %v3937, 7
  %v3939 = vsub.s32 0, %v3938
  %v3940 = vrot.slane %v3913, %v3939
  %v3942 = vadd.f32 %v3920, %v3940
  %v3943 = vadd.f32 %v3921, %v3940
  %v3944 = vadd.f32 %v3922, %v3940
  %v3945 = vadd.f32 %v3923, %v3940
  %v3946 = vadd.f32 %v3924, %v3940
  %v3947 = vadd.f32 %v3925, %v3940
  %v3948 = vadd.f32 %v3926, %v3940
  %v3949 = vadd.f32 %v3927, %v3940
  %v3950 = vadd.f32 %v3928, %v3940
  %v3951 = vadd.f32 %v3929, %v3940
  %v3952 = vadd.f32 %v3930, %v3940
  %v3953 = vadd.f32 %v3931, %v3940
  %v3954 = vadd.f32 %v3932, %v3940
  %v3955 = vadd.f32 %v3933, %v3940
  %v3956 = vadd.f32 %v3934, %v3940
  %v3957 = vadd.f32 %v3935, %v3940
  %v3958 = vld [vmem:[%s9] sm:$0xf]
  %v3959 = vld [vmem:[%s9 + $0x4] sm:$0xf]
  %v3960 = vld [vmem:[%s9 + $0x8] sm:$0xf]
  %v3961 = vld [vmem:[%s9 + $0xc] sm:$0xf]
  %v3962 = vld [vmem:[%s9 + $0x10] sm:$0xf]
  %v3963 = vld [vmem:[%s9 + $0x14] sm:$0xf]
  %v3964 = vld [vmem:[%s9 + $0x18] sm:$0xf]
  %v3965 = vld [vmem:[%s9 + $0x1c] sm:$0xf]
  %v3966 = vld [vmem:[%s9 + $0x20] sm:$0xf]
  %v3967 = vld [vmem:[%s9 + $0x24] sm:$0xf]
  %v3968 = vld [vmem:[%s9 + $0x28] sm:$0xf]
  %v3969 = vld [vmem:[%s9 + $0x2c] sm:$0xf]
  %v3970 = vld [vmem:[%s9 + $0x30] sm:$0xf]
  %v3971 = vld [vmem:[%s9 + $0x34] sm:$0xf]
  %v3972 = vld [vmem:[%s9 + $0x38] sm:$0xf]
  %v3973 = vld [vmem:[%s9 + $0x3c] sm:$0xf]
  %v3974 = vunpack.c.l.bf16 %v3958
  %v3975 = vunpack.c.l.bf16 %v3959
  %v3976 = vunpack.c.l.bf16 %v3960
  %v3977 = vunpack.c.l.bf16 %v3961
  %v3978 = vunpack.c.l.bf16 %v3962
  %v3979 = vunpack.c.l.bf16 %v3963
  %v3980 = vunpack.c.l.bf16 %v3964
  %v3981 = vunpack.c.l.bf16 %v3965
  %v3982 = vunpack.c.l.bf16 %v3966
  %v3983 = vunpack.c.l.bf16 %v3967
  %v3984 = vunpack.c.l.bf16 %v3968
  %v3985 = vunpack.c.l.bf16 %v3969
  %v3986 = vunpack.c.l.bf16 %v3970
  %v3987 = vunpack.c.l.bf16 %v3971
  %v3988 = vunpack.c.l.bf16 %v3972
  %v3989 = vunpack.c.l.bf16 %v3973
  %v3990 = vadd.f32 %v3942, %v3974
  %v3991 = vadd.f32 %v3943, %v3975
  %v3992 = vadd.f32 %v3944, %v3976
  %v3993 = vadd.f32 %v3945, %v3977
  %v3994 = vadd.f32 %v3946, %v3978
  %v3995 = vadd.f32 %v3947, %v3979
  %v3996 = vadd.f32 %v3948, %v3980
  %v3997 = vadd.f32 %v3949, %v3981
  %v3998 = vadd.f32 %v3950, %v3982
  %v3999 = vadd.f32 %v3951, %v3983
  %v4000 = vadd.f32 %v3952, %v3984
  %v4001 = vadd.f32 %v3953, %v3985
  %v4002 = vadd.f32 %v3954, %v3986
  %v4003 = vadd.f32 %v3955, %v3987
  %v4004 = vadd.f32 %v3956, %v3988
  %v4005 = vadd.f32 %v3957, %v3989
  %v4006 = vmax.f32 %v3990, 0.0
  %v4007 = vmax.f32 %v3991, 0.0
  %v4008 = vmax.f32 %v3992, 0.0
  %v4009 = vmax.f32 %v3993, 0.0
  %v4010 = vmax.f32 %v3994, 0.0
  %v4011 = vmax.f32 %v3995, 0.0
  %v4012 = vmax.f32 %v3996, 0.0
  %v4013 = vmax.f32 %v3997, 0.0
  %v4014 = vmax.f32 %v3998, 0.0
  %v4015 = vmax.f32 %v3999, 0.0
  %v4016 = vmax.f32 %v4000, 0.0
  %v4017 = vmax.f32 %v4001, 0.0
  %v4018 = vmax.f32 %v4002, 0.0
  %v4019 = vmax.f32 %v4003, 0.0
  %v4020 = vmax.f32 %v4004, 0.0
  %v4021 = vmax.f32 %v4005, 0.0
  %v4022 = vpack.c.bf16 %v4007, %v4006
  %v4023 = vpack.c.bf16 %v4009, %v4008
  %v4024 = vpack.c.bf16 %v4011, %v4010
  %v4025 = vpack.c.bf16 %v4013, %v4012
  %v4026 = vpack.c.bf16 %v4015, %v4014
  %v4027 = vpack.c.bf16 %v4017, %v4016
  %v4028 = vpack.c.bf16 %v4019, %v4018
  %v4029 = vpack.c.bf16 %v4021, %v4020
  %v4038 = vunpack.c.l.b16 %v4022
  %v4039 = vunpack.c.h.b16 %v4022
  %v4040 = vunpack.c.l.b16 %v4023
  %v4041 = vunpack.c.h.b16 %v4023
  %v4042 = vunpack.c.l.b16 %v4024
  %v4043 = vunpack.c.h.b16 %v4024
  %v4044 = vunpack.c.l.b16 %v4025
  %v4045 = vunpack.c.h.b16 %v4025
  %v4046 = vunpack.c.l.b16 %v4026
  %v4047 = vunpack.c.h.b16 %v4026
  %v4048 = vunpack.c.l.b16 %v4027
  %v4049 = vunpack.c.h.b16 %v4027
  %v4050 = vunpack.c.l.b16 %v4028
  %v4051 = vunpack.c.h.b16 %v4028
  %v4052 = vunpack.c.l.b16 %v4029
  %v4053 = vunpack.c.h.b16 %v4029
  %v4054 = vpack.c.b16 %v4038, %v4038
  %v4055 = vpack.c.b16 %v4039, %v4039
  %v4056 = vpack.c.b16 %v4040, %v4040
  %v4057 = vpack.c.b16 %v4041, %v4041
  %v4058 = vpack.c.b16 %v4042, %v4042
  %v4059 = vpack.c.b16 %v4043, %v4043
  %v4060 = vpack.c.b16 %v4044, %v4044
  %v4061 = vpack.c.b16 %v4045, %v4045
  %v4062 = vpack.c.b16 %v4046, %v4046
  %v4063 = vpack.c.b16 %v4047, %v4047
  %v4064 = vpack.c.b16 %v4048, %v4048
  %v4065 = vpack.c.b16 %v4049, %v4049
  %v4066 = vpack.c.b16 %v4050, %v4050
  %v4067 = vpack.c.b16 %v4051, %v4051
  %v4068 = vpack.c.b16 %v4052, %v4052
  %v4069 = vpack.c.b16 %v4053, %v4053
  %4086 = vst [vmem:[%s10] sm:$0xf] %v4054
  %4087 = vst [vmem:[%s10 + $0x4] sm:$0xf] %v4055
  %4088 = vst [vmem:[%s10 + $0x8] sm:$0xf] %v4056
  %4089 = vst [vmem:[%s10 + $0xc] sm:$0xf] %v4057
  %4090 = vst [vmem:[%s10 + $0x10] sm:$0xf] %v4058
  %4091 = vst [vmem:[%s10 + $0x14] sm:$0xf] %v4059
  %4092 = vst [vmem:[%s10 + $0x18] sm:$0xf] %v4060
  %4093 = vst [vmem:[%s10 + $0x1c] sm:$0xf] %v4061
  %4094 = vst [vmem:[%s10 + $0x20] sm:$0xf] %v4062
  %4095 = vst [vmem:[%s10 + $0x24] sm:$0xf] %v4063
  %4096 = vst [vmem:[%s10 + $0x28] sm:$0xf] %v4064
  %4097 = vst [vmem:[%s10 + $0x2c] sm:$0xf] %v4065
  %4098 = vst [vmem:[%s10 + $0x30] sm:$0xf] %v4066
  %4099 = vst [vmem:[%s10 + $0x34] sm:$0xf] %v4067
  %4100 = vst [vmem:[%s10 + $0x38] sm:$0xf] %v4068
  %4101 = vst [vmem:[%s10 + $0x3c] sm:$0xf] %v4069
  // Predicated region
  $region42: #{bottleneck_forward.3} parent=0 // pred_check
    _
  $region43: #{bottleneck_forward.3} parent=0 // pred_check_branch
    %4103 = sbr.rel (0) target = $region45
  $region44: #{bottleneck_forward.3} parent=0 // pred_region
    _
  $region45: #{bottleneck_forward.3} parent=0 // pred_fallthru
    _
  // Predicated region
  $region46: #{bottleneck_forward.3} parent=0 // pred_check
    _
  $region47: #{bottleneck_forward.3} parent=0 // pred_check_branch
    %4105 = sbr.rel (0) target = $region49
  $region48: #{bottleneck_forward.3} parent=0 // pred_region
    _
  $region49: #{bottleneck_forward.3} parent=0 // pred_fallthru
    _

</llo_original>
